<compile_context>
chip_gen: v6e
topology: v6e:2x2x1
jax: 0.10.0
libtpu: 0.0.40
codegen_flags: <defaults>
</compile_context>

<pallas_src>
import jax
import jax.numpy as jnp
from jax.experimental import pallas as pl
from jax.experimental.pallas import tpu as pltpu

D_IN, D_H1, D_H2, D_OUT = 1024, 512, 128, 1


def toxicity_mlp_kernel(x_ref, w1_ref, b1_ref, w2_ref, b2_ref, w3_ref, b3_ref,
                        o_ref):
    # Layer 1: [tb,1024] @ [1024,512] on the MXU, bf16 inputs, f32 accumulate.
    h1 = jnp.dot(x_ref[...], w1_ref[...], preferred_element_type=jnp.float32)
    # Bias + ReLU in f32, then carry only the bf16 copy layer 2's MXU needs.
    h1 = jnp.maximum(h1 + b1_ref[...], 0.0).astype(jnp.bfloat16)

    # Dropout(p=0.3): identity (eval mode).

    # Layer 2: [tb,512] @ [512,128], bf16 inputs, f32 accumulate.
    h2 = jnp.dot(h1, w2_ref[...], preferred_element_type=jnp.float32)
    h2 = jnp.maximum(h2 + b2_ref[...], 0.0)

    # Layer 3: output width is 1 -> produce a lane-dense [1, tb] row by
    # contracting the 128-wide hidden axis against the [1,128] weight row
    # (avoids a degenerate single-column matmul AND 1-lane masked stores).
    row = jnp.einsum('ok,bk->ob', w3_ref[...], h2,
                     preferred_element_type=jnp.float32)
    o_ref[...] = (row + b3_ref[...]).astype(o_ref.dtype)


def _round_up(n, m):
    return ((n + m - 1) // m) * m


def _invariant(shape):
    # Grid-invariant operand (weights / biases): constant index map.
    return pl.BlockSpec(shape, lambda i: (0,) * len(shape))


def _forward(x_bf16, kparams, tb, n_steps):
    """Fused MLP over the first n_steps*tb rows of x_bf16 -> (n_steps*tb, 1)."""
    w1, b1, w2, b2, w3_row, b3 = kparams
    out = pl.pallas_call(
        toxicity_mlp_kernel,
        out_shape=jax.ShapeDtypeStruct((n_steps, 1, tb), jnp.float32),
        grid_spec=pltpu.PrefetchScalarGridSpec(
            num_scalar_prefetch=0,
            grid=(n_steps,),
            in_specs=[
                pl.BlockSpec((tb, D_IN), lambda i: (i, 0)),  # x (streamed bf16)
                _invariant((D_IN, D_H1)),                    # w1 (bf16)
                _invariant((1, D_H1)),                       # b1 (f32)
                _invariant((D_H1, D_H2)),                    # w2 (bf16)
                _invariant((1, D_H2)),                       # b2 (f32)
                _invariant((1, D_H2)),                       # w3 row (f32)
                _invariant((1, D_OUT)),                      # b3 (f32)
            ],
            # Lane-dense (1, tb) blocks: unmasked vst + one wide writeback DMA
            # per step instead of tb/8 masked 1-lane partial stores.
            out_specs=pl.BlockSpec((None, 1, tb), lambda i: (i, 0, 0)),
        ),
        compiler_params=pltpu.CompilerParams(
            dimension_semantics=("parallel",),
            vmem_limit_bytes=32 << 20),
    )(x_bf16, w1, b1, w2, b2, w3_row, b3)
    # (n_steps, 1, tb) -> (n_steps*tb, 1); row-major order matches batch order.
    return out.reshape(n_steps * tb, 1)


def toxicity_net(x, kparams, *, tile_b=512):
    """x: [B, 1024] float -> [B, 1] float32.

    tile_b: batch tile (multiple of 256). 512 keeps per-step overhead small
    while fitting easily in every chip's scoped VMEM with bf16 x; it is
    automatically reduced (down to 256) to guarantee >= 2 grid steps so the
    parallel batch axis can shard across both v7x TensorCores.
    """
    B = x.shape[0]
    assert B > 0 and x.shape[1] == D_IN, x.shape
    assert tile_b % 256 == 0, "tile_b must be a multiple of 256"

    # Stream x as bf16: it is the kernel's only per-row HBM traffic. Callers
    # already holding bf16 activations can pass them directly and skip the
    # (single, XLA-fusible) cast.
    if x.dtype != jnp.bfloat16:
        x = x.astype(jnp.bfloat16)

    # Tile selection: keep >= 2 grid steps whenever the batch allows it, in
    # 256-row multiples for MXU M-fill.
    tb = tile_b
    if B >= 2 * 256:
        tb = min(tb, max(256, (B // 2) // 256 * 256))

    n_main = B // tb
    b_main = n_main * tb
    rem = B - b_main

    outs = []
    if n_main > 0:
        # Full x is passed; the grid only touches the first n_main*tb rows,
        # so no pad / slice copy of the dominant operand is needed.
        outs.append(_forward(x, kparams, tb, n_main))
    if rem > 0:
        # Remainder tile: copy/pad only the tail rows (cheap), never all of x.
        r_pad = _round_up(rem, 16)
        tail = x[b_main:]
        if r_pad != rem:
            tail = jnp.pad(tail, ((0, r_pad - rem), (0, 0)))
        outs.append(_forward(tail, kparams, r_pad, 1)[:rem])
    return outs[0] if len(outs) == 1 else jnp.concatenate(outs, axis=0)


def init_params(key):
    """Deterministic init mimicking nn.Linear's U(-1/sqrt(fan_in), +)."""
    ks = jax.random.split(key, 6)

    def linear(kw, kb, fan_in, fan_out):
        bound = 1.0 / jnp.sqrt(fan_in)
        w = jax.random.uniform(kw, (fan_in, fan_out), jnp.float32, -bound, bound)
        b = jax.random.uniform(kb, (1, fan_out), jnp.float32, -bound, bound)
        return w, b

    w1, b1 = linear(ks[0], ks[1], D_IN, D_H1)
    w2, b2 = linear(ks[2], ks[3], D_H1, D_H2)
    w3, b3 = linear(ks[4], ks[5], D_H2, D_OUT)
    return (w1, b1, w2, b2, w3, b3)


def prepare_params(params):
    """One-time conversion of f32 params to the kernel layout.

    w1, w2 -> bf16 (MXU-native, half the HBM/VMEM weight bytes);
    w3 [128,1] -> f32 row [1,128] for the lane-dense layer-3 contraction;
    biases stay f32.
    """
    w1, b1, w2, b2, w3, b3 = params
    return (w1.astype(jnp.bfloat16), b1.astype(jnp.float32),
            w2.astype(jnp.bfloat16), b2.astype(jnp.float32),
            w3.reshape(1, D_H2).astype(jnp.float32),
            b3.astype(jnp.float32))


def reference(x, params):
    w1, b1, w2, b2, w3, b3 = params
    h = jnp.maximum(x @ w1 + b1, 0.0)
    h = jnp.maximum(h @ w2 + b2, 0.0)
    return h @ w3 + b3


if __name__ == "__main__":
    key = jax.random.PRNGKey(0)
    k_x, k_x2, k_p = jax.random.split(key, 3)

    params = init_params(k_p)
    kparams = prepare_params(params)

    # Tile-aligned batch: B=512 with tile_b=512 is capped to tb=256 -> a
    # 2-step "parallel" grid (pipelined x DMA, 2-TensorCore path on v7x).
    B = 512
    x = jax.random.normal(k_x, (B, D_IN), jnp.float32)
    out = jax.block_until_ready(toxicity_net(x, kparams))
    ref = reference(x, params)
    assert out.shape == (B, D_OUT), out.shape
    # bf16 matmul inputs (f32 accumulate) -> tolerance loosened vs f32 ref.
    assert jnp.allclose(out, ref, atol=2e-2, rtol=2e-2), (
        f"max abs err {jnp.max(jnp.abs(out - ref))}")

    # Small / ragged batch: exercises the remainder-tile path (no full pad).
    B2 = 10
    x2 = jax.random.normal(k_x2, (B2, D_IN), jnp.float32)
    out2 = jax.block_until_ready(toxicity_net(x2, kparams))
    ref2 = reference(x2, params)
    assert out2.shape == (B2, D_OUT), out2.shape
    assert jnp.allclose(out2, ref2, atol=2e-2, rtol=2e-2), (
        f"max abs err {jnp.max(jnp.abs(out2 - ref2))}")

    print("KERNEL_OK")
</pallas_src>

<mosaic_0001>
module attributes {stable_mosaic.version = 11 : i64} {
  func.func @toxicity_mlp_kernel(%arg0: i32, %arg1: memref<256x1024xbf16, #tpu.memory_space<vmem>>, %arg2: memref<1024x512xbf16, #tpu.memory_space<vmem>>, %arg3: memref<1x512xf32, #tpu.memory_space<vmem>>, %arg4: memref<512x128xbf16, #tpu.memory_space<vmem>>, %arg5: memref<1x128xf32, #tpu.memory_space<vmem>>, %arg6: memref<1x128xf32, #tpu.memory_space<vmem>>, %arg7: memref<1x1xf32, #tpu.memory_space<vmem>>, %arg8: memref<1x1x256xf32, #tpu.memory_space<vmem>>) attributes {dimension_semantics = [#tpu.dimension_semantics<parallel>], iteration_bounds = array<i64: 2>, scalar_prefetch = 0 : i64, scratch_operands = 0 : i64, tpu.core_type = #tpu.core_type<tc>, window_params = [{transform_indices = @transform_0, window_bounds = array<i64: 256, 1024>}, {pipeline_mode = #tpu.pipeline_mode<synchronous>, transform_indices = @transform_1, window_bounds = array<i64: 1024, 512>}, {pipeline_mode = #tpu.pipeline_mode<synchronous>, transform_indices = @transform_2, window_bounds = array<i64: 1, 512>}, {pipeline_mode = #tpu.pipeline_mode<synchronous>, transform_indices = @transform_3, window_bounds = array<i64: 512, 128>}, {pipeline_mode = #tpu.pipeline_mode<synchronous>, transform_indices = @transform_4, window_bounds = array<i64: 1, 128>}, {pipeline_mode = #tpu.pipeline_mode<synchronous>, transform_indices = @transform_5, window_bounds = array<i64: 1, 128>}, {pipeline_mode = #tpu.pipeline_mode<synchronous>, transform_indices = @transform_6, window_bounds = array<i64: 1, 1>}, {transform_indices = @transform_7, window_bounds = array<i64: 1, 1, 256>}]} {
    %c0 = arith.constant 0 : index
    %c0_0 = arith.constant 0 : index
    %0 = vector.load %arg1[%c0, %c0_0] : memref<256x1024xbf16, #tpu.memory_space<vmem>>, vector<256x1024xbf16>
    %c0_1 = arith.constant 0 : index
    %c0_2 = arith.constant 0 : index
    %1 = vector.load %arg2[%c0_1, %c0_2] : memref<1024x512xbf16, #tpu.memory_space<vmem>>, vector<1024x512xbf16>
    %cst = arith.constant dense<0.000000e+00> : vector<256x512xf32>
    %2 = tpu.matmul %0, %1, %cst {dimension_numbers = #tpu.dot_dimension_numbers<[1], [0], [0], [1], [0, 0, 1, 1], [], []>} : vector<256x1024xbf16>, vector<1024x512xbf16>, vector<256x512xf32> -> vector<256x512xf32>
    %c0_3 = arith.constant 0 : index
    %c0_4 = arith.constant 0 : index
    %3 = vector.load %arg3[%c0_3, %c0_4] : memref<1x512xf32, #tpu.memory_space<vmem>>, vector<1x512xf32>
    %4 = vector.broadcast %3 : vector<1x512xf32> to vector<256x512xf32>
    %5 = arith.addf %2, %4 : vector<256x512xf32>
    %cst_5 = arith.constant 0.000000e+00 : f32
    %6 = vector.broadcast %cst_5 : f32 to vector<256x512xf32>
    %7 = arith.maximumf %5, %6 : vector<256x512xf32>
    %8 = arith.truncf %7 : vector<256x512xf32> to vector<256x512xbf16>
    %c0_6 = arith.constant 0 : index
    %c0_7 = arith.constant 0 : index
    %9 = vector.load %arg4[%c0_6, %c0_7] : memref<512x128xbf16, #tpu.memory_space<vmem>>, vector<512x128xbf16>
    %cst_8 = arith.constant dense<0.000000e+00> : vector<256x128xf32>
    %10 = tpu.matmul %8, %9, %cst_8 {dimension_numbers = #tpu.dot_dimension_numbers<[1], [0], [0], [1], [0, 0, 1, 1], [], []>} : vector<256x512xbf16>, vector<512x128xbf16>, vector<256x128xf32> -> vector<256x128xf32>
    %c0_9 = arith.constant 0 : index
    %c0_10 = arith.constant 0 : index
    %11 = vector.load %arg5[%c0_9, %c0_10] : memref<1x128xf32, #tpu.memory_space<vmem>>, vector<1x128xf32>
    %12 = vector.broadcast %11 : vector<1x128xf32> to vector<256x128xf32>
    %13 = arith.addf %10, %12 : vector<256x128xf32>
    %cst_11 = arith.constant 0.000000e+00 : f32
    %14 = vector.broadcast %cst_11 : f32 to vector<256x128xf32>
    %15 = arith.maximumf %13, %14 : vector<256x128xf32>
    %c0_12 = arith.constant 0 : index
    %c0_13 = arith.constant 0 : index
    %16 = vector.load %arg6[%c0_12, %c0_13] : memref<1x128xf32, #tpu.memory_space<vmem>>, vector<1x128xf32>
    "tpu.trace_start"() <{level = 10 : i32, message = "ok,bk->ob"}> : () -> ()
    %cst_14 = arith.constant dense<0.000000e+00> : vector<1x256xf32>
    %17 = tpu.matmul %16, %15, %cst_14 {dimension_numbers = #tpu.dot_dimension_numbers<[1], [1], [0], [0], [0, 0, 1, 0], [], []>} : vector<1x128xf32>, vector<256x128xf32>, vector<1x256xf32> -> vector<1x256xf32>
    "tpu.trace_stop"() : () -> ()
    %c0_15 = arith.constant 0 : index
    %c0_16 = arith.constant 0 : index
    %18 = vector.load %arg7[%c0_15, %c0_16] : memref<1x1xf32, #tpu.memory_space<vmem>>, vector<1x1xf32>
    %19 = vector.broadcast %18 : vector<1x1xf32> to vector<1x256xf32>
    %20 = arith.addf %17, %19 : vector<1x256xf32>
    %c0_17 = arith.constant 0 : index
    %c0_18 = arith.constant 0 : index
    %c0_19 = arith.constant 0 : index
    %21 = vector.load %arg8[%c0_17, %c0_18, %c0_19] : memref<1x1x256xf32, #tpu.memory_space<vmem>>, vector<1x1x256xf32>
    %22 = vector.shape_cast %21 : vector<1x1x256xf32> to vector<1x256xf32>
    %23 = vector.shape_cast %20 : vector<1x256xf32> to vector<1x1x256xf32>
    tpu.vector_store %arg8[%c0_17, %c0_18, %c0_19], %23 {strides = array<i32>} : memref<1x1x256xf32, #tpu.memory_space<vmem>>, vector<1x1x256xf32>,
    return
  }
  func.func @transform_0(%arg0: i32) -> (i32, i32) {
    %c0_i32 = arith.constant 0 : i32
    %c0_i32_0 = arith.constant 0 : i32
    return %arg0, %c0_i32 : i32, i32
  }
  func.func @transform_1(%arg0: i32) -> (i32, i32) {
    %c0_i32 = arith.constant 0 : i32
    %c0_i32_0 = arith.constant 0 : i32
    %c0_i32_1 = arith.constant 0 : i32
    return %c0_i32, %c0_i32_0 : i32, i32
  }
  func.func @transform_2(%arg0: i32) -> (i32, i32) {
    %c0_i32 = arith.constant 0 : i32
    %c0_i32_0 = arith.constant 0 : i32
    %c0_i32_1 = arith.constant 0 : i32
    return %c0_i32, %c0_i32_0 : i32, i32
  }
  func.func @transform_3(%arg0: i32) -> (i32, i32) {
    %c0_i32 = arith.constant 0 : i32
    %c0_i32_0 = arith.constant 0 : i32
    %c0_i32_1 = arith.constant 0 : i32
    return %c0_i32, %c0_i32_0 : i32, i32
  }
  func.func @transform_4(%arg0: i32) -> (i32, i32) {
    %c0_i32 = arith.constant 0 : i32
    %c0_i32_0 = arith.constant 0 : i32
    %c0_i32_1 = arith.constant 0 : i32
    return %c0_i32, %c0_i32_0 : i32, i32
  }
  func.func @transform_5(%arg0: i32) -> (i32, i32) {
    %c0_i32 = arith.constant 0 : i32
    %c0_i32_0 = arith.constant 0 : i32
    %c0_i32_1 = arith.constant 0 : i32
    return %c0_i32, %c0_i32_0 : i32, i32
  }
  func.func @transform_6(%arg0: i32) -> (i32, i32) {
    %c0_i32 = arith.constant 0 : i32
    %c0_i32_0 = arith.constant 0 : i32
    %c0_i32_1 = arith.constant 0 : i32
    return %c0_i32, %c0_i32_0 : i32, i32
  }
  func.func @transform_7(%arg0: i32) -> (i32, i32, i32) {
    %c0_i32 = arith.constant 0 : i32
    %c0_i32_0 = arith.constant 0 : i32
    %c0_i32_1 = arith.constant 0 : i32
    return %arg0, %c0_i32, %c0_i32_0 : i32, i32, i32
  }
}

</mosaic_0001>

<llo_original>
// kernel: tpu_custom_call.1
$region0: #{tpu_custom_call.1}
  #allocation0 [shape = 'u32[]', space=smem, size = 0x4, offset = 0x4, fixed_abs, tag = 'smem constant byte address 0x4 - core index']
  #allocation1 [shape = 'u32[144,128]{1,0:T(1,128)}', space=vmem, size = 0x12000, scoped, tag = 'internal scratch']
  #allocation2 [shape = 'f32[1,1]{1,0:T(1,128)S(1)}', space=vmem, size = 0x200, scoped, tag = 'scoped memory for tpu_custom_call.1']
  %s0 = inlined_call_operand.hbm [shape: bf16[512,1024], index: 0, kind: input, shape index: {}]
  %s1 = inlined_call_operand.hbm [shape: bf16[1024,512], index: 1, kind: input, shape index: {}]
  %s2 = inlined_call_operand.vmem [shape: f32[1,512], index: 2, kind: input, shape index: {}]
  %s3 = inlined_call_operand.hbm [shape: bf16[512,128], index: 3, kind: input, shape index: {}]
  %s4 = inlined_call_operand.vmem [shape: f32[1,128], index: 4, kind: input, shape index: {}]
  %s5 = inlined_call_operand.vmem [shape: f32[1,128], index: 5, kind: input, shape index: {}]
  %s6 = inlined_call_operand.<no memory space> [shape: f32[1,1], index: 6, kind: input, shape index: {}]
  %s7 = inlined_call_operand.hbm [shape: f32[2,1,256], index: 7, kind: output, shape index: {}]
  %s8 = sld [smem:[#allocation0]]
  $region73: #{tpu_custom_call.1} parent=0
    _
  %s10 = ssub.s32 1, %s8
  %s11 = scalar_select 0, %s10, %s8
  %v12 = vstv %s6
  %13 = vst [vmem:[#allocation2] sm:$0x1] %v12
  $region1: #{tpu_custom_call.1} parent=0
    #allocation3 [shape = 'u8[1048576]{0}', space=vmem, size = 0x100000, scoped, tag = 'input window, operand 0']
    #allocation4 [shape = 's32[2]{0}', space=sflag, size = 0x8, scoped, tag = 'scoped memory for tpu_custom_call.1']
    #allocation5 [shape = 's32[2]{0}', space=sflag, size = 0x8, scoped, tag = 'scoped memory for tpu_custom_call.1']
    #allocation6 [shape = 'u8[1048576]{0}', space=vmem, size = 0x100000, scoped, tag = 'input window, operand 1, single buffered']
    #allocation7 [shape = 's32[1]{0}', space=sflag, size = 0x4, scoped, tag = 'scoped memory for tpu_custom_call.1']
    #allocation8 [shape = 'u8[131072]{0}', space=vmem, size = 0x20000, scoped, tag = 'input window, operand 3, single buffered']
    #allocation9 [shape = 'u8[2048]{0}', space=vmem, size = 0x800, scoped, tag = 'output window, operand 0']
    %14 = vsyncpa [#allocation4], 0
    %s15 = scalar_lea.sflag [#allocation4], 1
    %16 = vsyncpa %s15, 0
    %17 = vsyncpa [#allocation7], 0
    %18 = vsyncpa [#allocation5], 0
    %s19 = scalar_lea.sflag [#allocation5], 1
    %20 = vsyncpa %s19, 0
    loop: start=0, step=1, limit=4
    $region2: #{tpu_custom_call.1} parent=1 // loop_pre_header
      _
    $region3: #{tpu_custom_call.1} parent=1 // loop_header
      %s22 = sphi 0, %s26
      %p23 = scmp.ge.s32.totalorder %s22, 4
      %s32 = sphi 0, %s34
      %s35 = sphi 0, %s32
      %s36 = sphi 0, %s35
      %s52 = sphi 0, %s36
      %s56 = sphi 0, %s56
      %s58 = sphi 0, %s56
      %s59 = sphi 0, %s58
      %s73 = sphi 0, %s59
      %s77 = sphi 0, %s77
      %s79 = sphi 0, %s77
      %s80 = sphi 0, %s79
      %s94 = sphi 0, %s80
      %s98 = sphi 0, %s98
      %s100 = sphi 0, %s98
      %s101 = sphi 0, %s100
      %s115 = sphi 0, %s101
      %s119 = sphi 0, %s119
      %s121 = sphi 0, %s119
      %s122 = sphi 0, %s121
      %s136 = sphi 0, %s122
      %s140 = sphi 0, %s140
      %s142 = sphi 0, %s140
      %s143 = sphi 0, %s142
      %s157 = sphi 0, %s143
      %s161 = sphi 0, %s161
      %s163 = sphi 0, %s161
      %s164 = sphi 0, %s163
      %s178 = sphi 0, %s164
      %s184 = sphi 0, %s186
      %s187 = sphi 0, %s184
      %s188 = sphi 0, %s187
      %s204 = sphi 0, %s188
    $region4: #{tpu_custom_call.1} parent=1 // loop_header_branch
      %25 = sbr.rel (%p23) target = $region8
    $region5: #{tpu_custom_call.1} parent=1 // loop_body
      %s27 = ssub.s32 %s22, 1
      %s28 = ssub.s32 %s22, 2
      %s29 = sadd.s32 %s22, 1
      %s30 = ssub.s32 %s22, %s29
      %p31 = scmp.eq.s32.totalorder %s30, 0
      %s33 = sadd.s32 %s32, 1
      %s34 = scalar_select %p31, %s32, %s33
      %p37 = pneg %p31
      %p38 = scmp.eq.s32.totalorder %s22, 1
      %p39 = por %p37, %p38
      %p40 = scmp.ne.s32.totalorder %s32, %s35
      %p41 = scmp.eq.s32.totalorder %s22, 0
      %p42 = por %p40, %p41
      %p43 = scmp.ne.s32.totalorder %s32, %s35
      %p44 = scmp.eq.s32.totalorder %s27, 1
      %p45 = por %p43, %p44
      %p46 = scmp.ne.s32.totalorder %s35, %s36
      %p47 = scmp.eq.s32.totalorder %s27, 0
      %p48 = por %p46, %p47
      %p49 = scmp.ne.s32.totalorder %s35, %s36
      %p50 = scmp.eq.s32.totalorder %s28, 1
      %p51 = por %p49, %p50
      %p53 = scmp.ne.s32.totalorder %s36, %s52
      %p54 = scmp.eq.s32.totalorder %s28, 0
      %p55 = por %p53, %p54
      %s57 = sadd.s32 %s56, 1
      %p60 = scmp.eq.s32.totalorder %s22, 1
      %p61 = scmp.ne.s32.totalorder %s56, %s58
      %p62 = scmp.eq.s32.totalorder %s22, 0
      %p63 = por %p61, %p62
      %p64 = scmp.ne.s32.totalorder %s56, %s58
      %p65 = scmp.eq.s32.totalorder %s27, 1
      %p66 = por %p64, %p65
      %p67 = scmp.ne.s32.totalorder %s58, %s59
      %p68 = scmp.eq.s32.totalorder %s27, 0
      %p69 = por %p67, %p68
      %p70 = scmp.ne.s32.totalorder %s58, %s59
      %p71 = scmp.eq.s32.totalorder %s28, 1
      %p72 = por %p70, %p71
      %p74 = scmp.ne.s32.totalorder %s59, %s73
      %p75 = scmp.eq.s32.totalorder %s28, 0
      %p76 = por %p74, %p75
      %s78 = sadd.s32 %s77, 1
      %p81 = scmp.eq.s32.totalorder %s22, 1
      %p82 = scmp.ne.s32.totalorder %s77, %s79
      %p83 = scmp.eq.s32.totalorder %s22, 0
      %p84 = por %p82, %p83
      %p85 = scmp.ne.s32.totalorder %s77, %s79
      %p86 = scmp.eq.s32.totalorder %s27, 1
      %p87 = por %p85, %p86
      %p88 = scmp.ne.s32.totalorder %s79, %s80
      %p89 = scmp.eq.s32.totalorder %s27, 0
      %p90 = por %p88, %p89
      %p91 = scmp.ne.s32.totalorder %s79, %s80
      %p92 = scmp.eq.s32.totalorder %s28, 1
      %p93 = por %p91, %p92
      %p95 = scmp.ne.s32.totalorder %s80, %s94
      %p96 = scmp.eq.s32.totalorder %s28, 0
      %p97 = por %p95, %p96
      %s99 = sadd.s32 %s98, 1
      %p102 = scmp.eq.s32.totalorder %s22, 1
      %p103 = scmp.ne.s32.totalorder %s98, %s100
      %p104 = scmp.eq.s32.totalorder %s22, 0
      %p105 = por %p103, %p104
      %p106 = scmp.ne.s32.totalorder %s98, %s100
      %p107 = scmp.eq.s32.totalorder %s27, 1
      %p108 = por %p106, %p107
      %p109 = scmp.ne.s32.totalorder %s100, %s101
      %p110 = scmp.eq.s32.totalorder %s27, 0
      %p111 = por %p109, %p110
      %p112 = scmp.ne.s32.totalorder %s100, %s101
      %p113 = scmp.eq.s32.totalorder %s28, 1
      %p114 = por %p112, %p113
      %p116 = scmp.ne.s32.totalorder %s101, %s115
      %p117 = scmp.eq.s32.totalorder %s28, 0
      %p118 = por %p116, %p117
      %s120 = sadd.s32 %s119, 1
      %p123 = scmp.eq.s32.totalorder %s22, 1
      %p124 = scmp.ne.s32.totalorder %s119, %s121
      %p125 = scmp.eq.s32.totalorder %s22, 0
      %p126 = por %p124, %p125
      %p127 = scmp.ne.s32.totalorder %s119, %s121
      %p128 = scmp.eq.s32.totalorder %s27, 1
      %p129 = por %p127, %p128
      %p130 = scmp.ne.s32.totalorder %s121, %s122
      %p131 = scmp.eq.s32.totalorder %s27, 0
      %p132 = por %p130, %p131
      %p133 = scmp.ne.s32.totalorder %s121, %s122
      %p134 = scmp.eq.s32.totalorder %s28, 1
      %p135 = por %p133, %p134
      %p137 = scmp.ne.s32.totalorder %s122, %s136
      %p138 = scmp.eq.s32.totalorder %s28, 0
      %p139 = por %p137, %p138
      %s141 = sadd.s32 %s140, 1
      %p144 = scmp.eq.s32.totalorder %s22, 1
      %p145 = scmp.ne.s32.totalorder %s140, %s142
      %p146 = scmp.eq.s32.totalorder %s22, 0
      %p147 = por %p145, %p146
      %p148 = scmp.ne.s32.totalorder %s140, %s142
      %p149 = scmp.eq.s32.totalorder %s27, 1
      %p150 = por %p148, %p149
      %p151 = scmp.ne.s32.totalorder %s142, %s143
      %p152 = scmp.eq.s32.totalorder %s27, 0
      %p153 = por %p151, %p152
      %p154 = scmp.ne.s32.totalorder %s142, %s143
      %p155 = scmp.eq.s32.totalorder %s28, 1
      %p156 = por %p154, %p155
      %p158 = scmp.ne.s32.totalorder %s143, %s157
      %p159 = scmp.eq.s32.totalorder %s28, 0
      %p160 = por %p158, %p159
      %s162 = sadd.s32 %s161, 1
      %p165 = scmp.eq.s32.totalorder %s22, 1
      %p166 = scmp.ne.s32.totalorder %s161, %s163
      %p167 = scmp.eq.s32.totalorder %s22, 0
      %p168 = por %p166, %p167
      %p169 = scmp.ne.s32.totalorder %s161, %s163
      %p170 = scmp.eq.s32.totalorder %s27, 1
      %p171 = por %p169, %p170
      %p172 = scmp.ne.s32.totalorder %s163, %s164
      %p173 = scmp.eq.s32.totalorder %s27, 0
      %p174 = por %p172, %p173
      %p175 = scmp.ne.s32.totalorder %s163, %s164
      %p176 = scmp.eq.s32.totalorder %s28, 1
      %p177 = por %p175, %p176
      %p179 = scmp.ne.s32.totalorder %s164, %s178
      %p180 = scmp.eq.s32.totalorder %s28, 0
      %p181 = por %p179, %p180
      %s182 = ssub.s32 %s22, %s29
      %p183 = scmp.eq.s32.totalorder %s182, 0
      %s185 = sadd.s32 %s184, 1
      %s186 = scalar_select %p183, %s184, %s185
      %p189 = pneg %p183
      %p190 = scmp.eq.s32.totalorder %s22, 1
      %p191 = por %p189, %p190
      %p192 = scmp.ne.s32.totalorder %s184, %s187
      %p193 = scmp.eq.s32.totalorder %s22, 0
      %p194 = por %p192, %p193
      %p195 = scmp.ne.s32.totalorder %s184, %s187
      %p196 = scmp.eq.s32.totalorder %s27, 1
      %p197 = por %p195, %p196
      %p198 = scmp.ne.s32.totalorder %s187, %s188
      %p199 = scmp.eq.s32.totalorder %s27, 0
      %p200 = por %p198, %p199
      %p201 = scmp.ne.s32.totalorder %s187, %s188
      %p202 = scmp.eq.s32.totalorder %s28, 1
      %p203 = por %p201, %p202
      %p205 = scmp.ne.s32.totalorder %s188, %s204
      %p206 = scmp.eq.s32.totalorder %s28, 0
      %p207 = por %p205, %p206
      %p208 = scmp.le.s32.totalorder 1, %s22
      %p209 = scmp.lt.s32.totalorder %s22, 3
      %p210 = pnand %p208, %p209
      %p211 = pneg %p210
      // Predicated region
      $region9: #{tpu_custom_call.1} parent=5 // pred_check
        _
      $region10: #{tpu_custom_call.1} parent=5 // pred_check_branch
        %213 = sbr.rel (%p210) target = $region12
      $region11: #{tpu_custom_call.1} parent=5 // pred_region
        %s214 = ssub.s32 %s22, 1
        // Predicated region
        $region13: #{tpu_custom_call.1} parent=11 // pred_check
          %p215 = pneg %p69
        $region14: #{tpu_custom_call.1} parent=11 // pred_check_branch
          %217 = sbr.rel (%p215) target = $region16
        $region15: #{tpu_custom_call.1} parent=11 // pred_region
          %s219 = ssub.s32 32768, 32768
          %220 = vsyncadd [#allocation7], %s219
          %s221 = sshll.u32 [#allocation6], 4
          %s222 = int_to_ptr.vmem [resolvable:$true] %s221
          %227 = dma.hbm_to_vmem [thread:$0]  %s1, 32768, %s222, [#allocation7], 256, 256, 16
        $region16: #{tpu_custom_call.1} parent=11 // pred_fallthru
          _
        // Predicated region
        $region17: #{tpu_custom_call.1} parent=11 // pred_check
          %p228 = pneg %p90
        $region18: #{tpu_custom_call.1} parent=11 // pred_check_branch
          %230 = sbr.rel (%p228) target = $region20
        $region19: #{tpu_custom_call.1} parent=11 // pred_region
          _
        $region20: #{tpu_custom_call.1} parent=11 // pred_fallthru
          _
        // Predicated region
        $region21: #{tpu_custom_call.1} parent=11 // pred_check
          %p231 = pneg %p111
        $region22: #{tpu_custom_call.1} parent=11 // pred_check_branch
          %233 = sbr.rel (%p231) target = $region24
        $region23: #{tpu_custom_call.1} parent=11 // pred_region
          %s235 = ssub.s32 4096, 4096
          %236 = vsyncadd [#allocation7], %s235
          %s237 = sshll.u32 [#allocation8], 4
          %s238 = int_to_ptr.vmem [resolvable:$true] %s237
          %243 = dma.hbm_to_vmem [thread:$0]  %s3, 4096, %s238, [#allocation7], 64, 64, 4
        $region24: #{tpu_custom_call.1} parent=11 // pred_fallthru
          _
        // Predicated region
        $region25: #{tpu_custom_call.1} parent=11 // pred_check
          %p244 = pneg %p132
        $region26: #{tpu_custom_call.1} parent=11 // pred_check_branch
          %246 = sbr.rel (%p244) target = $region28
        $region27: #{tpu_custom_call.1} parent=11 // pred_region
          _
        $region28: #{tpu_custom_call.1} parent=11 // pred_fallthru
          _
        // Predicated region
        $region29: #{tpu_custom_call.1} parent=11 // pred_check
          %p247 = pneg %p153
        $region30: #{tpu_custom_call.1} parent=11 // pred_check_branch
          %249 = sbr.rel (%p247) target = $region32
        $region31: #{tpu_custom_call.1} parent=11 // pred_region
          _
        $region32: #{tpu_custom_call.1} parent=11 // pred_fallthru
          _
        // Predicated region
        $region33: #{tpu_custom_call.1} parent=11 // pred_check
          %p250 = pneg %p174
        $region34: #{tpu_custom_call.1} parent=11 // pred_check_branch
          %252 = sbr.rel (%p250) target = $region36
        $region35: #{tpu_custom_call.1} parent=11 // pred_region
          _
        $region36: #{tpu_custom_call.1} parent=11 // pred_fallthru
          _
      $region12: #{tpu_custom_call.1} parent=5 // pred_fallthru
        _
      %p253 = scmp.lt.s32.totalorder %s22, 2
      // Predicated region
      $region37: #{tpu_custom_call.1} parent=5 // pred_check
        %p254 = pneg %p253
      $region38: #{tpu_custom_call.1} parent=5 // pred_check_branch
        %256 = sbr.rel (%p254) target = $region40
      $region39: #{tpu_custom_call.1} parent=5 // pred_region
        // Predicated region
        $region41: #{tpu_custom_call.1} parent=39 // pred_check
          %p257 = pneg %p42
        $region42: #{tpu_custom_call.1} parent=39 // pred_check_branch
          %259 = sbr.rel (%p257) target = $region44
        $region43: #{tpu_custom_call.1} parent=39 // pred_region
          %s260 = sand.u32 %s32, 1
          %s261 = scalar_lea.sflag [#allocation4], %s260
          %s262 = sand.u32 %s32, 1
          %s263 = smul.addr %s262, 1024
          %s264 = scalar_lea.vmem [#allocation3], %s263
          %s265 = smul.u32 32, %s22
          %s267 = ssub.s32 16384, 16384
          %268 = vsyncadd %s261, %s267
          %s269 = smul.addr %s265, 8
          %s270 = smul.addr %s269, 64
          %s271 = scalar_lea.hbm %s0, %s270
          %s272 = sshll.u32 %s264, 4
          %s273 = int_to_ptr.vmem [resolvable:$true] %s272
          %278 = dma.hbm_to_vmem [thread:$0]  %s271, 16384, %s273, %s261, 512, 512, 32
        $region44: #{tpu_custom_call.1} parent=39 // pred_fallthru
          _
      $region40: #{tpu_custom_call.1} parent=5 // pred_fallthru
        _
      %p279 = scmp.le.s32.totalorder 1, %s22
      %p280 = scmp.lt.s32.totalorder %s22, 3
      %p281 = pnand %p279, %p280
      %p282 = pneg %p281
      // Predicated region
      $region45: #{tpu_custom_call.1} parent=5 // pred_check
        _
      $region46: #{tpu_custom_call.1} parent=5 // pred_check_branch
        %284 = sbr.rel (%p281) target = $region48
      $region47: #{tpu_custom_call.1} parent=5 // pred_region
        %s285 = ssub.s32 %s22, 1
        %s286 = sand.u32 %s35, 1
        %s287 = scalar_lea.sflag [#allocation4], %s286
        %s288 = sand.u32 %s35, 1
        %s289 = smul.addr %s288, 1024
        %s290 = scalar_lea.vmem [#allocation3], %s289
        // Predicated region
        $region49: #{tpu_custom_call.1} parent=47 // pred_check
          %p291 = pneg %p48
        $region50: #{tpu_custom_call.1} parent=47 // pred_check_branch
          %293 = sbr.rel (%p291) target = $region52
        $region51: #{tpu_custom_call.1} parent=47 // pred_region
          %294 = dma.done %s287, 16384
        $region52: #{tpu_custom_call.1} parent=47 // pred_fallthru
          _
        // Predicated region
        $region53: #{tpu_custom_call.1} parent=47 // pred_check
          %p295 = pneg %p69
        $region54: #{tpu_custom_call.1} parent=47 // pred_check_branch
          %297 = sbr.rel (%p295) target = $region56
        $region55: #{tpu_custom_call.1} parent=47 // pred_region
          %298 = dma.done [#allocation7], 32768
        $region56: #{tpu_custom_call.1} parent=47 // pred_fallthru
          _
        // Predicated region
        $region57: #{tpu_custom_call.1} parent=47 // pred_check
          %p299 = pneg %p111
        $region58: #{tpu_custom_call.1} parent=47 // pred_check_branch
          %301 = sbr.rel (%p299) target = $region60
        $region59: #{tpu_custom_call.1} parent=47 // pred_region
          %302 = dma.done [#allocation7], 4096
        $region60: #{tpu_custom_call.1} parent=47 // pred_fallthru
          _
        %s303 = sand.u32 %s35, 1
        %s304 = scalar_lea.sflag [#allocation4], %s303
        %s305 = sand.u32 %s35, 1
        %s306 = smul.addr %s305, 1024
        %s307 = scalar_lea.vmem [#allocation3], %s306
        %p308 = pneg %p48
        %p309 = pneg %p45
        %p310 = pneg %p69
        %p311 = pneg %p66
        %p312 = pneg %p90
        %p313 = pneg %p87
        %p314 = pneg %p111
        %p315 = pneg %p108
        %p316 = pneg %p132
        %p317 = pneg %p129
        %p318 = pneg %p153
        %p319 = pneg %p150
        %p320 = pneg %p174
        %p321 = pneg %p171
        %p322 = pneg %p200
        %p323 = pneg %p197
        %s324 = sand.u32 %s187, 1
        %s325 = scalar_lea.sflag [#allocation5], %s324
        %s326 = sand.u32 %s187, 1
        %s327 = smul.addr %s326, 2
        %s328 = scalar_lea.vmem [#allocation9], %s327
        %s329 = smul.u32 32, %s27
        %v331 = vld [vmem:[%s290] sm:$0xff]
        %v332 = vld [vmem:[%s290 + $0x8] sm:$0xff]
        %v333 = vld [vmem:[%s290 + $0x10] sm:$0xff]
        %v334 = vld [vmem:[%s290 + $0x18] sm:$0xff]
        %v335 = vld [vmem:[%s290 + $0x20] sm:$0xff]
        %v336 = vld [vmem:[%s290 + $0x28] sm:$0xff]
        %v337 = vld [vmem:[%s290 + $0x30] sm:$0xff]
        %v338 = vld [vmem:[%s290 + $0x38] sm:$0xff]
        %v339 = vld [vmem:[%s290 + $0x40] sm:$0xff]
        %v340 = vld [vmem:[%s290 + $0x48] sm:$0xff]
        %v341 = vld [vmem:[%s290 + $0x50] sm:$0xff]
        %v342 = vld [vmem:[%s290 + $0x58] sm:$0xff]
        %v343 = vld [vmem:[%s290 + $0x60] sm:$0xff]
        %v344 = vld [vmem:[%s290 + $0x68] sm:$0xff]
        %v345 = vld [vmem:[%s290 + $0x70] sm:$0xff]
        %v346 = vld [vmem:[%s290 + $0x78] sm:$0xff]
        %v347 = vld [vmem:[%s290 + $0x80] sm:$0xff]
        %v348 = vld [vmem:[%s290 + $0x88] sm:$0xff]
        %v349 = vld [vmem:[%s290 + $0x90] sm:$0xff]
        %v350 = vld [vmem:[%s290 + $0x98] sm:$0xff]
        %v351 = vld [vmem:[%s290 + $0xa0] sm:$0xff]
        %v352 = vld [vmem:[%s290 + $0xa8] sm:$0xff]
        %v353 = vld [vmem:[%s290 + $0xb0] sm:$0xff]
        %v354 = vld [vmem:[%s290 + $0xb8] sm:$0xff]
        %v355 = vld [vmem:[%s290 + $0xc0] sm:$0xff]
        %v356 = vld [vmem:[%s290 + $0xc8] sm:$0xff]
        %v357 = vld [vmem:[%s290 + $0xd0] sm:$0xff]
        %v358 = vld [vmem:[%s290 + $0xd8] sm:$0xff]
        %v359 = vld [vmem:[%s290 + $0xe0] sm:$0xff]
        %v360 = vld [vmem:[%s290 + $0xe8] sm:$0xff]
        %v361 = vld [vmem:[%s290 + $0xf0] sm:$0xff]
        %v362 = vld [vmem:[%s290 + $0xf8] sm:$0xff]
        %v363 = vld [vmem:[%s290 + $0x100] sm:$0xff]
        %v364 = vld [vmem:[%s290 + $0x108] sm:$0xff]
        %v365 = vld [vmem:[%s290 + $0x110] sm:$0xff]
        %v366 = vld [vmem:[%s290 + $0x118] sm:$0xff]
        %v367 = vld [vmem:[%s290 + $0x120] sm:$0xff]
        %v368 = vld [vmem:[%s290 + $0x128] sm:$0xff]
        %v369 = vld [vmem:[%s290 + $0x130] sm:$0xff]
        %v370 = vld [vmem:[%s290 + $0x138] sm:$0xff]
        %v371 = vld [vmem:[%s290 + $0x140] sm:$0xff]
        %v372 = vld [vmem:[%s290 + $0x148] sm:$0xff]
        %v373 = vld [vmem:[%s290 + $0x150] sm:$0xff]
        %v374 = vld [vmem:[%s290 + $0x158] sm:$0xff]
        %v375 = vld [vmem:[%s290 + $0x160] sm:$0xff]
        %v376 = vld [vmem:[%s290 + $0x168] sm:$0xff]
        %v377 = vld [vmem:[%s290 + $0x170] sm:$0xff]
        %v378 = vld [vmem:[%s290 + $0x178] sm:$0xff]
        %v379 = vld [vmem:[%s290 + $0x180] sm:$0xff]
        %v380 = vld [vmem:[%s290 + $0x188] sm:$0xff]
        %v381 = vld [vmem:[%s290 + $0x190] sm:$0xff]
        %v382 = vld [vmem:[%s290 + $0x198] sm:$0xff]
        %v383 = vld [vmem:[%s290 + $0x1a0] sm:$0xff]
        %v384 = vld [vmem:[%s290 + $0x1a8] sm:$0xff]
        %v385 = vld [vmem:[%s290 + $0x1b0] sm:$0xff]
        %v386 = vld [vmem:[%s290 + $0x1b8] sm:$0xff]
        %v387 = vld [vmem:[%s290 + $0x1c0] sm:$0xff]
        %v388 = vld [vmem:[%s290 + $0x1c8] sm:$0xff]
        %v389 = vld [vmem:[%s290 + $0x1d0] sm:$0xff]
        %v390 = vld [vmem:[%s290 + $0x1d8] sm:$0xff]
        %v391 = vld [vmem:[%s290 + $0x1e0] sm:$0xff]
        %v392 = vld [vmem:[%s290 + $0x1e8] sm:$0xff]
        %v393 = vld [vmem:[%s290 + $0x1f0] sm:$0xff]
        %v394 = vld [vmem:[%s290 + $0x1f8] sm:$0xff]
        %v395 = vld [vmem:[%s290 + $0x200] sm:$0xff]
        %v396 = vld [vmem:[%s290 + $0x208] sm:$0xff]
        %v397 = vld [vmem:[%s290 + $0x210] sm:$0xff]
        %v398 = vld [vmem:[%s290 + $0x218] sm:$0xff]
        %v399 = vld [vmem:[%s290 + $0x220] sm:$0xff]
        %v400 = vld [vmem:[%s290 + $0x228] sm:$0xff]
        %v401 = vld [vmem:[%s290 + $0x230] sm:$0xff]
        %v402 = vld [vmem:[%s290 + $0x238] sm:$0xff]
        %v403 = vld [vmem:[%s290 + $0x240] sm:$0xff]
        %v404 = vld [vmem:[%s290 + $0x248] sm:$0xff]
        %v405 = vld [vmem:[%s290 + $0x250] sm:$0xff]
        %v406 = vld [vmem:[%s290 + $0x258] sm:$0xff]
        %v407 = vld [vmem:[%s290 + $0x260] sm:$0xff]
        %v408 = vld [vmem:[%s290 + $0x268] sm:$0xff]
        %v409 = vld [vmem:[%s290 + $0x270] sm:$0xff]
        %v410 = vld [vmem:[%s290 + $0x278] sm:$0xff]
        %v411 = vld [vmem:[%s290 + $0x280] sm:$0xff]
        %v412 = vld [vmem:[%s290 + $0x288] sm:$0xff]
        %v413 = vld [vmem:[%s290 + $0x290] sm:$0xff]
        %v414 = vld [vmem:[%s290 + $0x298] sm:$0xff]
        %v415 = vld [vmem:[%s290 + $0x2a0] sm:$0xff]
        %v416 = vld [vmem:[%s290 + $0x2a8] sm:$0xff]
        %v417 = vld [vmem:[%s290 + $0x2b0] sm:$0xff]
        %v418 = vld [vmem:[%s290 + $0x2b8] sm:$0xff]
        %v419 = vld [vmem:[%s290 + $0x2c0] sm:$0xff]
        %v420 = vld [vmem:[%s290 + $0x2c8] sm:$0xff]
        %v421 = vld [vmem:[%s290 + $0x2d0] sm:$0xff]
        %v422 = vld [vmem:[%s290 + $0x2d8] sm:$0xff]
        %v423 = vld [vmem:[%s290 + $0x2e0] sm:$0xff]
        %v424 = vld [vmem:[%s290 + $0x2e8] sm:$0xff]
        %v425 = vld [vmem:[%s290 + $0x2f0] sm:$0xff]
        %v426 = vld [vmem:[%s290 + $0x2f8] sm:$0xff]
        %v427 = vld [vmem:[%s290 + $0x300] sm:$0xff]
        %v428 = vld [vmem:[%s290 + $0x308] sm:$0xff]
        %v429 = vld [vmem:[%s290 + $0x310] sm:$0xff]
        %v430 = vld [vmem:[%s290 + $0x318] sm:$0xff]
        %v431 = vld [vmem:[%s290 + $0x320] sm:$0xff]
        %v432 = vld [vmem:[%s290 + $0x328] sm:$0xff]
        %v433 = vld [vmem:[%s290 + $0x330] sm:$0xff]
        %v434 = vld [vmem:[%s290 + $0x338] sm:$0xff]
        %v435 = vld [vmem:[%s290 + $0x340] sm:$0xff]
        %v436 = vld [vmem:[%s290 + $0x348] sm:$0xff]
        %v437 = vld [vmem:[%s290 + $0x350] sm:$0xff]
        %v438 = vld [vmem:[%s290 + $0x358] sm:$0xff]
        %v439 = vld [vmem:[%s290 + $0x360] sm:$0xff]
        %v440 = vld [vmem:[%s290 + $0x368] sm:$0xff]
        %v441 = vld [vmem:[%s290 + $0x370] sm:$0xff]
        %v442 = vld [vmem:[%s290 + $0x378] sm:$0xff]
        %v443 = vld [vmem:[%s290 + $0x380] sm:$0xff]
        %v444 = vld [vmem:[%s290 + $0x388] sm:$0xff]
        %v445 = vld [vmem:[%s290 + $0x390] sm:$0xff]
        %v446 = vld [vmem:[%s290 + $0x398] sm:$0xff]
        %v447 = vld [vmem:[%s290 + $0x3a0] sm:$0xff]
        %v448 = vld [vmem:[%s290 + $0x3a8] sm:$0xff]
        %v449 = vld [vmem:[%s290 + $0x3b0] sm:$0xff]
        %v450 = vld [vmem:[%s290 + $0x3b8] sm:$0xff]
        %v451 = vld [vmem:[%s290 + $0x3c0] sm:$0xff]
        %v452 = vld [vmem:[%s290 + $0x3c8] sm:$0xff]
        %v453 = vld [vmem:[%s290 + $0x3d0] sm:$0xff]
        %v454 = vld [vmem:[%s290 + $0x3d8] sm:$0xff]
        %v455 = vld [vmem:[%s290 + $0x3e0] sm:$0xff]
        %v456 = vld [vmem:[%s290 + $0x3e8] sm:$0xff]
        %v457 = vld [vmem:[%s290 + $0x3f0] sm:$0xff]
        %v458 = vld [vmem:[%s290 + $0x3f8] sm:$0xff]
        %v459 = vld [vmem:[#allocation6] sm:$0xff]
        %v460 = vld [vmem:[#allocation6 + $0x8] sm:$0xff]
        %v461 = vld [vmem:[#allocation6 + $0x10] sm:$0xff]
        %v462 = vld [vmem:[#allocation6 + $0x18] sm:$0xff]
        %v463 = vld [vmem:[#allocation6 + $0x20] sm:$0xff]
        %v464 = vld [vmem:[#allocation6 + $0x28] sm:$0xff]
        %v465 = vld [vmem:[#allocation6 + $0x30] sm:$0xff]
        %v466 = vld [vmem:[#allocation6 + $0x38] sm:$0xff]
        %v467 = vld [vmem:[#allocation6 + $0x40] sm:$0xff]
        %v468 = vld [vmem:[#allocation6 + $0x48] sm:$0xff]
        %v469 = vld [vmem:[#allocation6 + $0x50] sm:$0xff]
        %v470 = vld [vmem:[#allocation6 + $0x58] sm:$0xff]
        %v471 = vld [vmem:[#allocation6 + $0x60] sm:$0xff]
        %v472 = vld [vmem:[#allocation6 + $0x68] sm:$0xff]
        %v473 = vld [vmem:[#allocation6 + $0x70] sm:$0xff]
        %v474 = vld [vmem:[#allocation6 + $0x78] sm:$0xff]
        %v475 = vld [vmem:[#allocation6 + $0x80] sm:$0xff]
        %v476 = vld [vmem:[#allocation6 + $0x88] sm:$0xff]
        %v477 = vld [vmem:[#allocation6 + $0x90] sm:$0xff]
        %v478 = vld [vmem:[#allocation6 + $0x98] sm:$0xff]
        %v479 = vld [vmem:[#allocation6 + $0xa0] sm:$0xff]
        %v480 = vld [vmem:[#allocation6 + $0xa8] sm:$0xff]
        %v481 = vld [vmem:[#allocation6 + $0xb0] sm:$0xff]
        %v482 = vld [vmem:[#allocation6 + $0xb8] sm:$0xff]
        %v483 = vld [vmem:[#allocation6 + $0xc0] sm:$0xff]
        %v484 = vld [vmem:[#allocation6 + $0xc8] sm:$0xff]
        %v485 = vld [vmem:[#allocation6 + $0xd0] sm:$0xff]
        %v486 = vld [vmem:[#allocation6 + $0xd8] sm:$0xff]
        %v487 = vld [vmem:[#allocation6 + $0xe0] sm:$0xff]
        %v488 = vld [vmem:[#allocation6 + $0xe8] sm:$0xff]
        %v489 = vld [vmem:[#allocation6 + $0xf0] sm:$0xff]
        %v490 = vld [vmem:[#allocation6 + $0xf8] sm:$0xff]
        %v491 = vld [vmem:[#allocation6 + $0x100] sm:$0xff]
        %v492 = vld [vmem:[#allocation6 + $0x108] sm:$0xff]
        %v493 = vld [vmem:[#allocation6 + $0x110] sm:$0xff]
        %v494 = vld [vmem:[#allocation6 + $0x118] sm:$0xff]
        %v495 = vld [vmem:[#allocation6 + $0x120] sm:$0xff]
        %v496 = vld [vmem:[#allocation6 + $0x128] sm:$0xff]
        %v497 = vld [vmem:[#allocation6 + $0x130] sm:$0xff]
        %v498 = vld [vmem:[#allocation6 + $0x138] sm:$0xff]
        %v499 = vld [vmem:[#allocation6 + $0x140] sm:$0xff]
        %v500 = vld [vmem:[#allocation6 + $0x148] sm:$0xff]
        %v501 = vld [vmem:[#allocation6 + $0x150] sm:$0xff]
        %v502 = vld [vmem:[#allocation6 + $0x158] sm:$0xff]
        %v503 = vld [vmem:[#allocation6 + $0x160] sm:$0xff]
        %v504 = vld [vmem:[#allocation6 + $0x168] sm:$0xff]
        %v505 = vld [vmem:[#allocation6 + $0x170] sm:$0xff]
        %v506 = vld [vmem:[#allocation6 + $0x178] sm:$0xff]
        %v507 = vld [vmem:[#allocation6 + $0x180] sm:$0xff]
        %v508 = vld [vmem:[#allocation6 + $0x188] sm:$0xff]
        %v509 = vld [vmem:[#allocation6 + $0x190] sm:$0xff]
        %v510 = vld [vmem:[#allocation6 + $0x198] sm:$0xff]
        %v511 = vld [vmem:[#allocation6 + $0x1a0] sm:$0xff]
        %v512 = vld [vmem:[#allocation6 + $0x1a8] sm:$0xff]
        %v513 = vld [vmem:[#allocation6 + $0x1b0] sm:$0xff]
        %v514 = vld [vmem:[#allocation6 + $0x1b8] sm:$0xff]
        %v515 = vld [vmem:[#allocation6 + $0x1c0] sm:$0xff]
        %v516 = vld [vmem:[#allocation6 + $0x1c8] sm:$0xff]
        %v517 = vld [vmem:[#allocation6 + $0x1d0] sm:$0xff]
        %v518 = vld [vmem:[#allocation6 + $0x1d8] sm:$0xff]
        %v519 = vld [vmem:[#allocation6 + $0x1e0] sm:$0xff]
        %v520 = vld [vmem:[#allocation6 + $0x1e8] sm:$0xff]
        %v521 = vld [vmem:[#allocation6 + $0x1f0] sm:$0xff]
        %v522 = vld [vmem:[#allocation6 + $0x1f8] sm:$0xff]
        %v523 = vld [vmem:[#allocation6 + $0x200] sm:$0xff]
        %v524 = vld [vmem:[#allocation6 + $0x208] sm:$0xff]
        %v525 = vld [vmem:[#allocation6 + $0x210] sm:$0xff]
        %v526 = vld [vmem:[#allocation6 + $0x218] sm:$0xff]
        %v527 = vld [vmem:[#allocation6 + $0x220] sm:$0xff]
        %v528 = vld [vmem:[#allocation6 + $0x228] sm:$0xff]
        %v529 = vld [vmem:[#allocation6 + $0x230] sm:$0xff]
        %v530 = vld [vmem:[#allocation6 + $0x238] sm:$0xff]
        %v531 = vld [vmem:[#allocation6 + $0x240] sm:$0xff]
        %v532 = vld [vmem:[#allocation6 + $0x248] sm:$0xff]
        %v533 = vld [vmem:[#allocation6 + $0x250] sm:$0xff]
        %v534 = vld [vmem:[#allocation6 + $0x258] sm:$0xff]
        %v535 = vld [vmem:[#allocation6 + $0x260] sm:$0xff]
        %v536 = vld [vmem:[#allocation6 + $0x268] sm:$0xff]
        %v537 = vld [vmem:[#allocation6 + $0x270] sm:$0xff]
        %v538 = vld [vmem:[#allocation6 + $0x278] sm:$0xff]
        %v539 = vld [vmem:[#allocation6 + $0x280] sm:$0xff]
        %v540 = vld [vmem:[#allocation6 + $0x288] sm:$0xff]
        %v541 = vld [vmem:[#allocation6 + $0x290] sm:$0xff]
        %v542 = vld [vmem:[#allocation6 + $0x298] sm:$0xff]
        %v543 = vld [vmem:[#allocation6 + $0x2a0] sm:$0xff]
        %v544 = vld [vmem:[#allocation6 + $0x2a8] sm:$0xff]
        %v545 = vld [vmem:[#allocation6 + $0x2b0] sm:$0xff]
        %v546 = vld [vmem:[#allocation6 + $0x2b8] sm:$0xff]
        %v547 = vld [vmem:[#allocation6 + $0x2c0] sm:$0xff]
        %v548 = vld [vmem:[#allocation6 + $0x2c8] sm:$0xff]
        %v549 = vld [vmem:[#allocation6 + $0x2d0] sm:$0xff]
        %v550 = vld [vmem:[#allocation6 + $0x2d8] sm:$0xff]
        %v551 = vld [vmem:[#allocation6 + $0x2e0] sm:$0xff]
        %v552 = vld [vmem:[#allocation6 + $0x2e8] sm:$0xff]
        %v553 = vld [vmem:[#allocation6 + $0x2f0] sm:$0xff]
        %v554 = vld [vmem:[#allocation6 + $0x2f8] sm:$0xff]
        %v555 = vld [vmem:[#allocation6 + $0x300] sm:$0xff]
        %v556 = vld [vmem:[#allocation6 + $0x308] sm:$0xff]
        %v557 = vld [vmem:[#allocation6 + $0x310] sm:$0xff]
        %v558 = vld [vmem:[#allocation6 + $0x318] sm:$0xff]
        %v559 = vld [vmem:[#allocation6 + $0x320] sm:$0xff]
        %v560 = vld [vmem:[#allocation6 + $0x328] sm:$0xff]
        %v561 = vld [vmem:[#allocation6 + $0x330] sm:$0xff]
        %v562 = vld [vmem:[#allocation6 + $0x338] sm:$0xff]
        %v563 = vld [vmem:[#allocation6 + $0x340] sm:$0xff]
        %v564 = vld [vmem:[#allocation6 + $0x348] sm:$0xff]
        %v565 = vld [vmem:[#allocation6 + $0x350] sm:$0xff]
        %v566 = vld [vmem:[#allocation6 + $0x358] sm:$0xff]
        %v567 = vld [vmem:[#allocation6 + $0x360] sm:$0xff]
        %v568 = vld [vmem:[#allocation6 + $0x368] sm:$0xff]
        %v569 = vld [vmem:[#allocation6 + $0x370] sm:$0xff]
        %v570 = vld [vmem:[#allocation6 + $0x378] sm:$0xff]
        %v571 = vld [vmem:[#allocation6 + $0x380] sm:$0xff]
        %v572 = vld [vmem:[#allocation6 + $0x388] sm:$0xff]
        %v573 = vld [vmem:[#allocation6 + $0x390] sm:$0xff]
        %v574 = vld [vmem:[#allocation6 + $0x398] sm:$0xff]
        %v575 = vld [vmem:[#allocation6 + $0x3a0] sm:$0xff]
        %v576 = vld [vmem:[#allocation6 + $0x3a8] sm:$0xff]
        %v577 = vld [vmem:[#allocation6 + $0x3b0] sm:$0xff]
        %v578 = vld [vmem:[#allocation6 + $0x3b8] sm:$0xff]
        %v579 = vld [vmem:[#allocation6 + $0x3c0] sm:$0xff]
        %v580 = vld [vmem:[#allocation6 + $0x3c8] sm:$0xff]
        %v581 = vld [vmem:[#allocation6 + $0x3d0] sm:$0xff]
        %v582 = vld [vmem:[#allocation6 + $0x3d8] sm:$0xff]
        %v583 = vld [vmem:[#allocation6 + $0x3e0] sm:$0xff]
        %v584 = vld [vmem:[#allocation6 + $0x3e8] sm:$0xff]
        %v585 = vld [vmem:[#allocation6 + $0x3f0] sm:$0xff]
        %v586 = vld [vmem:[#allocation6 + $0x3f8] sm:$0xff]
        %v587 = vld [vmem:[#allocation6 + $0x400] sm:$0xff]
        %v588 = vld [vmem:[#allocation6 + $0x408] sm:$0xff]
        %v589 = vld [vmem:[#allocation6 + $0x410] sm:$0xff]
        %v590 = vld [vmem:[#allocation6 + $0x418] sm:$0xff]
        %v591 = vld [vmem:[#allocation6 + $0x420] sm:$0xff]
        %v592 = vld [vmem:[#allocation6 + $0x428] sm:$0xff]
        %v593 = vld [vmem:[#allocation6 + $0x430] sm:$0xff]
        %v594 = vld [vmem:[#allocation6 + $0x438] sm:$0xff]
        %v595 = vld [vmem:[#allocation6 + $0x440] sm:$0xff]
        %v596 = vld [vmem:[#allocation6 + $0x448] sm:$0xff]
        %v597 = vld [vmem:[#allocation6 + $0x450] sm:$0xff]
        %v598 = vld [vmem:[#allocation6 + $0x458] sm:$0xff]
        %v599 = vld [vmem:[#allocation6 + $0x460] sm:$0xff]
        %v600 = vld [vmem:[#allocation6 + $0x468] sm:$0xff]
        %v601 = vld [vmem:[#allocation6 + $0x470] sm:$0xff]
        %v602 = vld [vmem:[#allocation6 + $0x478] sm:$0xff]
        %v603 = vld [vmem:[#allocation6 + $0x480] sm:$0xff]
        %v604 = vld [vmem:[#allocation6 + $0x488] sm:$0xff]
        %v605 = vld [vmem:[#allocation6 + $0x490] sm:$0xff]
        %v606 = vld [vmem:[#allocation6 + $0x498] sm:$0xff]
        %v607 = vld [vmem:[#allocation6 + $0x4a0] sm:$0xff]
        %v608 = vld [vmem:[#allocation6 + $0x4a8] sm:$0xff]
        %v609 = vld [vmem:[#allocation6 + $0x4b0] sm:$0xff]
        %v610 = vld [vmem:[#allocation6 + $0x4b8] sm:$0xff]
        %v611 = vld [vmem:[#allocation6 + $0x4c0] sm:$0xff]
        %v612 = vld [vmem:[#allocation6 + $0x4c8] sm:$0xff]
        %v613 = vld [vmem:[#allocation6 + $0x4d0] sm:$0xff]
        %v614 = vld [vmem:[#allocation6 + $0x4d8] sm:$0xff]
        %v615 = vld [vmem:[#allocation6 + $0x4e0] sm:$0xff]
        %v616 = vld [vmem:[#allocation6 + $0x4e8] sm:$0xff]
        %v617 = vld [vmem:[#allocation6 + $0x4f0] sm:$0xff]
        %v618 = vld [vmem:[#allocation6 + $0x4f8] sm:$0xff]
        %v619 = vld [vmem:[#allocation6 + $0x500] sm:$0xff]
        %v620 = vld [vmem:[#allocation6 + $0x508] sm:$0xff]
        %v621 = vld [vmem:[#allocation6 + $0x510] sm:$0xff]
        %v622 = vld [vmem:[#allocation6 + $0x518] sm:$0xff]
        %v623 = vld [vmem:[#allocation6 + $0x520] sm:$0xff]
        %v624 = vld [vmem:[#allocation6 + $0x528] sm:$0xff]
        %v625 = vld [vmem:[#allocation6 + $0x530] sm:$0xff]
        %v626 = vld [vmem:[#allocation6 + $0x538] sm:$0xff]
        %v627 = vld [vmem:[#allocation6 + $0x540] sm:$0xff]
        %v628 = vld [vmem:[#allocation6 + $0x548] sm:$0xff]
        %v629 = vld [vmem:[#allocation6 + $0x550] sm:$0xff]
        %v630 = vld [vmem:[#allocation6 + $0x558] sm:$0xff]
        %v631 = vld [vmem:[#allocation6 + $0x560] sm:$0xff]
        %v632 = vld [vmem:[#allocation6 + $0x568] sm:$0xff]
        %v633 = vld [vmem:[#allocation6 + $0x570] sm:$0xff]
        %v634 = vld [vmem:[#allocation6 + $0x578] sm:$0xff]
        %v635 = vld [vmem:[#allocation6 + $0x580] sm:$0xff]
        %v636 = vld [vmem:[#allocation6 + $0x588] sm:$0xff]
        %v637 = vld [vmem:[#allocation6 + $0x590] sm:$0xff]
        %v638 = vld [vmem:[#allocation6 + $0x598] sm:$0xff]
        %v639 = vld [vmem:[#allocation6 + $0x5a0] sm:$0xff]
        %v640 = vld [vmem:[#allocation6 + $0x5a8] sm:$0xff]
        %v641 = vld [vmem:[#allocation6 + $0x5b0] sm:$0xff]
        %v642 = vld [vmem:[#allocation6 + $0x5b8] sm:$0xff]
        %v643 = vld [vmem:[#allocation6 + $0x5c0] sm:$0xff]
        %v644 = vld [vmem:[#allocation6 + $0x5c8] sm:$0xff]
        %v645 = vld [vmem:[#allocation6 + $0x5d0] sm:$0xff]
        %v646 = vld [vmem:[#allocation6 + $0x5d8] sm:$0xff]
        %v647 = vld [vmem:[#allocation6 + $0x5e0] sm:$0xff]
        %v648 = vld [vmem:[#allocation6 + $0x5e8] sm:$0xff]
        %v649 = vld [vmem:[#allocation6 + $0x5f0] sm:$0xff]
        %v650 = vld [vmem:[#allocation6 + $0x5f8] sm:$0xff]
        %v651 = vld [vmem:[#allocation6 + $0x600] sm:$0xff]
        %v652 = vld [vmem:[#allocation6 + $0x608] sm:$0xff]
        %v653 = vld [vmem:[#allocation6 + $0x610] sm:$0xff]
        %v654 = vld [vmem:[#allocation6 + $0x618] sm:$0xff]
        %v655 = vld [vmem:[#allocation6 + $0x620] sm:$0xff]
        %v656 = vld [vmem:[#allocation6 + $0x628] sm:$0xff]
        %v657 = vld [vmem:[#allocation6 + $0x630] sm:$0xff]
        %v658 = vld [vmem:[#allocation6 + $0x638] sm:$0xff]
        %v659 = vld [vmem:[#allocation6 + $0x640] sm:$0xff]
        %v660 = vld [vmem:[#allocation6 + $0x648] sm:$0xff]
        %v661 = vld [vmem:[#allocation6 + $0x650] sm:$0xff]
        %v662 = vld [vmem:[#allocation6 + $0x658] sm:$0xff]
        %v663 = vld [vmem:[#allocation6 + $0x660] sm:$0xff]
        %v664 = vld [vmem:[#allocation6 + $0x668] sm:$0xff]
        %v665 = vld [vmem:[#allocation6 + $0x670] sm:$0xff]
        %v666 = vld [vmem:[#allocation6 + $0x678] sm:$0xff]
        %v667 = vld [vmem:[#allocation6 + $0x680] sm:$0xff]
        %v668 = vld [vmem:[#allocation6 + $0x688] sm:$0xff]
        %v669 = vld [vmem:[#allocation6 + $0x690] sm:$0xff]
        %v670 = vld [vmem:[#allocation6 + $0x698] sm:$0xff]
        %v671 = vld [vmem:[#allocation6 + $0x6a0] sm:$0xff]
        %v672 = vld [vmem:[#allocation6 + $0x6a8] sm:$0xff]
        %v673 = vld [vmem:[#allocation6 + $0x6b0] sm:$0xff]
        %v674 = vld [vmem:[#allocation6 + $0x6b8] sm:$0xff]
        %v675 = vld [vmem:[#allocation6 + $0x6c0] sm:$0xff]
        %v676 = vld [vmem:[#allocation6 + $0x6c8] sm:$0xff]
        %v677 = vld [vmem:[#allocation6 + $0x6d0] sm:$0xff]
        %v678 = vld [vmem:[#allocation6 + $0x6d8] sm:$0xff]
        %v679 = vld [vmem:[#allocation6 + $0x6e0] sm:$0xff]
        %v680 = vld [vmem:[#allocation6 + $0x6e8] sm:$0xff]
        %v681 = vld [vmem:[#allocation6 + $0x6f0] sm:$0xff]
        %v682 = vld [vmem:[#allocation6 + $0x6f8] sm:$0xff]
        %v683 = vld [vmem:[#allocation6 + $0x700] sm:$0xff]
        %v684 = vld [vmem:[#allocation6 + $0x708] sm:$0xff]
        %v685 = vld [vmem:[#allocation6 + $0x710] sm:$0xff]
        %v686 = vld [vmem:[#allocation6 + $0x718] sm:$0xff]
        %v687 = vld [vmem:[#allocation6 + $0x720] sm:$0xff]
        %v688 = vld [vmem:[#allocation6 + $0x728] sm:$0xff]
        %v689 = vld [vmem:[#allocation6 + $0x730] sm:$0xff]
        %v690 = vld [vmem:[#allocation6 + $0x738] sm:$0xff]
        %v691 = vld [vmem:[#allocation6 + $0x740] sm:$0xff]
        %v692 = vld [vmem:[#allocation6 + $0x748] sm:$0xff]
        %v693 = vld [vmem:[#allocation6 + $0x750] sm:$0xff]
        %v694 = vld [vmem:[#allocation6 + $0x758] sm:$0xff]
        %v695 = vld [vmem:[#allocation6 + $0x760] sm:$0xff]
        %v696 = vld [vmem:[#allocation6 + $0x768] sm:$0xff]
        %v697 = vld [vmem:[#allocation6 + $0x770] sm:$0xff]
        %v698 = vld [vmem:[#allocation6 + $0x778] sm:$0xff]
        %v699 = vld [vmem:[#allocation6 + $0x780] sm:$0xff]
        %v700 = vld [vmem:[#allocation6 + $0x788] sm:$0xff]
        %v701 = vld [vmem:[#allocation6 + $0x790] sm:$0xff]
        %v702 = vld [vmem:[#allocation6 + $0x798] sm:$0xff]
        %v703 = vld [vmem:[#allocation6 + $0x7a0] sm:$0xff]
        %v704 = vld [vmem:[#allocation6 + $0x7a8] sm:$0xff]
        %v705 = vld [vmem:[#allocation6 + $0x7b0] sm:$0xff]
        %v706 = vld [vmem:[#allocation6 + $0x7b8] sm:$0xff]
        %v707 = vld [vmem:[#allocation6 + $0x7c0] sm:$0xff]
        %v708 = vld [vmem:[#allocation6 + $0x7c8] sm:$0xff]
        %v709 = vld [vmem:[#allocation6 + $0x7d0] sm:$0xff]
        %v710 = vld [vmem:[#allocation6 + $0x7d8] sm:$0xff]
        %v711 = vld [vmem:[#allocation6 + $0x7e0] sm:$0xff]
        %v712 = vld [vmem:[#allocation6 + $0x7e8] sm:$0xff]
        %v713 = vld [vmem:[#allocation6 + $0x7f0] sm:$0xff]
        %v714 = vld [vmem:[#allocation6 + $0x7f8] sm:$0xff]
        %v715 = vld [vmem:[%s2] sm:$0xf]
        %v717 = vlaneseq
        %v718 = vshrl.u32 %v717, 7
        %v719 = vsub.s32 0, %v718
        %v720 = vrot.slane %v715, %v719
        %v721 = vlaneseq
        %v722 = vshrl.u32 %v721, 7
        %v723 = vsub.s32 1, %v722
        %v724 = vrot.slane %v715, %v723
        %v725 = vlaneseq
        %v726 = vshrl.u32 %v725, 7
        %v727 = vsub.s32 2, %v726
        %v728 = vrot.slane %v715, %v727
        %v729 = vlaneseq
        %v730 = vshrl.u32 %v729, 7
        %v731 = vsub.s32 3, %v730
        %v732 = vrot.slane %v715, %v731
        %v865 = vunpack.c.l.b16 %v331
        %v866 = vunpack.c.h.b16 %v331
        %v867 = vunpack.c.l.b16 %v332
        %v868 = vunpack.c.h.b16 %v332
        %v869 = vunpack.c.l.b16 %v333
        %v870 = vunpack.c.h.b16 %v333
        %v871 = vunpack.c.l.b16 %v334
        %v872 = vunpack.c.h.b16 %v334
        %v873 = vunpack.c.l.b16 %v335
        %v874 = vunpack.c.h.b16 %v335
        %v875 = vunpack.c.l.b16 %v336
        %v876 = vunpack.c.h.b16 %v336
        %v877 = vunpack.c.l.b16 %v337
        %v878 = vunpack.c.h.b16 %v337
        %v879 = vunpack.c.l.b16 %v338
        %v880 = vunpack.c.h.b16 %v338
        %v881 = vunpack.c.l.b16 %v339
        %v882 = vunpack.c.h.b16 %v339
        %v883 = vunpack.c.l.b16 %v340
        %v884 = vunpack.c.h.b16 %v340
        %v885 = vunpack.c.l.b16 %v341
        %v886 = vunpack.c.h.b16 %v341
        %v887 = vunpack.c.l.b16 %v342
        %v888 = vunpack.c.h.b16 %v342
        %v889 = vunpack.c.l.b16 %v343
        %v890 = vunpack.c.h.b16 %v343
        %v891 = vunpack.c.l.b16 %v344
        %v892 = vunpack.c.h.b16 %v344
        %v893 = vunpack.c.l.b16 %v345
        %v894 = vunpack.c.h.b16 %v345
        %v895 = vunpack.c.l.b16 %v346
        %v896 = vunpack.c.h.b16 %v346
        %v897 = vunpack.c.l.b16 %v347
        %v898 = vunpack.c.h.b16 %v347
        %v899 = vunpack.c.l.b16 %v348
        %v900 = vunpack.c.h.b16 %v348
        %v901 = vunpack.c.l.b16 %v349
        %v902 = vunpack.c.h.b16 %v349
        %v903 = vunpack.c.l.b16 %v350
        %v904 = vunpack.c.h.b16 %v350
        %v905 = vunpack.c.l.b16 %v351
        %v906 = vunpack.c.h.b16 %v351
        %v907 = vunpack.c.l.b16 %v352
        %v908 = vunpack.c.h.b16 %v352
        %v909 = vunpack.c.l.b16 %v353
        %v910 = vunpack.c.h.b16 %v353
        %v911 = vunpack.c.l.b16 %v354
        %v912 = vunpack.c.h.b16 %v354
        %v913 = vunpack.c.l.b16 %v355
        %v914 = vunpack.c.h.b16 %v355
        %v915 = vunpack.c.l.b16 %v356
        %v916 = vunpack.c.h.b16 %v356
        %v917 = vunpack.c.l.b16 %v357
        %v918 = vunpack.c.h.b16 %v357
        %v919 = vunpack.c.l.b16 %v358
        %v920 = vunpack.c.h.b16 %v358
        %v921 = vunpack.c.l.b16 %v359
        %v922 = vunpack.c.h.b16 %v359
        %v923 = vunpack.c.l.b16 %v360
        %v924 = vunpack.c.h.b16 %v360
        %v925 = vunpack.c.l.b16 %v361
        %v926 = vunpack.c.h.b16 %v361
        %v927 = vunpack.c.l.b16 %v362
        %v928 = vunpack.c.h.b16 %v362
        %v929 = vunpack.c.l.b16 %v363
        %v930 = vunpack.c.h.b16 %v363
        %v931 = vunpack.c.l.b16 %v364
        %v932 = vunpack.c.h.b16 %v364
        %v933 = vunpack.c.l.b16 %v365
        %v934 = vunpack.c.h.b16 %v365
        %v935 = vunpack.c.l.b16 %v366
        %v936 = vunpack.c.h.b16 %v366
        %v937 = vunpack.c.l.b16 %v367
        %v938 = vunpack.c.h.b16 %v367
        %v939 = vunpack.c.l.b16 %v368
        %v940 = vunpack.c.h.b16 %v368
        %v941 = vunpack.c.l.b16 %v369
        %v942 = vunpack.c.h.b16 %v369
        %v943 = vunpack.c.l.b16 %v370
        %v944 = vunpack.c.h.b16 %v370
        %v945 = vunpack.c.l.b16 %v371
        %v946 = vunpack.c.h.b16 %v371
        %v947 = vunpack.c.l.b16 %v372
        %v948 = vunpack.c.h.b16 %v372
        %v949 = vunpack.c.l.b16 %v373
        %v950 = vunpack.c.h.b16 %v373
        %v951 = vunpack.c.l.b16 %v374
        %v952 = vunpack.c.h.b16 %v374
        %v953 = vunpack.c.l.b16 %v375
        %v954 = vunpack.c.h.b16 %v375
        %v955 = vunpack.c.l.b16 %v376
        %v956 = vunpack.c.h.b16 %v376
        %v957 = vunpack.c.l.b16 %v377
        %v958 = vunpack.c.h.b16 %v377
        %v959 = vunpack.c.l.b16 %v378
        %v960 = vunpack.c.h.b16 %v378
        %v961 = vunpack.c.l.b16 %v379
        %v962 = vunpack.c.h.b16 %v379
        %v963 = vunpack.c.l.b16 %v380
        %v964 = vunpack.c.h.b16 %v380
        %v965 = vunpack.c.l.b16 %v381
        %v966 = vunpack.c.h.b16 %v381
        %v967 = vunpack.c.l.b16 %v382
        %v968 = vunpack.c.h.b16 %v382
        %v969 = vunpack.c.l.b16 %v383
        %v970 = vunpack.c.h.b16 %v383
        %v971 = vunpack.c.l.b16 %v384
        %v972 = vunpack.c.h.b16 %v384
        %v973 = vunpack.c.l.b16 %v385
        %v974 = vunpack.c.h.b16 %v385
        %v975 = vunpack.c.l.b16 %v386
        %v976 = vunpack.c.h.b16 %v386
        %v977 = vunpack.c.l.b16 %v387
        %v978 = vunpack.c.h.b16 %v387
        %v979 = vunpack.c.l.b16 %v388
        %v980 = vunpack.c.h.b16 %v388
        %v981 = vunpack.c.l.b16 %v389
        %v982 = vunpack.c.h.b16 %v389
        %v983 = vunpack.c.l.b16 %v390
        %v984 = vunpack.c.h.b16 %v390
        %v985 = vunpack.c.l.b16 %v391
        %v986 = vunpack.c.h.b16 %v391
        %v987 = vunpack.c.l.b16 %v392
        %v988 = vunpack.c.h.b16 %v392
        %v989 = vunpack.c.l.b16 %v393
        %v990 = vunpack.c.h.b16 %v393
        %v991 = vunpack.c.l.b16 %v394
        %v992 = vunpack.c.h.b16 %v394
        %v993 = vunpack.c.l.b16 %v395
        %v994 = vunpack.c.h.b16 %v395
        %v995 = vunpack.c.l.b16 %v396
        %v996 = vunpack.c.h.b16 %v396
        %v997 = vunpack.c.l.b16 %v397
        %v998 = vunpack.c.h.b16 %v397
        %v999 = vunpack.c.l.b16 %v398
        %v1000 = vunpack.c.h.b16 %v398
        %v1001 = vunpack.c.l.b16 %v399
        %v1002 = vunpack.c.h.b16 %v399
        %v1003 = vunpack.c.l.b16 %v400
        %v1004 = vunpack.c.h.b16 %v400
        %v1005 = vunpack.c.l.b16 %v401
        %v1006 = vunpack.c.h.b16 %v401
        %v1007 = vunpack.c.l.b16 %v402
        %v1008 = vunpack.c.h.b16 %v402
        %v1009 = vunpack.c.l.b16 %v403
        %v1010 = vunpack.c.h.b16 %v403
        %v1011 = vunpack.c.l.b16 %v404
        %v1012 = vunpack.c.h.b16 %v404
        %v1013 = vunpack.c.l.b16 %v405
        %v1014 = vunpack.c.h.b16 %v405
        %v1015 = vunpack.c.l.b16 %v406
        %v1016 = vunpack.c.h.b16 %v406
        %v1017 = vunpack.c.l.b16 %v407
        %v1018 = vunpack.c.h.b16 %v407
        %v1019 = vunpack.c.l.b16 %v408
        %v1020 = vunpack.c.h.b16 %v408
        %v1021 = vunpack.c.l.b16 %v409
        %v1022 = vunpack.c.h.b16 %v409
        %v1023 = vunpack.c.l.b16 %v410
        %v1024 = vunpack.c.h.b16 %v410
        %v1025 = vunpack.c.l.b16 %v411
        %v1026 = vunpack.c.h.b16 %v411
        %v1027 = vunpack.c.l.b16 %v412
        %v1028 = vunpack.c.h.b16 %v412
        %v1029 = vunpack.c.l.b16 %v413
        %v1030 = vunpack.c.h.b16 %v413
        %v1031 = vunpack.c.l.b16 %v414
        %v1032 = vunpack.c.h.b16 %v414
        %v1033 = vunpack.c.l.b16 %v415
        %v1034 = vunpack.c.h.b16 %v415
        %v1035 = vunpack.c.l.b16 %v416
        %v1036 = vunpack.c.h.b16 %v416
        %v1037 = vunpack.c.l.b16 %v417
        %v1038 = vunpack.c.h.b16 %v417
        %v1039 = vunpack.c.l.b16 %v418
        %v1040 = vunpack.c.h.b16 %v418
        %v1041 = vunpack.c.l.b16 %v419
        %v1042 = vunpack.c.h.b16 %v419
        %v1043 = vunpack.c.l.b16 %v420
        %v1044 = vunpack.c.h.b16 %v420
        %v1045 = vunpack.c.l.b16 %v421
        %v1046 = vunpack.c.h.b16 %v421
        %v1047 = vunpack.c.l.b16 %v422
        %v1048 = vunpack.c.h.b16 %v422
        %v1049 = vunpack.c.l.b16 %v423
        %v1050 = vunpack.c.h.b16 %v423
        %v1051 = vunpack.c.l.b16 %v424
        %v1052 = vunpack.c.h.b16 %v424
        %v1053 = vunpack.c.l.b16 %v425
        %v1054 = vunpack.c.h.b16 %v425
        %v1055 = vunpack.c.l.b16 %v426
        %v1056 = vunpack.c.h.b16 %v426
        %v1057 = vunpack.c.l.b16 %v427
        %v1058 = vunpack.c.h.b16 %v427
        %v1059 = vunpack.c.l.b16 %v428
        %v1060 = vunpack.c.h.b16 %v428
        %v1061 = vunpack.c.l.b16 %v429
        %v1062 = vunpack.c.h.b16 %v429
        %v1063 = vunpack.c.l.b16 %v430
        %v1064 = vunpack.c.h.b16 %v430
        %v1065 = vunpack.c.l.b16 %v431
        %v1066 = vunpack.c.h.b16 %v431
        %v1067 = vunpack.c.l.b16 %v432
        %v1068 = vunpack.c.h.b16 %v432
        %v1069 = vunpack.c.l.b16 %v433
        %v1070 = vunpack.c.h.b16 %v433
        %v1071 = vunpack.c.l.b16 %v434
        %v1072 = vunpack.c.h.b16 %v434
        %v1073 = vunpack.c.l.b16 %v435
        %v1074 = vunpack.c.h.b16 %v435
        %v1075 = vunpack.c.l.b16 %v436
        %v1076 = vunpack.c.h.b16 %v436
        %v1077 = vunpack.c.l.b16 %v437
        %v1078 = vunpack.c.h.b16 %v437
        %v1079 = vunpack.c.l.b16 %v438
        %v1080 = vunpack.c.h.b16 %v438
        %v1081 = vunpack.c.l.b16 %v439
        %v1082 = vunpack.c.h.b16 %v439
        %v1083 = vunpack.c.l.b16 %v440
        %v1084 = vunpack.c.h.b16 %v440
        %v1085 = vunpack.c.l.b16 %v441
        %v1086 = vunpack.c.h.b16 %v441
        %v1087 = vunpack.c.l.b16 %v442
        %v1088 = vunpack.c.h.b16 %v442
        %v1089 = vunpack.c.l.b16 %v443
        %v1090 = vunpack.c.h.b16 %v443
        %v1091 = vunpack.c.l.b16 %v444
        %v1092 = vunpack.c.h.b16 %v444
        %v1093 = vunpack.c.l.b16 %v445
        %v1094 = vunpack.c.h.b16 %v445
        %v1095 = vunpack.c.l.b16 %v446
        %v1096 = vunpack.c.h.b16 %v446
        %v1097 = vunpack.c.l.b16 %v447
        %v1098 = vunpack.c.h.b16 %v447
        %v1099 = vunpack.c.l.b16 %v448
        %v1100 = vunpack.c.h.b16 %v448
        %v1101 = vunpack.c.l.b16 %v449
        %v1102 = vunpack.c.h.b16 %v449
        %v1103 = vunpack.c.l.b16 %v450
        %v1104 = vunpack.c.h.b16 %v450
        %v1105 = vunpack.c.l.b16 %v451
        %v1106 = vunpack.c.h.b16 %v451
        %v1107 = vunpack.c.l.b16 %v452
        %v1108 = vunpack.c.h.b16 %v452
        %v1109 = vunpack.c.l.b16 %v453
        %v1110 = vunpack.c.h.b16 %v453
        %v1111 = vunpack.c.l.b16 %v454
        %v1112 = vunpack.c.h.b16 %v454
        %v1113 = vunpack.c.l.b16 %v455
        %v1114 = vunpack.c.h.b16 %v455
        %v1115 = vunpack.c.l.b16 %v456
        %v1116 = vunpack.c.h.b16 %v456
        %v1117 = vunpack.c.l.b16 %v457
        %v1118 = vunpack.c.h.b16 %v457
        %v1119 = vunpack.c.l.b16 %v458
        %v1120 = vunpack.c.h.b16 %v458
        %v1121 = vpack.c.b16 %v873, %v865
        %v1122 = vpack.c.b16 %v874, %v866
        %v1123 = vpack.c.b16 %v875, %v867
        %v1124 = vpack.c.b16 %v876, %v868
        %v1125 = vpack.c.b16 %v877, %v869
        %v1126 = vpack.c.b16 %v878, %v870
        %v1127 = vpack.c.b16 %v879, %v871
        %v1128 = vpack.c.b16 %v880, %v872
        %v1129 = vpack.c.b16 %v889, %v881
        %v1130 = vpack.c.b16 %v890, %v882
        %v1131 = vpack.c.b16 %v891, %v883
        %v1132 = vpack.c.b16 %v892, %v884
        %v1133 = vpack.c.b16 %v893, %v885
        %v1134 = vpack.c.b16 %v894, %v886
        %v1135 = vpack.c.b16 %v895, %v887
        %v1136 = vpack.c.b16 %v896, %v888
        %v1137 = vpack.c.b16 %v905, %v897
        %v1138 = vpack.c.b16 %v906, %v898
        %v1139 = vpack.c.b16 %v907, %v899
        %v1140 = vpack.c.b16 %v908, %v900
        %v1141 = vpack.c.b16 %v909, %v901
        %v1142 = vpack.c.b16 %v910, %v902
        %v1143 = vpack.c.b16 %v911, %v903
        %v1144 = vpack.c.b16 %v912, %v904
        %v1145 = vpack.c.b16 %v921, %v913
        %v1146 = vpack.c.b16 %v922, %v914
        %v1147 = vpack.c.b16 %v923, %v915
        %v1148 = vpack.c.b16 %v924, %v916
        %v1149 = vpack.c.b16 %v925, %v917
        %v1150 = vpack.c.b16 %v926, %v918
        %v1151 = vpack.c.b16 %v927, %v919
        %v1152 = vpack.c.b16 %v928, %v920
        %v1153 = vpack.c.b16 %v937, %v929
        %v1154 = vpack.c.b16 %v938, %v930
        %v1155 = vpack.c.b16 %v939, %v931
        %v1156 = vpack.c.b16 %v940, %v932
        %v1157 = vpack.c.b16 %v941, %v933
        %v1158 = vpack.c.b16 %v942, %v934
        %v1159 = vpack.c.b16 %v943, %v935
        %v1160 = vpack.c.b16 %v944, %v936
        %v1161 = vpack.c.b16 %v953, %v945
        %v1162 = vpack.c.b16 %v954, %v946
        %v1163 = vpack.c.b16 %v955, %v947
        %v1164 = vpack.c.b16 %v956, %v948
        %v1165 = vpack.c.b16 %v957, %v949
        %v1166 = vpack.c.b16 %v958, %v950
        %v1167 = vpack.c.b16 %v959, %v951
        %v1168 = vpack.c.b16 %v960, %v952
        %v1169 = vpack.c.b16 %v969, %v961
        %v1170 = vpack.c.b16 %v970, %v962
        %v1171 = vpack.c.b16 %v971, %v963
        %v1172 = vpack.c.b16 %v972, %v964
        %v1173 = vpack.c.b16 %v973, %v965
        %v1174 = vpack.c.b16 %v974, %v966
        %v1175 = vpack.c.b16 %v975, %v967
        %v1176 = vpack.c.b16 %v976, %v968
        %v1177 = vpack.c.b16 %v985, %v977
        %v1178 = vpack.c.b16 %v986, %v978
        %v1179 = vpack.c.b16 %v987, %v979
        %v1180 = vpack.c.b16 %v988, %v980
        %v1181 = vpack.c.b16 %v989, %v981
        %v1182 = vpack.c.b16 %v990, %v982
        %v1183 = vpack.c.b16 %v991, %v983
        %v1184 = vpack.c.b16 %v992, %v984
        %v1185 = vpack.c.b16 %v1001, %v993
        %v1186 = vpack.c.b16 %v1002, %v994
        %v1187 = vpack.c.b16 %v1003, %v995
        %v1188 = vpack.c.b16 %v1004, %v996
        %v1189 = vpack.c.b16 %v1005, %v997
        %v1190 = vpack.c.b16 %v1006, %v998
        %v1191 = vpack.c.b16 %v1007, %v999
        %v1192 = vpack.c.b16 %v1008, %v1000
        %v1193 = vpack.c.b16 %v1017, %v1009
        %v1194 = vpack.c.b16 %v1018, %v1010
        %v1195 = vpack.c.b16 %v1019, %v1011
        %v1196 = vpack.c.b16 %v1020, %v1012
        %v1197 = vpack.c.b16 %v1021, %v1013
        %v1198 = vpack.c.b16 %v1022, %v1014
        %v1199 = vpack.c.b16 %v1023, %v1015
        %v1200 = vpack.c.b16 %v1024, %v1016
        %v1201 = vpack.c.b16 %v1033, %v1025
        %v1202 = vpack.c.b16 %v1034, %v1026
        %v1203 = vpack.c.b16 %v1035, %v1027
        %v1204 = vpack.c.b16 %v1036, %v1028
        %v1205 = vpack.c.b16 %v1037, %v1029
        %v1206 = vpack.c.b16 %v1038, %v1030
        %v1207 = vpack.c.b16 %v1039, %v1031
        %v1208 = vpack.c.b16 %v1040, %v1032
        %v1209 = vpack.c.b16 %v1049, %v1041
        %v1210 = vpack.c.b16 %v1050, %v1042
        %v1211 = vpack.c.b16 %v1051, %v1043
        %v1212 = vpack.c.b16 %v1052, %v1044
        %v1213 = vpack.c.b16 %v1053, %v1045
        %v1214 = vpack.c.b16 %v1054, %v1046
        %v1215 = vpack.c.b16 %v1055, %v1047
        %v1216 = vpack.c.b16 %v1056, %v1048
        %v1217 = vpack.c.b16 %v1065, %v1057
        %v1218 = vpack.c.b16 %v1066, %v1058
        %v1219 = vpack.c.b16 %v1067, %v1059
        %v1220 = vpack.c.b16 %v1068, %v1060
        %v1221 = vpack.c.b16 %v1069, %v1061
        %v1222 = vpack.c.b16 %v1070, %v1062
        %v1223 = vpack.c.b16 %v1071, %v1063
        %v1224 = vpack.c.b16 %v1072, %v1064
        %v1225 = vpack.c.b16 %v1081, %v1073
        %v1226 = vpack.c.b16 %v1082, %v1074
        %v1227 = vpack.c.b16 %v1083, %v1075
        %v1228 = vpack.c.b16 %v1084, %v1076
        %v1229 = vpack.c.b16 %v1085, %v1077
        %v1230 = vpack.c.b16 %v1086, %v1078
        %v1231 = vpack.c.b16 %v1087, %v1079
        %v1232 = vpack.c.b16 %v1088, %v1080
        %v1233 = vpack.c.b16 %v1097, %v1089
        %v1234 = vpack.c.b16 %v1098, %v1090
        %v1235 = vpack.c.b16 %v1099, %v1091
        %v1236 = vpack.c.b16 %v1100, %v1092
        %v1237 = vpack.c.b16 %v1101, %v1093
        %v1238 = vpack.c.b16 %v1102, %v1094
        %v1239 = vpack.c.b16 %v1103, %v1095
        %v1240 = vpack.c.b16 %v1104, %v1096
        %v1241 = vpack.c.b16 %v1113, %v1105
        %v1242 = vpack.c.b16 %v1114, %v1106
        %v1243 = vpack.c.b16 %v1115, %v1107
        %v1244 = vpack.c.b16 %v1116, %v1108
        %v1245 = vpack.c.b16 %v1117, %v1109
        %v1246 = vpack.c.b16 %v1118, %v1110
        %v1247 = vpack.c.b16 %v1119, %v1111
        %v1248 = vpack.c.b16 %v1120, %v1112
        %v1633 = vunpack.c.l.b16 %v459
        %v1634 = vunpack.c.h.b16 %v459
        %v1635 = vunpack.c.l.b16 %v460
        %v1636 = vunpack.c.h.b16 %v460
        %v1637 = vunpack.c.l.b16 %v461
        %v1638 = vunpack.c.h.b16 %v461
        %v1639 = vunpack.c.l.b16 %v462
        %v1640 = vunpack.c.h.b16 %v462
        %v1641 = vunpack.c.l.b16 %v463
        %v1642 = vunpack.c.h.b16 %v463
        %v1643 = vunpack.c.l.b16 %v464
        %v1644 = vunpack.c.h.b16 %v464
        %v1645 = vunpack.c.l.b16 %v465
        %v1646 = vunpack.c.h.b16 %v465
        %v1647 = vunpack.c.l.b16 %v466
        %v1648 = vunpack.c.h.b16 %v466
        %v1649 = vunpack.c.l.b16 %v467
        %v1650 = vunpack.c.h.b16 %v467
        %v1651 = vunpack.c.l.b16 %v468
        %v1652 = vunpack.c.h.b16 %v468
        %v1653 = vunpack.c.l.b16 %v469
        %v1654 = vunpack.c.h.b16 %v469
        %v1655 = vunpack.c.l.b16 %v470
        %v1656 = vunpack.c.h.b16 %v470
        %v1657 = vunpack.c.l.b16 %v471
        %v1658 = vunpack.c.h.b16 %v471
        %v1659 = vunpack.c.l.b16 %v472
        %v1660 = vunpack.c.h.b16 %v472
        %v1661 = vunpack.c.l.b16 %v473
        %v1662 = vunpack.c.h.b16 %v473
        %v1663 = vunpack.c.l.b16 %v474
        %v1664 = vunpack.c.h.b16 %v474
        %v1665 = vunpack.c.l.b16 %v475
        %v1666 = vunpack.c.h.b16 %v475
        %v1667 = vunpack.c.l.b16 %v476
        %v1668 = vunpack.c.h.b16 %v476
        %v1669 = vunpack.c.l.b16 %v477
        %v1670 = vunpack.c.h.b16 %v477
        %v1671 = vunpack.c.l.b16 %v478
        %v1672 = vunpack.c.h.b16 %v478
        %v1673 = vunpack.c.l.b16 %v479
        %v1674 = vunpack.c.h.b16 %v479
        %v1675 = vunpack.c.l.b16 %v480
        %v1676 = vunpack.c.h.b16 %v480
        %v1677 = vunpack.c.l.b16 %v481
        %v1678 = vunpack.c.h.b16 %v481
        %v1679 = vunpack.c.l.b16 %v482
        %v1680 = vunpack.c.h.b16 %v482
        %v1681 = vunpack.c.l.b16 %v483
        %v1682 = vunpack.c.h.b16 %v483
        %v1683 = vunpack.c.l.b16 %v484
        %v1684 = vunpack.c.h.b16 %v484
        %v1685 = vunpack.c.l.b16 %v485
        %v1686 = vunpack.c.h.b16 %v485
        %v1687 = vunpack.c.l.b16 %v486
        %v1688 = vunpack.c.h.b16 %v486
        %v1689 = vunpack.c.l.b16 %v487
        %v1690 = vunpack.c.h.b16 %v487
        %v1691 = vunpack.c.l.b16 %v488
        %v1692 = vunpack.c.h.b16 %v488
        %v1693 = vunpack.c.l.b16 %v489
        %v1694 = vunpack.c.h.b16 %v489
        %v1695 = vunpack.c.l.b16 %v490
        %v1696 = vunpack.c.h.b16 %v490
        %v1697 = vunpack.c.l.b16 %v491
        %v1698 = vunpack.c.h.b16 %v491
        %v1699 = vunpack.c.l.b16 %v492
        %v1700 = vunpack.c.h.b16 %v492
        %v1701 = vunpack.c.l.b16 %v493
        %v1702 = vunpack.c.h.b16 %v493
        %v1703 = vunpack.c.l.b16 %v494
        %v1704 = vunpack.c.h.b16 %v494
        %v1705 = vunpack.c.l.b16 %v495
        %v1706 = vunpack.c.h.b16 %v495
        %v1707 = vunpack.c.l.b16 %v496
        %v1708 = vunpack.c.h.b16 %v496
        %v1709 = vunpack.c.l.b16 %v497
        %v1710 = vunpack.c.h.b16 %v497
        %v1711 = vunpack.c.l.b16 %v498
        %v1712 = vunpack.c.h.b16 %v498
        %v1713 = vunpack.c.l.b16 %v499
        %v1714 = vunpack.c.h.b16 %v499
        %v1715 = vunpack.c.l.b16 %v500
        %v1716 = vunpack.c.h.b16 %v500
        %v1717 = vunpack.c.l.b16 %v501
        %v1718 = vunpack.c.h.b16 %v501
        %v1719 = vunpack.c.l.b16 %v502
        %v1720 = vunpack.c.h.b16 %v502
        %v1721 = vunpack.c.l.b16 %v503
        %v1722 = vunpack.c.h.b16 %v503
        %v1723 = vunpack.c.l.b16 %v504
        %v1724 = vunpack.c.h.b16 %v504
        %v1725 = vunpack.c.l.b16 %v505
        %v1726 = vunpack.c.h.b16 %v505
        %v1727 = vunpack.c.l.b16 %v506
        %v1728 = vunpack.c.h.b16 %v506
        %v1729 = vunpack.c.l.b16 %v507
        %v1730 = vunpack.c.h.b16 %v507
        %v1731 = vunpack.c.l.b16 %v508
        %v1732 = vunpack.c.h.b16 %v508
        %v1733 = vunpack.c.l.b16 %v509
        %v1734 = vunpack.c.h.b16 %v509
        %v1735 = vunpack.c.l.b16 %v510
        %v1736 = vunpack.c.h.b16 %v510
        %v1737 = vunpack.c.l.b16 %v511
        %v1738 = vunpack.c.h.b16 %v511
        %v1739 = vunpack.c.l.b16 %v512
        %v1740 = vunpack.c.h.b16 %v512
        %v1741 = vunpack.c.l.b16 %v513
        %v1742 = vunpack.c.h.b16 %v513
        %v1743 = vunpack.c.l.b16 %v514
        %v1744 = vunpack.c.h.b16 %v514
        %v1745 = vunpack.c.l.b16 %v515
        %v1746 = vunpack.c.h.b16 %v515
        %v1747 = vunpack.c.l.b16 %v516
        %v1748 = vunpack.c.h.b16 %v516
        %v1749 = vunpack.c.l.b16 %v517
        %v1750 = vunpack.c.h.b16 %v517
        %v1751 = vunpack.c.l.b16 %v518
        %v1752 = vunpack.c.h.b16 %v518
        %v1753 = vunpack.c.l.b16 %v519
        %v1754 = vunpack.c.h.b16 %v519
        %v1755 = vunpack.c.l.b16 %v520
        %v1756 = vunpack.c.h.b16 %v520
        %v1757 = vunpack.c.l.b16 %v521
        %v1758 = vunpack.c.h.b16 %v521
        %v1759 = vunpack.c.l.b16 %v522
        %v1760 = vunpack.c.h.b16 %v522
        %v1761 = vunpack.c.l.b16 %v523
        %v1762 = vunpack.c.h.b16 %v523
        %v1763 = vunpack.c.l.b16 %v524
        %v1764 = vunpack.c.h.b16 %v524
        %v1765 = vunpack.c.l.b16 %v525
        %v1766 = vunpack.c.h.b16 %v525
        %v1767 = vunpack.c.l.b16 %v526
        %v1768 = vunpack.c.h.b16 %v526
        %v1769 = vunpack.c.l.b16 %v527
        %v1770 = vunpack.c.h.b16 %v527
        %v1771 = vunpack.c.l.b16 %v528
        %v1772 = vunpack.c.h.b16 %v528
        %v1773 = vunpack.c.l.b16 %v529
        %v1774 = vunpack.c.h.b16 %v529
        %v1775 = vunpack.c.l.b16 %v530
        %v1776 = vunpack.c.h.b16 %v530
        %v1777 = vunpack.c.l.b16 %v531
        %v1778 = vunpack.c.h.b16 %v531
        %v1779 = vunpack.c.l.b16 %v532
        %v1780 = vunpack.c.h.b16 %v532
        %v1781 = vunpack.c.l.b16 %v533
        %v1782 = vunpack.c.h.b16 %v533
        %v1783 = vunpack.c.l.b16 %v534
        %v1784 = vunpack.c.h.b16 %v534
        %v1785 = vunpack.c.l.b16 %v535
        %v1786 = vunpack.c.h.b16 %v535
        %v1787 = vunpack.c.l.b16 %v536
        %v1788 = vunpack.c.h.b16 %v536
        %v1789 = vunpack.c.l.b16 %v537
        %v1790 = vunpack.c.h.b16 %v537
        %v1791 = vunpack.c.l.b16 %v538
        %v1792 = vunpack.c.h.b16 %v538
        %v1793 = vunpack.c.l.b16 %v539
        %v1794 = vunpack.c.h.b16 %v539
        %v1795 = vunpack.c.l.b16 %v540
        %v1796 = vunpack.c.h.b16 %v540
        %v1797 = vunpack.c.l.b16 %v541
        %v1798 = vunpack.c.h.b16 %v541
        %v1799 = vunpack.c.l.b16 %v542
        %v1800 = vunpack.c.h.b16 %v542
        %v1801 = vunpack.c.l.b16 %v543
        %v1802 = vunpack.c.h.b16 %v543
        %v1803 = vunpack.c.l.b16 %v544
        %v1804 = vunpack.c.h.b16 %v544
        %v1805 = vunpack.c.l.b16 %v545
        %v1806 = vunpack.c.h.b16 %v545
        %v1807 = vunpack.c.l.b16 %v546
        %v1808 = vunpack.c.h.b16 %v546
        %v1809 = vunpack.c.l.b16 %v547
        %v1810 = vunpack.c.h.b16 %v547
        %v1811 = vunpack.c.l.b16 %v548
        %v1812 = vunpack.c.h.b16 %v548
        %v1813 = vunpack.c.l.b16 %v549
        %v1814 = vunpack.c.h.b16 %v549
        %v1815 = vunpack.c.l.b16 %v550
        %v1816 = vunpack.c.h.b16 %v550
        %v1817 = vunpack.c.l.b16 %v551
        %v1818 = vunpack.c.h.b16 %v551
        %v1819 = vunpack.c.l.b16 %v552
        %v1820 = vunpack.c.h.b16 %v552
        %v1821 = vunpack.c.l.b16 %v553
        %v1822 = vunpack.c.h.b16 %v553
        %v1823 = vunpack.c.l.b16 %v554
        %v1824 = vunpack.c.h.b16 %v554
        %v1825 = vunpack.c.l.b16 %v555
        %v1826 = vunpack.c.h.b16 %v555
        %v1827 = vunpack.c.l.b16 %v556
        %v1828 = vunpack.c.h.b16 %v556
        %v1829 = vunpack.c.l.b16 %v557
        %v1830 = vunpack.c.h.b16 %v557
        %v1831 = vunpack.c.l.b16 %v558
        %v1832 = vunpack.c.h.b16 %v558
        %v1833 = vunpack.c.l.b16 %v559
        %v1834 = vunpack.c.h.b16 %v559
        %v1835 = vunpack.c.l.b16 %v560
        %v1836 = vunpack.c.h.b16 %v560
        %v1837 = vunpack.c.l.b16 %v561
        %v1838 = vunpack.c.h.b16 %v561
        %v1839 = vunpack.c.l.b16 %v562
        %v1840 = vunpack.c.h.b16 %v562
        %v1841 = vunpack.c.l.b16 %v563
        %v1842 = vunpack.c.h.b16 %v563
        %v1843 = vunpack.c.l.b16 %v564
        %v1844 = vunpack.c.h.b16 %v564
        %v1845 = vunpack.c.l.b16 %v565
        %v1846 = vunpack.c.h.b16 %v565
        %v1847 = vunpack.c.l.b16 %v566
        %v1848 = vunpack.c.h.b16 %v566
        %v1849 = vunpack.c.l.b16 %v567
        %v1850 = vunpack.c.h.b16 %v567
        %v1851 = vunpack.c.l.b16 %v568
        %v1852 = vunpack.c.h.b16 %v568
        %v1853 = vunpack.c.l.b16 %v569
        %v1854 = vunpack.c.h.b16 %v569
        %v1855 = vunpack.c.l.b16 %v570
        %v1856 = vunpack.c.h.b16 %v570
        %v1857 = vunpack.c.l.b16 %v571
        %v1858 = vunpack.c.h.b16 %v571
        %v1859 = vunpack.c.l.b16 %v572
        %v1860 = vunpack.c.h.b16 %v572
        %v1861 = vunpack.c.l.b16 %v573
        %v1862 = vunpack.c.h.b16 %v573
        %v1863 = vunpack.c.l.b16 %v574
        %v1864 = vunpack.c.h.b16 %v574
        %v1865 = vunpack.c.l.b16 %v575
        %v1866 = vunpack.c.h.b16 %v575
        %v1867 = vunpack.c.l.b16 %v576
        %v1868 = vunpack.c.h.b16 %v576
        %v1869 = vunpack.c.l.b16 %v577
        %v1870 = vunpack.c.h.b16 %v577
        %v1871 = vunpack.c.l.b16 %v578
        %v1872 = vunpack.c.h.b16 %v578
        %v1873 = vunpack.c.l.b16 %v579
        %v1874 = vunpack.c.h.b16 %v579
        %v1875 = vunpack.c.l.b16 %v580
        %v1876 = vunpack.c.h.b16 %v580
        %v1877 = vunpack.c.l.b16 %v581
        %v1878 = vunpack.c.h.b16 %v581
        %v1879 = vunpack.c.l.b16 %v582
        %v1880 = vunpack.c.h.b16 %v582
        %v1881 = vunpack.c.l.b16 %v583
        %v1882 = vunpack.c.h.b16 %v583
        %v1883 = vunpack.c.l.b16 %v584
        %v1884 = vunpack.c.h.b16 %v584
        %v1885 = vunpack.c.l.b16 %v585
        %v1886 = vunpack.c.h.b16 %v585
        %v1887 = vunpack.c.l.b16 %v586
        %v1888 = vunpack.c.h.b16 %v586
        %v1889 = vunpack.c.l.b16 %v587
        %v1890 = vunpack.c.h.b16 %v587
        %v1891 = vunpack.c.l.b16 %v588
        %v1892 = vunpack.c.h.b16 %v588
        %v1893 = vunpack.c.l.b16 %v589
        %v1894 = vunpack.c.h.b16 %v589
        %v1895 = vunpack.c.l.b16 %v590
        %v1896 = vunpack.c.h.b16 %v590
        %v1897 = vunpack.c.l.b16 %v591
        %v1898 = vunpack.c.h.b16 %v591
        %v1899 = vunpack.c.l.b16 %v592
        %v1900 = vunpack.c.h.b16 %v592
        %v1901 = vunpack.c.l.b16 %v593
        %v1902 = vunpack.c.h.b16 %v593
        %v1903 = vunpack.c.l.b16 %v594
        %v1904 = vunpack.c.h.b16 %v594
        %v1905 = vunpack.c.l.b16 %v595
        %v1906 = vunpack.c.h.b16 %v595
        %v1907 = vunpack.c.l.b16 %v596
        %v1908 = vunpack.c.h.b16 %v596
        %v1909 = vunpack.c.l.b16 %v597
        %v1910 = vunpack.c.h.b16 %v597
        %v1911 = vunpack.c.l.b16 %v598
        %v1912 = vunpack.c.h.b16 %v598
        %v1913 = vunpack.c.l.b16 %v599
        %v1914 = vunpack.c.h.b16 %v599
        %v1915 = vunpack.c.l.b16 %v600
        %v1916 = vunpack.c.h.b16 %v600
        %v1917 = vunpack.c.l.b16 %v601
        %v1918 = vunpack.c.h.b16 %v601
        %v1919 = vunpack.c.l.b16 %v602
        %v1920 = vunpack.c.h.b16 %v602
        %v1921 = vunpack.c.l.b16 %v603
        %v1922 = vunpack.c.h.b16 %v603
        %v1923 = vunpack.c.l.b16 %v604
        %v1924 = vunpack.c.h.b16 %v604
        %v1925 = vunpack.c.l.b16 %v605
        %v1926 = vunpack.c.h.b16 %v605
        %v1927 = vunpack.c.l.b16 %v606
        %v1928 = vunpack.c.h.b16 %v606
        %v1929 = vunpack.c.l.b16 %v607
        %v1930 = vunpack.c.h.b16 %v607
        %v1931 = vunpack.c.l.b16 %v608
        %v1932 = vunpack.c.h.b16 %v608
        %v1933 = vunpack.c.l.b16 %v609
        %v1934 = vunpack.c.h.b16 %v609
        %v1935 = vunpack.c.l.b16 %v610
        %v1936 = vunpack.c.h.b16 %v610
        %v1937 = vunpack.c.l.b16 %v611
        %v1938 = vunpack.c.h.b16 %v611
        %v1939 = vunpack.c.l.b16 %v612
        %v1940 = vunpack.c.h.b16 %v612
        %v1941 = vunpack.c.l.b16 %v613
        %v1942 = vunpack.c.h.b16 %v613
        %v1943 = vunpack.c.l.b16 %v614
        %v1944 = vunpack.c.h.b16 %v614
        %v1945 = vunpack.c.l.b16 %v615
        %v1946 = vunpack.c.h.b16 %v615
        %v1947 = vunpack.c.l.b16 %v616
        %v1948 = vunpack.c.h.b16 %v616
        %v1949 = vunpack.c.l.b16 %v617
        %v1950 = vunpack.c.h.b16 %v617
        %v1951 = vunpack.c.l.b16 %v618
        %v1952 = vunpack.c.h.b16 %v618
        %v1953 = vunpack.c.l.b16 %v619
        %v1954 = vunpack.c.h.b16 %v619
        %v1955 = vunpack.c.l.b16 %v620
        %v1956 = vunpack.c.h.b16 %v620
        %v1957 = vunpack.c.l.b16 %v621
        %v1958 = vunpack.c.h.b16 %v621
        %v1959 = vunpack.c.l.b16 %v622
        %v1960 = vunpack.c.h.b16 %v622
        %v1961 = vunpack.c.l.b16 %v623
        %v1962 = vunpack.c.h.b16 %v623
        %v1963 = vunpack.c.l.b16 %v624
        %v1964 = vunpack.c.h.b16 %v624
        %v1965 = vunpack.c.l.b16 %v625
        %v1966 = vunpack.c.h.b16 %v625
        %v1967 = vunpack.c.l.b16 %v626
        %v1968 = vunpack.c.h.b16 %v626
        %v1969 = vunpack.c.l.b16 %v627
        %v1970 = vunpack.c.h.b16 %v627
        %v1971 = vunpack.c.l.b16 %v628
        %v1972 = vunpack.c.h.b16 %v628
        %v1973 = vunpack.c.l.b16 %v629
        %v1974 = vunpack.c.h.b16 %v629
        %v1975 = vunpack.c.l.b16 %v630
        %v1976 = vunpack.c.h.b16 %v630
        %v1977 = vunpack.c.l.b16 %v631
        %v1978 = vunpack.c.h.b16 %v631
        %v1979 = vunpack.c.l.b16 %v632
        %v1980 = vunpack.c.h.b16 %v632
        %v1981 = vunpack.c.l.b16 %v633
        %v1982 = vunpack.c.h.b16 %v633
        %v1983 = vunpack.c.l.b16 %v634
        %v1984 = vunpack.c.h.b16 %v634
        %v1985 = vunpack.c.l.b16 %v635
        %v1986 = vunpack.c.h.b16 %v635
        %v1987 = vunpack.c.l.b16 %v636
        %v1988 = vunpack.c.h.b16 %v636
        %v1989 = vunpack.c.l.b16 %v637
        %v1990 = vunpack.c.h.b16 %v637
        %v1991 = vunpack.c.l.b16 %v638
        %v1992 = vunpack.c.h.b16 %v638
        %v1993 = vunpack.c.l.b16 %v639
        %v1994 = vunpack.c.h.b16 %v639
        %v1995 = vunpack.c.l.b16 %v640
        %v1996 = vunpack.c.h.b16 %v640
        %v1997 = vunpack.c.l.b16 %v641
        %v1998 = vunpack.c.h.b16 %v641
        %v1999 = vunpack.c.l.b16 %v642
        %v2000 = vunpack.c.h.b16 %v642
        %v2001 = vunpack.c.l.b16 %v643
        %v2002 = vunpack.c.h.b16 %v643
        %v2003 = vunpack.c.l.b16 %v644
        %v2004 = vunpack.c.h.b16 %v644
        %v2005 = vunpack.c.l.b16 %v645
        %v2006 = vunpack.c.h.b16 %v645
        %v2007 = vunpack.c.l.b16 %v646
        %v2008 = vunpack.c.h.b16 %v646
        %v2009 = vunpack.c.l.b16 %v647
        %v2010 = vunpack.c.h.b16 %v647
        %v2011 = vunpack.c.l.b16 %v648
        %v2012 = vunpack.c.h.b16 %v648
        %v2013 = vunpack.c.l.b16 %v649
        %v2014 = vunpack.c.h.b16 %v649
        %v2015 = vunpack.c.l.b16 %v650
        %v2016 = vunpack.c.h.b16 %v650
        %v2017 = vunpack.c.l.b16 %v651
        %v2018 = vunpack.c.h.b16 %v651
        %v2019 = vunpack.c.l.b16 %v652
        %v2020 = vunpack.c.h.b16 %v652
        %v2021 = vunpack.c.l.b16 %v653
        %v2022 = vunpack.c.h.b16 %v653
        %v2023 = vunpack.c.l.b16 %v654
        %v2024 = vunpack.c.h.b16 %v654
        %v2025 = vunpack.c.l.b16 %v655
        %v2026 = vunpack.c.h.b16 %v655
        %v2027 = vunpack.c.l.b16 %v656
        %v2028 = vunpack.c.h.b16 %v656
        %v2029 = vunpack.c.l.b16 %v657
        %v2030 = vunpack.c.h.b16 %v657
        %v2031 = vunpack.c.l.b16 %v658
        %v2032 = vunpack.c.h.b16 %v658
        %v2033 = vunpack.c.l.b16 %v659
        %v2034 = vunpack.c.h.b16 %v659
        %v2035 = vunpack.c.l.b16 %v660
        %v2036 = vunpack.c.h.b16 %v660
        %v2037 = vunpack.c.l.b16 %v661
        %v2038 = vunpack.c.h.b16 %v661
        %v2039 = vunpack.c.l.b16 %v662
        %v2040 = vunpack.c.h.b16 %v662
        %v2041 = vunpack.c.l.b16 %v663
        %v2042 = vunpack.c.h.b16 %v663
        %v2043 = vunpack.c.l.b16 %v664
        %v2044 = vunpack.c.h.b16 %v664
        %v2045 = vunpack.c.l.b16 %v665
        %v2046 = vunpack.c.h.b16 %v665
        %v2047 = vunpack.c.l.b16 %v666
        %v2048 = vunpack.c.h.b16 %v666
        %v2049 = vunpack.c.l.b16 %v667
        %v2050 = vunpack.c.h.b16 %v667
        %v2051 = vunpack.c.l.b16 %v668
        %v2052 = vunpack.c.h.b16 %v668
        %v2053 = vunpack.c.l.b16 %v669
        %v2054 = vunpack.c.h.b16 %v669
        %v2055 = vunpack.c.l.b16 %v670
        %v2056 = vunpack.c.h.b16 %v670
        %v2057 = vunpack.c.l.b16 %v671
        %v2058 = vunpack.c.h.b16 %v671
        %v2059 = vunpack.c.l.b16 %v672
        %v2060 = vunpack.c.h.b16 %v672
        %v2061 = vunpack.c.l.b16 %v673
        %v2062 = vunpack.c.h.b16 %v673
        %v2063 = vunpack.c.l.b16 %v674
        %v2064 = vunpack.c.h.b16 %v674
        %v2065 = vunpack.c.l.b16 %v675
        %v2066 = vunpack.c.h.b16 %v675
        %v2067 = vunpack.c.l.b16 %v676
        %v2068 = vunpack.c.h.b16 %v676
        %v2069 = vunpack.c.l.b16 %v677
        %v2070 = vunpack.c.h.b16 %v677
        %v2071 = vunpack.c.l.b16 %v678
        %v2072 = vunpack.c.h.b16 %v678
        %v2073 = vunpack.c.l.b16 %v679
        %v2074 = vunpack.c.h.b16 %v679
        %v2075 = vunpack.c.l.b16 %v680
        %v2076 = vunpack.c.h.b16 %v680
        %v2077 = vunpack.c.l.b16 %v681
        %v2078 = vunpack.c.h.b16 %v681
        %v2079 = vunpack.c.l.b16 %v682
        %v2080 = vunpack.c.h.b16 %v682
        %v2081 = vunpack.c.l.b16 %v683
        %v2082 = vunpack.c.h.b16 %v683
        %v2083 = vunpack.c.l.b16 %v684
        %v2084 = vunpack.c.h.b16 %v684
        %v2085 = vunpack.c.l.b16 %v685
        %v2086 = vunpack.c.h.b16 %v685
        %v2087 = vunpack.c.l.b16 %v686
        %v2088 = vunpack.c.h.b16 %v686
        %v2089 = vunpack.c.l.b16 %v687
        %v2090 = vunpack.c.h.b16 %v687
        %v2091 = vunpack.c.l.b16 %v688
        %v2092 = vunpack.c.h.b16 %v688
        %v2093 = vunpack.c.l.b16 %v689
        %v2094 = vunpack.c.h.b16 %v689
        %v2095 = vunpack.c.l.b16 %v690
        %v2096 = vunpack.c.h.b16 %v690
        %v2097 = vunpack.c.l.b16 %v691
        %v2098 = vunpack.c.h.b16 %v691
        %v2099 = vunpack.c.l.b16 %v692
        %v2100 = vunpack.c.h.b16 %v692
        %v2101 = vunpack.c.l.b16 %v693
        %v2102 = vunpack.c.h.b16 %v693
        %v2103 = vunpack.c.l.b16 %v694
        %v2104 = vunpack.c.h.b16 %v694
        %v2105 = vunpack.c.l.b16 %v695
        %v2106 = vunpack.c.h.b16 %v695
        %v2107 = vunpack.c.l.b16 %v696
        %v2108 = vunpack.c.h.b16 %v696
        %v2109 = vunpack.c.l.b16 %v697
        %v2110 = vunpack.c.h.b16 %v697
        %v2111 = vunpack.c.l.b16 %v698
        %v2112 = vunpack.c.h.b16 %v698
        %v2113 = vunpack.c.l.b16 %v699
        %v2114 = vunpack.c.h.b16 %v699
        %v2115 = vunpack.c.l.b16 %v700
        %v2116 = vunpack.c.h.b16 %v700
        %v2117 = vunpack.c.l.b16 %v701
        %v2118 = vunpack.c.h.b16 %v701
        %v2119 = vunpack.c.l.b16 %v702
        %v2120 = vunpack.c.h.b16 %v702
        %v2121 = vunpack.c.l.b16 %v703
        %v2122 = vunpack.c.h.b16 %v703
        %v2123 = vunpack.c.l.b16 %v704
        %v2124 = vunpack.c.h.b16 %v704
        %v2125 = vunpack.c.l.b16 %v705
        %v2126 = vunpack.c.h.b16 %v705
        %v2127 = vunpack.c.l.b16 %v706
        %v2128 = vunpack.c.h.b16 %v706
        %v2129 = vunpack.c.l.b16 %v707
        %v2130 = vunpack.c.h.b16 %v707
        %v2131 = vunpack.c.l.b16 %v708
        %v2132 = vunpack.c.h.b16 %v708
        %v2133 = vunpack.c.l.b16 %v709
        %v2134 = vunpack.c.h.b16 %v709
        %v2135 = vunpack.c.l.b16 %v710
        %v2136 = vunpack.c.h.b16 %v710
        %v2137 = vunpack.c.l.b16 %v711
        %v2138 = vunpack.c.h.b16 %v711
        %v2139 = vunpack.c.l.b16 %v712
        %v2140 = vunpack.c.h.b16 %v712
        %v2141 = vunpack.c.l.b16 %v713
        %v2142 = vunpack.c.h.b16 %v713
        %v2143 = vunpack.c.l.b16 %v714
        %v2144 = vunpack.c.h.b16 %v714
        %v2145 = vpack.c.b16 %v1637, %v1633
        %v2146 = vpack.c.b16 %v1638, %v1634
        %v2147 = vpack.c.b16 %v1639, %v1635
        %v2148 = vpack.c.b16 %v1640, %v1636
        %v2149 = vpack.c.b16 %v1645, %v1641
        %v2150 = vpack.c.b16 %v1646, %v1642
        %v2151 = vpack.c.b16 %v1647, %v1643
        %v2152 = vpack.c.b16 %v1648, %v1644
        %v2153 = vpack.c.b16 %v1653, %v1649
        %v2154 = vpack.c.b16 %v1654, %v1650
        %v2155 = vpack.c.b16 %v1655, %v1651
        %v2156 = vpack.c.b16 %v1656, %v1652
        %v2157 = vpack.c.b16 %v1661, %v1657
        %v2158 = vpack.c.b16 %v1662, %v1658
        %v2159 = vpack.c.b16 %v1663, %v1659
        %v2160 = vpack.c.b16 %v1664, %v1660
        %v2161 = vpack.c.b16 %v1669, %v1665
        %v2162 = vpack.c.b16 %v1670, %v1666
        %v2163 = vpack.c.b16 %v1671, %v1667
        %v2164 = vpack.c.b16 %v1672, %v1668
        %v2165 = vpack.c.b16 %v1677, %v1673
        %v2166 = vpack.c.b16 %v1678, %v1674
        %v2167 = vpack.c.b16 %v1679, %v1675
        %v2168 = vpack.c.b16 %v1680, %v1676
        %v2169 = vpack.c.b16 %v1685, %v1681
        %v2170 = vpack.c.b16 %v1686, %v1682
        %v2171 = vpack.c.b16 %v1687, %v1683
        %v2172 = vpack.c.b16 %v1688, %v1684
        %v2173 = vpack.c.b16 %v1693, %v1689
        %v2174 = vpack.c.b16 %v1694, %v1690
        %v2175 = vpack.c.b16 %v1695, %v1691
        %v2176 = vpack.c.b16 %v1696, %v1692
        %v2177 = vpack.c.b16 %v1701, %v1697
        %v2178 = vpack.c.b16 %v1702, %v1698
        %v2179 = vpack.c.b16 %v1703, %v1699
        %v2180 = vpack.c.b16 %v1704, %v1700
        %v2181 = vpack.c.b16 %v1709, %v1705
        %v2182 = vpack.c.b16 %v1710, %v1706
        %v2183 = vpack.c.b16 %v1711, %v1707
        %v2184 = vpack.c.b16 %v1712, %v1708
        %v2185 = vpack.c.b16 %v1717, %v1713
        %v2186 = vpack.c.b16 %v1718, %v1714
        %v2187 = vpack.c.b16 %v1719, %v1715
        %v2188 = vpack.c.b16 %v1720, %v1716
        %v2189 = vpack.c.b16 %v1725, %v1721
        %v2190 = vpack.c.b16 %v1726, %v1722
        %v2191 = vpack.c.b16 %v1727, %v1723
        %v2192 = vpack.c.b16 %v1728, %v1724
        %v2193 = vpack.c.b16 %v1733, %v1729
        %v2194 = vpack.c.b16 %v1734, %v1730
        %v2195 = vpack.c.b16 %v1735, %v1731
        %v2196 = vpack.c.b16 %v1736, %v1732
        %v2197 = vpack.c.b16 %v1741, %v1737
        %v2198 = vpack.c.b16 %v1742, %v1738
        %v2199 = vpack.c.b16 %v1743, %v1739
        %v2200 = vpack.c.b16 %v1744, %v1740
        %v2201 = vpack.c.b16 %v1749, %v1745
        %v2202 = vpack.c.b16 %v1750, %v1746
        %v2203 = vpack.c.b16 %v1751, %v1747
        %v2204 = vpack.c.b16 %v1752, %v1748
        %v2205 = vpack.c.b16 %v1757, %v1753
        %v2206 = vpack.c.b16 %v1758, %v1754
        %v2207 = vpack.c.b16 %v1759, %v1755
        %v2208 = vpack.c.b16 %v1760, %v1756
        %v2209 = vpack.c.b16 %v1765, %v1761
        %v2210 = vpack.c.b16 %v1766, %v1762
        %v2211 = vpack.c.b16 %v1767, %v1763
        %v2212 = vpack.c.b16 %v1768, %v1764
        %v2213 = vpack.c.b16 %v1773, %v1769
        %v2214 = vpack.c.b16 %v1774, %v1770
        %v2215 = vpack.c.b16 %v1775, %v1771
        %v2216 = vpack.c.b16 %v1776, %v1772
        %v2217 = vpack.c.b16 %v1781, %v1777
        %v2218 = vpack.c.b16 %v1782, %v1778
        %v2219 = vpack.c.b16 %v1783, %v1779
        %v2220 = vpack.c.b16 %v1784, %v1780
        %v2221 = vpack.c.b16 %v1789, %v1785
        %v2222 = vpack.c.b16 %v1790, %v1786
        %v2223 = vpack.c.b16 %v1791, %v1787
        %v2224 = vpack.c.b16 %v1792, %v1788
        %v2225 = vpack.c.b16 %v1797, %v1793
        %v2226 = vpack.c.b16 %v1798, %v1794
        %v2227 = vpack.c.b16 %v1799, %v1795
        %v2228 = vpack.c.b16 %v1800, %v1796
        %v2229 = vpack.c.b16 %v1805, %v1801
        %v2230 = vpack.c.b16 %v1806, %v1802
        %v2231 = vpack.c.b16 %v1807, %v1803
        %v2232 = vpack.c.b16 %v1808, %v1804
        %v2233 = vpack.c.b16 %v1813, %v1809
        %v2234 = vpack.c.b16 %v1814, %v1810
        %v2235 = vpack.c.b16 %v1815, %v1811
        %v2236 = vpack.c.b16 %v1816, %v1812
        %v2237 = vpack.c.b16 %v1821, %v1817
        %v2238 = vpack.c.b16 %v1822, %v1818
        %v2239 = vpack.c.b16 %v1823, %v1819
        %v2240 = vpack.c.b16 %v1824, %v1820
        %v2241 = vpack.c.b16 %v1829, %v1825
        %v2242 = vpack.c.b16 %v1830, %v1826
        %v2243 = vpack.c.b16 %v1831, %v1827
        %v2244 = vpack.c.b16 %v1832, %v1828
        %v2245 = vpack.c.b16 %v1837, %v1833
        %v2246 = vpack.c.b16 %v1838, %v1834
        %v2247 = vpack.c.b16 %v1839, %v1835
        %v2248 = vpack.c.b16 %v1840, %v1836
        %v2249 = vpack.c.b16 %v1845, %v1841
        %v2250 = vpack.c.b16 %v1846, %v1842
        %v2251 = vpack.c.b16 %v1847, %v1843
        %v2252 = vpack.c.b16 %v1848, %v1844
        %v2253 = vpack.c.b16 %v1853, %v1849
        %v2254 = vpack.c.b16 %v1854, %v1850
        %v2255 = vpack.c.b16 %v1855, %v1851
        %v2256 = vpack.c.b16 %v1856, %v1852
        %v2257 = vpack.c.b16 %v1861, %v1857
        %v2258 = vpack.c.b16 %v1862, %v1858
        %v2259 = vpack.c.b16 %v1863, %v1859
        %v2260 = vpack.c.b16 %v1864, %v1860
        %v2261 = vpack.c.b16 %v1869, %v1865
        %v2262 = vpack.c.b16 %v1870, %v1866
        %v2263 = vpack.c.b16 %v1871, %v1867
        %v2264 = vpack.c.b16 %v1872, %v1868
        %v2265 = vpack.c.b16 %v1877, %v1873
        %v2266 = vpack.c.b16 %v1878, %v1874
        %v2267 = vpack.c.b16 %v1879, %v1875
        %v2268 = vpack.c.b16 %v1880, %v1876
        %v2269 = vpack.c.b16 %v1885, %v1881
        %v2270 = vpack.c.b16 %v1886, %v1882
        %v2271 = vpack.c.b16 %v1887, %v1883
        %v2272 = vpack.c.b16 %v1888, %v1884
        %v2273 = vpack.c.b16 %v1893, %v1889
        %v2274 = vpack.c.b16 %v1894, %v1890
        %v2275 = vpack.c.b16 %v1895, %v1891
        %v2276 = vpack.c.b16 %v1896, %v1892
        %v2277 = vpack.c.b16 %v1901, %v1897
        %v2278 = vpack.c.b16 %v1902, %v1898
        %v2279 = vpack.c.b16 %v1903, %v1899
        %v2280 = vpack.c.b16 %v1904, %v1900
        %v2281 = vpack.c.b16 %v1909, %v1905
        %v2282 = vpack.c.b16 %v1910, %v1906
        %v2283 = vpack.c.b16 %v1911, %v1907
        %v2284 = vpack.c.b16 %v1912, %v1908
        %v2285 = vpack.c.b16 %v1917, %v1913
        %v2286 = vpack.c.b16 %v1918, %v1914
        %v2287 = vpack.c.b16 %v1919, %v1915
        %v2288 = vpack.c.b16 %v1920, %v1916
        %v2289 = vpack.c.b16 %v1925, %v1921
        %v2290 = vpack.c.b16 %v1926, %v1922
        %v2291 = vpack.c.b16 %v1927, %v1923
        %v2292 = vpack.c.b16 %v1928, %v1924
        %v2293 = vpack.c.b16 %v1933, %v1929
        %v2294 = vpack.c.b16 %v1934, %v1930
        %v2295 = vpack.c.b16 %v1935, %v1931
        %v2296 = vpack.c.b16 %v1936, %v1932
        %v2297 = vpack.c.b16 %v1941, %v1937
        %v2298 = vpack.c.b16 %v1942, %v1938
        %v2299 = vpack.c.b16 %v1943, %v1939
        %v2300 = vpack.c.b16 %v1944, %v1940
        %v2301 = vpack.c.b16 %v1949, %v1945
        %v2302 = vpack.c.b16 %v1950, %v1946
        %v2303 = vpack.c.b16 %v1951, %v1947
        %v2304 = vpack.c.b16 %v1952, %v1948
        %v2305 = vpack.c.b16 %v1957, %v1953
        %v2306 = vpack.c.b16 %v1958, %v1954
        %v2307 = vpack.c.b16 %v1959, %v1955
        %v2308 = vpack.c.b16 %v1960, %v1956
        %v2309 = vpack.c.b16 %v1965, %v1961
        %v2310 = vpack.c.b16 %v1966, %v1962
        %v2311 = vpack.c.b16 %v1967, %v1963
        %v2312 = vpack.c.b16 %v1968, %v1964
        %v2313 = vpack.c.b16 %v1973, %v1969
        %v2314 = vpack.c.b16 %v1974, %v1970
        %v2315 = vpack.c.b16 %v1975, %v1971
        %v2316 = vpack.c.b16 %v1976, %v1972
        %v2317 = vpack.c.b16 %v1981, %v1977
        %v2318 = vpack.c.b16 %v1982, %v1978
        %v2319 = vpack.c.b16 %v1983, %v1979
        %v2320 = vpack.c.b16 %v1984, %v1980
        %v2321 = vpack.c.b16 %v1989, %v1985
        %v2322 = vpack.c.b16 %v1990, %v1986
        %v2323 = vpack.c.b16 %v1991, %v1987
        %v2324 = vpack.c.b16 %v1992, %v1988
        %v2325 = vpack.c.b16 %v1997, %v1993
        %v2326 = vpack.c.b16 %v1998, %v1994
        %v2327 = vpack.c.b16 %v1999, %v1995
        %v2328 = vpack.c.b16 %v2000, %v1996
        %v2329 = vpack.c.b16 %v2005, %v2001
        %v2330 = vpack.c.b16 %v2006, %v2002
        %v2331 = vpack.c.b16 %v2007, %v2003
        %v2332 = vpack.c.b16 %v2008, %v2004
        %v2333 = vpack.c.b16 %v2013, %v2009
        %v2334 = vpack.c.b16 %v2014, %v2010
        %v2335 = vpack.c.b16 %v2015, %v2011
        %v2336 = vpack.c.b16 %v2016, %v2012
        %v2337 = vpack.c.b16 %v2021, %v2017
        %v2338 = vpack.c.b16 %v2022, %v2018
        %v2339 = vpack.c.b16 %v2023, %v2019
        %v2340 = vpack.c.b16 %v2024, %v2020
        %v2341 = vpack.c.b16 %v2029, %v2025
        %v2342 = vpack.c.b16 %v2030, %v2026
        %v2343 = vpack.c.b16 %v2031, %v2027
        %v2344 = vpack.c.b16 %v2032, %v2028
        %v2345 = vpack.c.b16 %v2037, %v2033
        %v2346 = vpack.c.b16 %v2038, %v2034
        %v2347 = vpack.c.b16 %v2039, %v2035
        %v2348 = vpack.c.b16 %v2040, %v2036
        %v2349 = vpack.c.b16 %v2045, %v2041
        %v2350 = vpack.c.b16 %v2046, %v2042
        %v2351 = vpack.c.b16 %v2047, %v2043
        %v2352 = vpack.c.b16 %v2048, %v2044
        %v2353 = vpack.c.b16 %v2053, %v2049
        %v2354 = vpack.c.b16 %v2054, %v2050
        %v2355 = vpack.c.b16 %v2055, %v2051
        %v2356 = vpack.c.b16 %v2056, %v2052
        %v2357 = vpack.c.b16 %v2061, %v2057
        %v2358 = vpack.c.b16 %v2062, %v2058
        %v2359 = vpack.c.b16 %v2063, %v2059
        %v2360 = vpack.c.b16 %v2064, %v2060
        %v2361 = vpack.c.b16 %v2069, %v2065
        %v2362 = vpack.c.b16 %v2070, %v2066
        %v2363 = vpack.c.b16 %v2071, %v2067
        %v2364 = vpack.c.b16 %v2072, %v2068
        %v2365 = vpack.c.b16 %v2077, %v2073
        %v2366 = vpack.c.b16 %v2078, %v2074
        %v2367 = vpack.c.b16 %v2079, %v2075
        %v2368 = vpack.c.b16 %v2080, %v2076
        %v2369 = vpack.c.b16 %v2085, %v2081
        %v2370 = vpack.c.b16 %v2086, %v2082
        %v2371 = vpack.c.b16 %v2087, %v2083
        %v2372 = vpack.c.b16 %v2088, %v2084
        %v2373 = vpack.c.b16 %v2093, %v2089
        %v2374 = vpack.c.b16 %v2094, %v2090
        %v2375 = vpack.c.b16 %v2095, %v2091
        %v2376 = vpack.c.b16 %v2096, %v2092
        %v2377 = vpack.c.b16 %v2101, %v2097
        %v2378 = vpack.c.b16 %v2102, %v2098
        %v2379 = vpack.c.b16 %v2103, %v2099
        %v2380 = vpack.c.b16 %v2104, %v2100
        %v2381 = vpack.c.b16 %v2109, %v2105
        %v2382 = vpack.c.b16 %v2110, %v2106
        %v2383 = vpack.c.b16 %v2111, %v2107
        %v2384 = vpack.c.b16 %v2112, %v2108
        %v2385 = vpack.c.b16 %v2117, %v2113
        %v2386 = vpack.c.b16 %v2118, %v2114
        %v2387 = vpack.c.b16 %v2119, %v2115
        %v2388 = vpack.c.b16 %v2120, %v2116
        %v2389 = vpack.c.b16 %v2125, %v2121
        %v2390 = vpack.c.b16 %v2126, %v2122
        %v2391 = vpack.c.b16 %v2127, %v2123
        %v2392 = vpack.c.b16 %v2128, %v2124
        %v2393 = vpack.c.b16 %v2133, %v2129
        %v2394 = vpack.c.b16 %v2134, %v2130
        %v2395 = vpack.c.b16 %v2135, %v2131
        %v2396 = vpack.c.b16 %v2136, %v2132
        %v2397 = vpack.c.b16 %v2141, %v2137
        %v2398 = vpack.c.b16 %v2142, %v2138
        %v2399 = vpack.c.b16 %v2143, %v2139
        %v2400 = vpack.c.b16 %v2144, %v2140
        %2657 = vmatprep.subr.bf16.mxu0 %v2174
        %2658 = vmatpush1.bf16.msra.mxu0 %v2173
        %2659 = vmatprep.subr.bf16.mxu0 %v2170
        %2660 = vmatpush1.bf16.msra.mxu0 %v2169
        %2661 = vmatprep.subr.bf16.mxu0 %v2166
        %2662 = vmatpush1.bf16.msra.mxu0 %v2165
        %2663 = vmatprep.subr.bf16.mxu0 %v2162
        %2664 = vmatpush1.bf16.msra.mxu0 %v2161
        %2665 = vmatprep.subr.bf16.mxu0 %v2158
        %2666 = vmatpush1.bf16.msra.mxu0 %v2157
        %2667 = vmatprep.subr.bf16.mxu0 %v2154
        %2668 = vmatpush1.bf16.msra.mxu0 %v2153
        %2669 = vmatprep.subr.bf16.mxu0 %v2150
        %2670 = vmatpush1.bf16.msra.mxu0 %v2149
        %2671 = vmatprep.subr.bf16.mxu0 %v2146
        %2672 = vmatpush1.bf16.msra.mxu0 %v2145
        %2673 = vmatprep.subr.bf16.mxu0 %v2206
        %2674 = vmatpush2.bf16.msra.mxu0 %v2205
        %2675 = vmatprep.subr.bf16.mxu0 %v2202
        %2676 = vmatpush2.bf16.msra.mxu0 %v2201
        %2677 = vmatprep.subr.bf16.mxu0 %v2198
        %2678 = vmatpush2.bf16.msra.mxu0 %v2197
        %2679 = vmatprep.subr.bf16.mxu0 %v2194
        %2680 = vmatpush2.bf16.msra.mxu0 %v2193
        %2681 = vmatprep.subr.bf16.mxu0 %v2190
        %2682 = vmatpush2.bf16.msra.mxu0 %v2189
        %2683 = vmatprep.subr.bf16.mxu0 %v2186
        %2684 = vmatpush2.bf16.msra.mxu0 %v2185
        %2685 = vmatprep.subr.bf16.mxu0 %v2182
        %2686 = vmatpush2.bf16.msra.mxu0 %v2181
        %2687 = vmatprep.subr.bf16.mxu0 %v2178
        %2688 = vmatpush2.bf16.msra.mxu0 %v2177
        %2689 = vmatprep.mubr.bf16.mxu0 %v1122
        %2690 = vmatmul.mubr.bf16.gmra.mxu0 %v1121
        %v2691 = vpop.f32.mrf.mxu0
        %v2692 = vadd.f32 %v720, %v2691
        %v2693 = vpop.f32.mrf.mxu0
        %v2694 = vadd.f32 %v724, %v2693
        %v2695 = vpop.f32.mrf.mxu0
        %v2696 = vadd.f32 %v720, %v2695
        %v2697 = vpop.f32.mrf.mxu0
        %v2698 = vadd.f32 %v724, %v2697
        %2699 = vmatprep.mubr.bf16.mxu0 %v1130
        %2700 = vmatmul.mubr.bf16.gmra.mxu0 %v1129
        %v2701 = vpop.f32.mrf.mxu0
        %v2702 = vadd.f32 %v720, %v2701
        %v2703 = vpop.f32.mrf.mxu0
        %v2704 = vadd.f32 %v724, %v2703
        %v2705 = vpop.f32.mrf.mxu0
        %v2706 = vadd.f32 %v720, %v2705
        %v2707 = vpop.f32.mrf.mxu0
        %v2708 = vadd.f32 %v724, %v2707
        %2709 = vmatprep.mubr.bf16.mxu0 %v1138
        %2710 = vmatmul.mubr.bf16.gmra.mxu0 %v1137
        %v2711 = vpop.f32.mrf.mxu0
        %v2712 = vadd.f32 %v720, %v2711
        %v2713 = vpop.f32.mrf.mxu0
        %v2714 = vadd.f32 %v724, %v2713
        %v2715 = vpop.f32.mrf.mxu0
        %v2716 = vadd.f32 %v720, %v2715
        %v2717 = vpop.f32.mrf.mxu0
        %v2718 = vadd.f32 %v724, %v2717
        %2719 = vmatprep.mubr.bf16.mxu0 %v1146
        %2720 = vmatmul.mubr.bf16.gmra.mxu0 %v1145
        %v2721 = vpop.f32.mrf.mxu0
        %v2722 = vadd.f32 %v720, %v2721
        %v2723 = vpop.f32.mrf.mxu0
        %v2724 = vadd.f32 %v724, %v2723
        %v2725 = vpop.f32.mrf.mxu0
        %v2726 = vadd.f32 %v720, %v2725
        %v2727 = vpop.f32.mrf.mxu0
        %v2728 = vadd.f32 %v724, %v2727
        %2729 = vmatprep.mubr.bf16.mxu0 %v1154
        %2730 = vmatmul.mubr.bf16.gmra.mxu0 %v1153
        %v2731 = vpop.f32.mrf.mxu0
        %v2732 = vadd.f32 %v720, %v2731
        %v2733 = vpop.f32.mrf.mxu0
        %v2734 = vadd.f32 %v724, %v2733
        %v2735 = vpop.f32.mrf.mxu0
        %v2736 = vadd.f32 %v720, %v2735
        %v2737 = vpop.f32.mrf.mxu0
        %v2738 = vadd.f32 %v724, %v2737
        %2739 = vmatprep.mubr.bf16.mxu0 %v1162
        %2740 = vmatmul.mubr.bf16.gmra.mxu0 %v1161
        %v2741 = vpop.f32.mrf.mxu0
        %v2742 = vadd.f32 %v720, %v2741
        %v2743 = vpop.f32.mrf.mxu0
        %v2744 = vadd.f32 %v724, %v2743
        %v2745 = vpop.f32.mrf.mxu0
        %v2746 = vadd.f32 %v720, %v2745
        %v2747 = vpop.f32.mrf.mxu0
        %v2748 = vadd.f32 %v724, %v2747
        %2749 = vmatprep.mubr.bf16.mxu0 %v1170
        %2750 = vmatmul.mubr.bf16.gmra.mxu0 %v1169
        %v2751 = vpop.f32.mrf.mxu0
        %v2752 = vadd.f32 %v720, %v2751
        %v2753 = vpop.f32.mrf.mxu0
        %v2754 = vadd.f32 %v724, %v2753
        %v2755 = vpop.f32.mrf.mxu0
        %v2756 = vadd.f32 %v720, %v2755
        %v2757 = vpop.f32.mrf.mxu0
        %v2758 = vadd.f32 %v724, %v2757
        %2759 = vmatprep.mubr.bf16.mxu0 %v1178
        %2760 = vmatmul.mubr.bf16.gmra.mxu0 %v1177
        %v2761 = vpop.f32.mrf.mxu0
        %v2762 = vadd.f32 %v720, %v2761
        %v2763 = vpop.f32.mrf.mxu0
        %v2764 = vadd.f32 %v724, %v2763
        %v2765 = vpop.f32.mrf.mxu0
        %v2766 = vadd.f32 %v720, %v2765
        %v2767 = vpop.f32.mrf.mxu0
        %v2768 = vadd.f32 %v724, %v2767
        %2769 = vmatprep.mubr.bf16.mxu0 %v1186
        %2770 = vmatmul.mubr.bf16.gmra.mxu0 %v1185
        %v2771 = vpop.f32.mrf.mxu0
        %v2772 = vadd.f32 %v720, %v2771
        %v2773 = vpop.f32.mrf.mxu0
        %v2774 = vadd.f32 %v724, %v2773
        %v2775 = vpop.f32.mrf.mxu0
        %v2776 = vadd.f32 %v720, %v2775
        %v2777 = vpop.f32.mrf.mxu0
        %v2778 = vadd.f32 %v724, %v2777
        %2779 = vmatprep.mubr.bf16.mxu0 %v1194
        %2780 = vmatmul.mubr.bf16.gmra.mxu0 %v1193
        %v2781 = vpop.f32.mrf.mxu0
        %v2782 = vadd.f32 %v720, %v2781
        %v2783 = vpop.f32.mrf.mxu0
        %v2784 = vadd.f32 %v724, %v2783
        %v2785 = vpop.f32.mrf.mxu0
        %v2786 = vadd.f32 %v720, %v2785
        %v2787 = vpop.f32.mrf.mxu0
        %v2788 = vadd.f32 %v724, %v2787
        %2789 = vmatprep.mubr.bf16.mxu0 %v1202
        %2790 = vmatmul.mubr.bf16.gmra.mxu0 %v1201
        %v2791 = vpop.f32.mrf.mxu0
        %v2792 = vadd.f32 %v720, %v2791
        %v2793 = vpop.f32.mrf.mxu0
        %v2794 = vadd.f32 %v724, %v2793
        %v2795 = vpop.f32.mrf.mxu0
        %v2796 = vadd.f32 %v720, %v2795
        %v2797 = vpop.f32.mrf.mxu0
        %v2798 = vadd.f32 %v724, %v2797
        %2799 = vmatprep.mubr.bf16.mxu0 %v1210
        %2800 = vmatmul.mubr.bf16.gmra.mxu0 %v1209
        %v2801 = vpop.f32.mrf.mxu0
        %v2802 = vadd.f32 %v720, %v2801
        %v2803 = vpop.f32.mrf.mxu0
        %v2804 = vadd.f32 %v724, %v2803
        %v2805 = vpop.f32.mrf.mxu0
        %v2806 = vadd.f32 %v720, %v2805
        %v2807 = vpop.f32.mrf.mxu0
        %v2808 = vadd.f32 %v724, %v2807
        %2809 = vmatprep.mubr.bf16.mxu0 %v1218
        %2810 = vmatmul.mubr.bf16.gmra.mxu0 %v1217
        %v2811 = vpop.f32.mrf.mxu0
        %v2812 = vadd.f32 %v720, %v2811
        %v2813 = vpop.f32.mrf.mxu0
        %v2814 = vadd.f32 %v724, %v2813
        %v2815 = vpop.f32.mrf.mxu0
        %v2816 = vadd.f32 %v720, %v2815
        %v2817 = vpop.f32.mrf.mxu0
        %v2818 = vadd.f32 %v724, %v2817
        %2819 = vmatprep.mubr.bf16.mxu0 %v1226
        %2820 = vmatmul.mubr.bf16.gmra.mxu0 %v1225
        %v2821 = vpop.f32.mrf.mxu0
        %v2822 = vadd.f32 %v720, %v2821
        %v2823 = vpop.f32.mrf.mxu0
        %v2824 = vadd.f32 %v724, %v2823
        %v2825 = vpop.f32.mrf.mxu0
        %v2826 = vadd.f32 %v720, %v2825
        %v2827 = vpop.f32.mrf.mxu0
        %v2828 = vadd.f32 %v724, %v2827
        %2829 = vmatprep.mubr.bf16.mxu0 %v1234
        %2830 = vmatmul.mubr.bf16.gmra.mxu0 %v1233
        %v2831 = vpop.f32.mrf.mxu0
        %v2832 = vadd.f32 %v720, %v2831
        %v2833 = vpop.f32.mrf.mxu0
        %v2834 = vadd.f32 %v724, %v2833
        %v2835 = vpop.f32.mrf.mxu0
        %v2836 = vadd.f32 %v720, %v2835
        %v2837 = vpop.f32.mrf.mxu0
        %v2838 = vadd.f32 %v724, %v2837
        %2839 = vmatprep.mubr.bf16.mxu0 %v1242
        %2840 = vmatmul.mubr.bf16.gmra.mxu0 %v1241
        %v2841 = vpop.f32.mrf.mxu0
        %v2842 = vadd.f32 %v720, %v2841
        %v2843 = vpop.f32.mrf.mxu0
        %v2844 = vadd.f32 %v724, %v2843
        %v2845 = vpop.f32.mrf.mxu0
        %v2846 = vadd.f32 %v720, %v2845
        %v2847 = vpop.f32.mrf.mxu0
        %v2848 = vadd.f32 %v724, %v2847
        %2849 = vdwg.mxu0
        %2850 = vmatprep.subr.bf16.mxu0 %v2238
        %2851 = vmatpush1.bf16.msra.mxu0 %v2237
        %2852 = vmatprep.subr.bf16.mxu0 %v2234
        %2853 = vmatpush1.bf16.msra.mxu0 %v2233
        %2854 = vmatprep.subr.bf16.mxu0 %v2230
        %2855 = vmatpush1.bf16.msra.mxu0 %v2229
        %2856 = vmatprep.subr.bf16.mxu0 %v2226
        %2857 = vmatpush1.bf16.msra.mxu0 %v2225
        %2858 = vmatprep.subr.bf16.mxu0 %v2222
        %2859 = vmatpush1.bf16.msra.mxu0 %v2221
        %2860 = vmatprep.subr.bf16.mxu0 %v2218
        %2861 = vmatpush1.bf16.msra.mxu0 %v2217
        %2862 = vmatprep.subr.bf16.mxu0 %v2214
        %2863 = vmatpush1.bf16.msra.mxu0 %v2213
        %2864 = vmatprep.subr.bf16.mxu0 %v2210
        %2865 = vmatpush1.bf16.msra.mxu0 %v2209
        %2866 = vmatprep.subr.bf16.mxu0 %v2270
        %2867 = vmatpush2.bf16.msra.mxu0 %v2269
        %2868 = vmatprep.subr.bf16.mxu0 %v2266
        %2869 = vmatpush2.bf16.msra.mxu0 %v2265
        %2870 = vmatprep.subr.bf16.mxu0 %v2262
        %2871 = vmatpush2.bf16.msra.mxu0 %v2261
        %2872 = vmatprep.subr.bf16.mxu0 %v2258
        %2873 = vmatpush2.bf16.msra.mxu0 %v2257
        %2874 = vmatprep.subr.bf16.mxu0 %v2254
        %2875 = vmatpush2.bf16.msra.mxu0 %v2253
        %2876 = vmatprep.subr.bf16.mxu0 %v2250
        %2877 = vmatpush2.bf16.msra.mxu0 %v2249
        %2878 = vmatprep.subr.bf16.mxu0 %v2246
        %2879 = vmatpush2.bf16.msra.mxu0 %v2245
        %2880 = vmatprep.subr.bf16.mxu0 %v2242
        %2881 = vmatpush2.bf16.msra.mxu0 %v2241
        %2882 = vmatprep.mubr.bf16.mxu0 %v1124
        %2883 = vmatmul.mubr.bf16.gmra.mxu0 %v1123
        %v2884 = vpop.f32.mrf.mxu0
        %v2885 = vadd.f32 %v2692, %v2884
        %v2886 = vpop.f32.mrf.mxu0
        %v2887 = vadd.f32 %v2694, %v2886
        %v2888 = vpop.f32.mrf.mxu0
        %v2889 = vadd.f32 %v2696, %v2888
        %v2890 = vpop.f32.mrf.mxu0
        %v2891 = vadd.f32 %v2698, %v2890
        %2892 = vmatprep.mubr.bf16.mxu0 %v1132
        %2893 = vmatmul.mubr.bf16.gmra.mxu0 %v1131
        %v2894 = vpop.f32.mrf.mxu0
        %v2895 = vadd.f32 %v2702, %v2894
        %v2896 = vpop.f32.mrf.mxu0
        %v2897 = vadd.f32 %v2704, %v2896
        %v2898 = vpop.f32.mrf.mxu0
        %v2899 = vadd.f32 %v2706, %v2898
        %v2900 = vpop.f32.mrf.mxu0
        %v2901 = vadd.f32 %v2708, %v2900
        %2902 = vmatprep.mubr.bf16.mxu0 %v1140
        %2903 = vmatmul.mubr.bf16.gmra.mxu0 %v1139
        %v2904 = vpop.f32.mrf.mxu0
        %v2905 = vadd.f32 %v2712, %v2904
        %v2906 = vpop.f32.mrf.mxu0
        %v2907 = vadd.f32 %v2714, %v2906
        %v2908 = vpop.f32.mrf.mxu0
        %v2909 = vadd.f32 %v2716, %v2908
        %v2910 = vpop.f32.mrf.mxu0
        %v2911 = vadd.f32 %v2718, %v2910
        %2912 = vmatprep.mubr.bf16.mxu0 %v1148
        %2913 = vmatmul.mubr.bf16.gmra.mxu0 %v1147
        %v2914 = vpop.f32.mrf.mxu0
        %v2915 = vadd.f32 %v2722, %v2914
        %v2916 = vpop.f32.mrf.mxu0
        %v2917 = vadd.f32 %v2724, %v2916
        %v2918 = vpop.f32.mrf.mxu0
        %v2919 = vadd.f32 %v2726, %v2918
        %v2920 = vpop.f32.mrf.mxu0
        %v2921 = vadd.f32 %v2728, %v2920
        %2922 = vmatprep.mubr.bf16.mxu0 %v1156
        %2923 = vmatmul.mubr.bf16.gmra.mxu0 %v1155
        %v2924 = vpop.f32.mrf.mxu0
        %v2925 = vadd.f32 %v2732, %v2924
        %v2926 = vpop.f32.mrf.mxu0
        %v2927 = vadd.f32 %v2734, %v2926
        %v2928 = vpop.f32.mrf.mxu0
        %v2929 = vadd.f32 %v2736, %v2928
        %v2930 = vpop.f32.mrf.mxu0
        %v2931 = vadd.f32 %v2738, %v2930
        %2932 = vmatprep.mubr.bf16.mxu0 %v1164
        %2933 = vmatmul.mubr.bf16.gmra.mxu0 %v1163
        %v2934 = vpop.f32.mrf.mxu0
        %v2935 = vadd.f32 %v2742, %v2934
        %v2936 = vpop.f32.mrf.mxu0
        %v2937 = vadd.f32 %v2744, %v2936
        %v2938 = vpop.f32.mrf.mxu0
        %v2939 = vadd.f32 %v2746, %v2938
        %v2940 = vpop.f32.mrf.mxu0
        %v2941 = vadd.f32 %v2748, %v2940
        %2942 = vmatprep.mubr.bf16.mxu0 %v1172
        %2943 = vmatmul.mubr.bf16.gmra.mxu0 %v1171
        %v2944 = vpop.f32.mrf.mxu0
        %v2945 = vadd.f32 %v2752, %v2944
        %v2946 = vpop.f32.mrf.mxu0
        %v2947 = vadd.f32 %v2754, %v2946
        %v2948 = vpop.f32.mrf.mxu0
        %v2949 = vadd.f32 %v2756, %v2948
        %v2950 = vpop.f32.mrf.mxu0
        %v2951 = vadd.f32 %v2758, %v2950
        %2952 = vmatprep.mubr.bf16.mxu0 %v1180
        %2953 = vmatmul.mubr.bf16.gmra.mxu0 %v1179
        %v2954 = vpop.f32.mrf.mxu0
        %v2955 = vadd.f32 %v2762, %v2954
        %v2956 = vpop.f32.mrf.mxu0
        %v2957 = vadd.f32 %v2764, %v2956
        %v2958 = vpop.f32.mrf.mxu0
        %v2959 = vadd.f32 %v2766, %v2958
        %v2960 = vpop.f32.mrf.mxu0
        %v2961 = vadd.f32 %v2768, %v2960
        %2962 = vmatprep.mubr.bf16.mxu0 %v1188
        %2963 = vmatmul.mubr.bf16.gmra.mxu0 %v1187
        %v2964 = vpop.f32.mrf.mxu0
        %v2965 = vadd.f32 %v2772, %v2964
        %v2966 = vpop.f32.mrf.mxu0
        %v2967 = vadd.f32 %v2774, %v2966
        %v2968 = vpop.f32.mrf.mxu0
        %v2969 = vadd.f32 %v2776, %v2968
        %v2970 = vpop.f32.mrf.mxu0
        %v2971 = vadd.f32 %v2778, %v2970
        %2972 = vmatprep.mubr.bf16.mxu0 %v1196
        %2973 = vmatmul.mubr.bf16.gmra.mxu0 %v1195
        %v2974 = vpop.f32.mrf.mxu0
        %v2975 = vadd.f32 %v2782, %v2974
        %v2976 = vpop.f32.mrf.mxu0
        %v2977 = vadd.f32 %v2784, %v2976
        %v2978 = vpop.f32.mrf.mxu0
        %v2979 = vadd.f32 %v2786, %v2978
        %v2980 = vpop.f32.mrf.mxu0
        %v2981 = vadd.f32 %v2788, %v2980
        %2982 = vmatprep.mubr.bf16.mxu0 %v1204
        %2983 = vmatmul.mubr.bf16.gmra.mxu0 %v1203
        %v2984 = vpop.f32.mrf.mxu0
        %v2985 = vadd.f32 %v2792, %v2984
        %v2986 = vpop.f32.mrf.mxu0
        %v2987 = vadd.f32 %v2794, %v2986
        %v2988 = vpop.f32.mrf.mxu0
        %v2989 = vadd.f32 %v2796, %v2988
        %v2990 = vpop.f32.mrf.mxu0
        %v2991 = vadd.f32 %v2798, %v2990
        %2992 = vmatprep.mubr.bf16.mxu0 %v1212
        %2993 = vmatmul.mubr.bf16.gmra.mxu0 %v1211
        %v2994 = vpop.f32.mrf.mxu0
        %v2995 = vadd.f32 %v2802, %v2994
        %v2996 = vpop.f32.mrf.mxu0
        %v2997 = vadd.f32 %v2804, %v2996
        %v2998 = vpop.f32.mrf.mxu0
        %v2999 = vadd.f32 %v2806, %v2998
        %v3000 = vpop.f32.mrf.mxu0
        %v3001 = vadd.f32 %v2808, %v3000
        %3002 = vmatprep.mubr.bf16.mxu0 %v1220
        %3003 = vmatmul.mubr.bf16.gmra.mxu0 %v1219
        %v3004 = vpop.f32.mrf.mxu0
        %v3005 = vadd.f32 %v2812, %v3004
        %v3006 = vpop.f32.mrf.mxu0
        %v3007 = vadd.f32 %v2814, %v3006
        %v3008 = vpop.f32.mrf.mxu0
        %v3009 = vadd.f32 %v2816, %v3008
        %v3010 = vpop.f32.mrf.mxu0
        %v3011 = vadd.f32 %v2818, %v3010
        %3012 = vmatprep.mubr.bf16.mxu0 %v1228
        %3013 = vmatmul.mubr.bf16.gmra.mxu0 %v1227
        %v3014 = vpop.f32.mrf.mxu0
        %v3015 = vadd.f32 %v2822, %v3014
        %v3016 = vpop.f32.mrf.mxu0
        %v3017 = vadd.f32 %v2824, %v3016
        %v3018 = vpop.f32.mrf.mxu0
        %v3019 = vadd.f32 %v2826, %v3018
        %v3020 = vpop.f32.mrf.mxu0
        %v3021 = vadd.f32 %v2828, %v3020
        %3022 = vmatprep.mubr.bf16.mxu0 %v1236
        %3023 = vmatmul.mubr.bf16.gmra.mxu0 %v1235
        %v3024 = vpop.f32.mrf.mxu0
        %v3025 = vadd.f32 %v2832, %v3024
        %v3026 = vpop.f32.mrf.mxu0
        %v3027 = vadd.f32 %v2834, %v3026
        %v3028 = vpop.f32.mrf.mxu0
        %v3029 = vadd.f32 %v2836, %v3028
        %v3030 = vpop.f32.mrf.mxu0
        %v3031 = vadd.f32 %v2838, %v3030
        %3032 = vmatprep.mubr.bf16.mxu0 %v1244
        %3033 = vmatmul.mubr.bf16.gmra.mxu0 %v1243
        %v3034 = vpop.f32.mrf.mxu0
        %v3035 = vadd.f32 %v2842, %v3034
        %v3036 = vpop.f32.mrf.mxu0
        %v3037 = vadd.f32 %v2844, %v3036
        %v3038 = vpop.f32.mrf.mxu0
        %v3039 = vadd.f32 %v2846, %v3038
        %v3040 = vpop.f32.mrf.mxu0
        %v3041 = vadd.f32 %v2848, %v3040
        %3042 = vdwg.mxu0
        %3043 = vmatprep.subr.bf16.mxu0 %v2302
        %3044 = vmatpush1.bf16.msra.mxu0 %v2301
        %3045 = vmatprep.subr.bf16.mxu0 %v2298
        %3046 = vmatpush1.bf16.msra.mxu0 %v2297
        %3047 = vmatprep.subr.bf16.mxu0 %v2294
        %3048 = vmatpush1.bf16.msra.mxu0 %v2293
        %3049 = vmatprep.subr.bf16.mxu0 %v2290
        %3050 = vmatpush1.bf16.msra.mxu0 %v2289
        %3051 = vmatprep.subr.bf16.mxu0 %v2286
        %3052 = vmatpush1.bf16.msra.mxu0 %v2285
        %3053 = vmatprep.subr.bf16.mxu0 %v2282
        %3054 = vmatpush1.bf16.msra.mxu0 %v2281
        %3055 = vmatprep.subr.bf16.mxu0 %v2278
        %3056 = vmatpush1.bf16.msra.mxu0 %v2277
        %3057 = vmatprep.subr.bf16.mxu0 %v2274
        %3058 = vmatpush1.bf16.msra.mxu0 %v2273
        %3059 = vmatprep.subr.bf16.mxu0 %v2334
        %3060 = vmatpush2.bf16.msra.mxu0 %v2333
        %3061 = vmatprep.subr.bf16.mxu0 %v2330
        %3062 = vmatpush2.bf16.msra.mxu0 %v2329
        %3063 = vmatprep.subr.bf16.mxu0 %v2326
        %3064 = vmatpush2.bf16.msra.mxu0 %v2325
        %3065 = vmatprep.subr.bf16.mxu0 %v2322
        %3066 = vmatpush2.bf16.msra.mxu0 %v2321
        %3067 = vmatprep.subr.bf16.mxu0 %v2318
        %3068 = vmatpush2.bf16.msra.mxu0 %v2317
        %3069 = vmatprep.subr.bf16.mxu0 %v2314
        %3070 = vmatpush2.bf16.msra.mxu0 %v2313
        %3071 = vmatprep.subr.bf16.mxu0 %v2310
        %3072 = vmatpush2.bf16.msra.mxu0 %v2309
        %3073 = vmatprep.subr.bf16.mxu0 %v2306
        %3074 = vmatpush2.bf16.msra.mxu0 %v2305
        %3075 = vmatprep.mubr.bf16.mxu0 %v1126
        %3076 = vmatmul.mubr.bf16.gmra.mxu0 %v1125
        %v3077 = vpop.f32.mrf.mxu0
        %v3078 = vadd.f32 %v2885, %v3077
        %v3079 = vpop.f32.mrf.mxu0
        %v3080 = vadd.f32 %v2887, %v3079
        %v3081 = vpop.f32.mrf.mxu0
        %v3082 = vadd.f32 %v2889, %v3081
        %v3083 = vpop.f32.mrf.mxu0
        %v3084 = vadd.f32 %v2891, %v3083
        %3085 = vmatprep.mubr.bf16.mxu0 %v1134
        %3086 = vmatmul.mubr.bf16.gmra.mxu0 %v1133
        %v3087 = vpop.f32.mrf.mxu0
        %v3088 = vadd.f32 %v2895, %v3087
        %v3089 = vpop.f32.mrf.mxu0
        %v3090 = vadd.f32 %v2897, %v3089
        %v3091 = vpop.f32.mrf.mxu0
        %v3092 = vadd.f32 %v2899, %v3091
        %v3093 = vpop.f32.mrf.mxu0
        %v3094 = vadd.f32 %v2901, %v3093
        %3095 = vmatprep.mubr.bf16.mxu0 %v1142
        %3096 = vmatmul.mubr.bf16.gmra.mxu0 %v1141
        %v3097 = vpop.f32.mrf.mxu0
        %v3098 = vadd.f32 %v2905, %v3097
        %v3099 = vpop.f32.mrf.mxu0
        %v3100 = vadd.f32 %v2907, %v3099
        %v3101 = vpop.f32.mrf.mxu0
        %v3102 = vadd.f32 %v2909, %v3101
        %v3103 = vpop.f32.mrf.mxu0
        %v3104 = vadd.f32 %v2911, %v3103
        %3105 = vmatprep.mubr.bf16.mxu0 %v1150
        %3106 = vmatmul.mubr.bf16.gmra.mxu0 %v1149
        %v3107 = vpop.f32.mrf.mxu0
        %v3108 = vadd.f32 %v2915, %v3107
        %v3109 = vpop.f32.mrf.mxu0
        %v3110 = vadd.f32 %v2917, %v3109
        %v3111 = vpop.f32.mrf.mxu0
        %v3112 = vadd.f32 %v2919, %v3111
        %v3113 = vpop.f32.mrf.mxu0
        %v3114 = vadd.f32 %v2921, %v3113
        %3115 = vmatprep.mubr.bf16.mxu0 %v1158
        %3116 = vmatmul.mubr.bf16.gmra.mxu0 %v1157
        %v3117 = vpop.f32.mrf.mxu0
        %v3118 = vadd.f32 %v2925, %v3117
        %v3119 = vpop.f32.mrf.mxu0
        %v3120 = vadd.f32 %v2927, %v3119
        %v3121 = vpop.f32.mrf.mxu0
        %v3122 = vadd.f32 %v2929, %v3121
        %v3123 = vpop.f32.mrf.mxu0
        %v3124 = vadd.f32 %v2931, %v3123
        %3125 = vmatprep.mubr.bf16.mxu0 %v1166
        %3126 = vmatmul.mubr.bf16.gmra.mxu0 %v1165
        %v3127 = vpop.f32.mrf.mxu0
        %v3128 = vadd.f32 %v2935, %v3127
        %v3129 = vpop.f32.mrf.mxu0
        %v3130 = vadd.f32 %v2937, %v3129
        %v3131 = vpop.f32.mrf.mxu0
        %v3132 = vadd.f32 %v2939, %v3131
        %v3133 = vpop.f32.mrf.mxu0
        %v3134 = vadd.f32 %v2941, %v3133
        %3135 = vmatprep.mubr.bf16.mxu0 %v1174
        %3136 = vmatmul.mubr.bf16.gmra.mxu0 %v1173
        %v3137 = vpop.f32.mrf.mxu0
        %v3138 = vadd.f32 %v2945, %v3137
        %v3139 = vpop.f32.mrf.mxu0
        %v3140 = vadd.f32 %v2947, %v3139
        %v3141 = vpop.f32.mrf.mxu0
        %v3142 = vadd.f32 %v2949, %v3141
        %v3143 = vpop.f32.mrf.mxu0
        %v3144 = vadd.f32 %v2951, %v3143
        %3145 = vmatprep.mubr.bf16.mxu0 %v1182
        %3146 = vmatmul.mubr.bf16.gmra.mxu0 %v1181
        %v3147 = vpop.f32.mrf.mxu0
        %v3148 = vadd.f32 %v2955, %v3147
        %v3149 = vpop.f32.mrf.mxu0
        %v3150 = vadd.f32 %v2957, %v3149
        %v3151 = vpop.f32.mrf.mxu0
        %v3152 = vadd.f32 %v2959, %v3151
        %v3153 = vpop.f32.mrf.mxu0
        %v3154 = vadd.f32 %v2961, %v3153
        %3155 = vmatprep.mubr.bf16.mxu0 %v1190
        %3156 = vmatmul.mubr.bf16.gmra.mxu0 %v1189
        %v3157 = vpop.f32.mrf.mxu0
        %v3158 = vadd.f32 %v2965, %v3157
        %v3159 = vpop.f32.mrf.mxu0
        %v3160 = vadd.f32 %v2967, %v3159
        %v3161 = vpop.f32.mrf.mxu0
        %v3162 = vadd.f32 %v2969, %v3161
        %v3163 = vpop.f32.mrf.mxu0
        %v3164 = vadd.f32 %v2971, %v3163
        %3165 = vmatprep.mubr.bf16.mxu0 %v1198
        %3166 = vmatmul.mubr.bf16.gmra.mxu0 %v1197
        %v3167 = vpop.f32.mrf.mxu0
        %v3168 = vadd.f32 %v2975, %v3167
        %v3169 = vpop.f32.mrf.mxu0
        %v3170 = vadd.f32 %v2977, %v3169
        %v3171 = vpop.f32.mrf.mxu0
        %v3172 = vadd.f32 %v2979, %v3171
        %v3173 = vpop.f32.mrf.mxu0
        %v3174 = vadd.f32 %v2981, %v3173
        %3175 = vmatprep.mubr.bf16.mxu0 %v1206
        %3176 = vmatmul.mubr.bf16.gmra.mxu0 %v1205
        %v3177 = vpop.f32.mrf.mxu0
        %v3178 = vadd.f32 %v2985, %v3177
        %v3179 = vpop.f32.mrf.mxu0
        %v3180 = vadd.f32 %v2987, %v3179
        %v3181 = vpop.f32.mrf.mxu0
        %v3182 = vadd.f32 %v2989, %v3181
        %v3183 = vpop.f32.mrf.mxu0
        %v3184 = vadd.f32 %v2991, %v3183
        %3185 = vmatprep.mubr.bf16.mxu0 %v1214
        %3186 = vmatmul.mubr.bf16.gmra.mxu0 %v1213
        %v3187 = vpop.f32.mrf.mxu0
        %v3188 = vadd.f32 %v2995, %v3187
        %v3189 = vpop.f32.mrf.mxu0
        %v3190 = vadd.f32 %v2997, %v3189
        %v3191 = vpop.f32.mrf.mxu0
        %v3192 = vadd.f32 %v2999, %v3191
        %v3193 = vpop.f32.mrf.mxu0
        %v3194 = vadd.f32 %v3001, %v3193
        %3195 = vmatprep.mubr.bf16.mxu0 %v1222
        %3196 = vmatmul.mubr.bf16.gmra.mxu0 %v1221
        %v3197 = vpop.f32.mrf.mxu0
        %v3198 = vadd.f32 %v3005, %v3197
        %v3199 = vpop.f32.mrf.mxu0
        %v3200 = vadd.f32 %v3007, %v3199
        %v3201 = vpop.f32.mrf.mxu0
        %v3202 = vadd.f32 %v3009, %v3201
        %v3203 = vpop.f32.mrf.mxu0
        %v3204 = vadd.f32 %v3011, %v3203
        %3205 = vmatprep.mubr.bf16.mxu0 %v1230
        %3206 = vmatmul.mubr.bf16.gmra.mxu0 %v1229
        %v3207 = vpop.f32.mrf.mxu0
        %v3208 = vadd.f32 %v3015, %v3207
        %v3209 = vpop.f32.mrf.mxu0
        %v3210 = vadd.f32 %v3017, %v3209
        %v3211 = vpop.f32.mrf.mxu0
        %v3212 = vadd.f32 %v3019, %v3211
        %v3213 = vpop.f32.mrf.mxu0
        %v3214 = vadd.f32 %v3021, %v3213
        %3215 = vmatprep.mubr.bf16.mxu0 %v1238
        %3216 = vmatmul.mubr.bf16.gmra.mxu0 %v1237
        %v3217 = vpop.f32.mrf.mxu0
        %v3218 = vadd.f32 %v3025, %v3217
        %v3219 = vpop.f32.mrf.mxu0
        %v3220 = vadd.f32 %v3027, %v3219
        %v3221 = vpop.f32.mrf.mxu0
        %v3222 = vadd.f32 %v3029, %v3221
        %v3223 = vpop.f32.mrf.mxu0
        %v3224 = vadd.f32 %v3031, %v3223
        %3225 = vmatprep.mubr.bf16.mxu0 %v1246
        %3226 = vmatmul.mubr.bf16.gmra.mxu0 %v1245
        %v3227 = vpop.f32.mrf.mxu0
        %v3228 = vadd.f32 %v3035, %v3227
        %v3229 = vpop.f32.mrf.mxu0
        %v3230 = vadd.f32 %v3037, %v3229
        %v3231 = vpop.f32.mrf.mxu0
        %v3232 = vadd.f32 %v3039, %v3231
        %v3233 = vpop.f32.mrf.mxu0
        %v3234 = vadd.f32 %v3041, %v3233
        %3235 = vdwg.mxu0
        %3236 = vmatprep.subr.bf16.mxu0 %v2366
        %3237 = vmatpush1.bf16.msra.mxu0 %v2365
        %3238 = vmatprep.subr.bf16.mxu0 %v2362
        %3239 = vmatpush1.bf16.msra.mxu0 %v2361
        %3240 = vmatprep.subr.bf16.mxu0 %v2358
        %3241 = vmatpush1.bf16.msra.mxu0 %v2357
        %3242 = vmatprep.subr.bf16.mxu0 %v2354
        %3243 = vmatpush1.bf16.msra.mxu0 %v2353
        %3244 = vmatprep.subr.bf16.mxu0 %v2350
        %3245 = vmatpush1.bf16.msra.mxu0 %v2349
        %3246 = vmatprep.subr.bf16.mxu0 %v2346
        %3247 = vmatpush1.bf16.msra.mxu0 %v2345
        %3248 = vmatprep.subr.bf16.mxu0 %v2342
        %3249 = vmatpush1.bf16.msra.mxu0 %v2341
        %3250 = vmatprep.subr.bf16.mxu0 %v2338
        %3251 = vmatpush1.bf16.msra.mxu0 %v2337
        %3252 = vmatprep.subr.bf16.mxu0 %v2398
        %3253 = vmatpush2.bf16.msra.mxu0 %v2397
        %3254 = vmatprep.subr.bf16.mxu0 %v2394
        %3255 = vmatpush2.bf16.msra.mxu0 %v2393
        %3256 = vmatprep.subr.bf16.mxu0 %v2390
        %3257 = vmatpush2.bf16.msra.mxu0 %v2389
        %3258 = vmatprep.subr.bf16.mxu0 %v2386
        %3259 = vmatpush2.bf16.msra.mxu0 %v2385
        %3260 = vmatprep.subr.bf16.mxu0 %v2382
        %3261 = vmatpush2.bf16.msra.mxu0 %v2381
        %3262 = vmatprep.subr.bf16.mxu0 %v2378
        %3263 = vmatpush2.bf16.msra.mxu0 %v2377
        %3264 = vmatprep.subr.bf16.mxu0 %v2374
        %3265 = vmatpush2.bf16.msra.mxu0 %v2373
        %3266 = vmatprep.subr.bf16.mxu0 %v2370
        %3267 = vmatpush2.bf16.msra.mxu0 %v2369
        %3268 = vmatprep.mubr.bf16.mxu0 %v1128
        %3269 = vmatmul.mubr.bf16.gmra.mxu0 %v1127
        %v3270 = vpop.f32.mrf.mxu0
        %v3271 = vadd.f32 %v3078, %v3270
        %v3272 = vpop.f32.mrf.mxu0
        %v3273 = vadd.f32 %v3080, %v3272
        %v3274 = vpop.f32.mrf.mxu0
        %v3275 = vadd.f32 %v3082, %v3274
        %v3276 = vpop.f32.mrf.mxu0
        %v3277 = vadd.f32 %v3084, %v3276
        %3278 = vmatprep.mubr.bf16.mxu0 %v1136
        %3279 = vmatmul.mubr.bf16.gmra.mxu0 %v1135
        %v3280 = vpop.f32.mrf.mxu0
        %v3281 = vadd.f32 %v3088, %v3280
        %v3282 = vpop.f32.mrf.mxu0
        %v3283 = vadd.f32 %v3090, %v3282
        %v3284 = vpop.f32.mrf.mxu0
        %v3285 = vadd.f32 %v3092, %v3284
        %v3286 = vpop.f32.mrf.mxu0
        %v3287 = vadd.f32 %v3094, %v3286
        %3288 = vmatprep.mubr.bf16.mxu0 %v1144
        %3289 = vmatmul.mubr.bf16.gmra.mxu0 %v1143
        %v3290 = vpop.f32.mrf.mxu0
        %v3291 = vadd.f32 %v3098, %v3290
        %v3292 = vpop.f32.mrf.mxu0
        %v3293 = vadd.f32 %v3100, %v3292
        %v3294 = vpop.f32.mrf.mxu0
        %v3295 = vadd.f32 %v3102, %v3294
        %v3296 = vpop.f32.mrf.mxu0
        %v3297 = vadd.f32 %v3104, %v3296
        %3298 = vmatprep.mubr.bf16.mxu0 %v1152
        %3299 = vmatmul.mubr.bf16.gmra.mxu0 %v1151
        %v3300 = vpop.f32.mrf.mxu0
        %v3301 = vadd.f32 %v3108, %v3300
        %v3302 = vpop.f32.mrf.mxu0
        %v3303 = vadd.f32 %v3110, %v3302
        %v3304 = vpop.f32.mrf.mxu0
        %v3305 = vadd.f32 %v3112, %v3304
        %v3306 = vpop.f32.mrf.mxu0
        %v3307 = vadd.f32 %v3114, %v3306
        %3308 = vmatprep.mubr.bf16.mxu0 %v1160
        %3309 = vmatmul.mubr.bf16.gmra.mxu0 %v1159
        %v3310 = vpop.f32.mrf.mxu0
        %v3311 = vadd.f32 %v3118, %v3310
        %v3312 = vpop.f32.mrf.mxu0
        %v3313 = vadd.f32 %v3120, %v3312
        %v3314 = vpop.f32.mrf.mxu0
        %v3315 = vadd.f32 %v3122, %v3314
        %v3316 = vpop.f32.mrf.mxu0
        %v3317 = vadd.f32 %v3124, %v3316
        %3318 = vmatprep.mubr.bf16.mxu0 %v1168
        %3319 = vmatmul.mubr.bf16.gmra.mxu0 %v1167
        %v3320 = vpop.f32.mrf.mxu0
        %v3321 = vadd.f32 %v3128, %v3320
        %v3322 = vpop.f32.mrf.mxu0
        %v3323 = vadd.f32 %v3130, %v3322
        %v3324 = vpop.f32.mrf.mxu0
        %v3325 = vadd.f32 %v3132, %v3324
        %v3326 = vpop.f32.mrf.mxu0
        %v3327 = vadd.f32 %v3134, %v3326
        %3328 = vmatprep.mubr.bf16.mxu0 %v1176
        %3329 = vmatmul.mubr.bf16.gmra.mxu0 %v1175
        %v3330 = vpop.f32.mrf.mxu0
        %v3331 = vadd.f32 %v3138, %v3330
        %v3332 = vpop.f32.mrf.mxu0
        %v3333 = vadd.f32 %v3140, %v3332
        %v3334 = vpop.f32.mrf.mxu0
        %v3335 = vadd.f32 %v3142, %v3334
        %v3336 = vpop.f32.mrf.mxu0
        %v3337 = vadd.f32 %v3144, %v3336
        %3338 = vmatprep.mubr.bf16.mxu0 %v1184
        %3339 = vmatmul.mubr.bf16.gmra.mxu0 %v1183
        %v3340 = vpop.f32.mrf.mxu0
        %v3341 = vadd.f32 %v3148, %v3340
        %v3342 = vpop.f32.mrf.mxu0
        %v3343 = vadd.f32 %v3150, %v3342
        %v3344 = vpop.f32.mrf.mxu0
        %v3345 = vadd.f32 %v3152, %v3344
        %v3346 = vpop.f32.mrf.mxu0
        %v3347 = vadd.f32 %v3154, %v3346
        %3348 = vmatprep.mubr.bf16.mxu0 %v1192
        %3349 = vmatmul.mubr.bf16.gmra.mxu0 %v1191
        %v3350 = vpop.f32.mrf.mxu0
        %v3351 = vadd.f32 %v3158, %v3350
        %v3352 = vpop.f32.mrf.mxu0
        %v3353 = vadd.f32 %v3160, %v3352
        %v3354 = vpop.f32.mrf.mxu0
        %v3355 = vadd.f32 %v3162, %v3354
        %v3356 = vpop.f32.mrf.mxu0
        %v3357 = vadd.f32 %v3164, %v3356
        %3358 = vmatprep.mubr.bf16.mxu0 %v1200
        %3359 = vmatmul.mubr.bf16.gmra.mxu0 %v1199
        %v3360 = vpop.f32.mrf.mxu0
        %v3361 = vadd.f32 %v3168, %v3360
        %v3362 = vpop.f32.mrf.mxu0
        %v3363 = vadd.f32 %v3170, %v3362
        %v3364 = vpop.f32.mrf.mxu0
        %v3365 = vadd.f32 %v3172, %v3364
        %v3366 = vpop.f32.mrf.mxu0
        %v3367 = vadd.f32 %v3174, %v3366
        %3368 = vmatprep.mubr.bf16.mxu0 %v1208
        %3369 = vmatmul.mubr.bf16.gmra.mxu0 %v1207
        %v3370 = vpop.f32.mrf.mxu0
        %v3371 = vadd.f32 %v3178, %v3370
        %v3372 = vpop.f32.mrf.mxu0
        %v3373 = vadd.f32 %v3180, %v3372
        %v3374 = vpop.f32.mrf.mxu0
        %v3375 = vadd.f32 %v3182, %v3374
        %v3376 = vpop.f32.mrf.mxu0
        %v3377 = vadd.f32 %v3184, %v3376
        %3378 = vmatprep.mubr.bf16.mxu0 %v1216
        %3379 = vmatmul.mubr.bf16.gmra.mxu0 %v1215
        %v3380 = vpop.f32.mrf.mxu0
        %v3381 = vadd.f32 %v3188, %v3380
        %v3382 = vpop.f32.mrf.mxu0
        %v3383 = vadd.f32 %v3190, %v3382
        %v3384 = vpop.f32.mrf.mxu0
        %v3385 = vadd.f32 %v3192, %v3384
        %v3386 = vpop.f32.mrf.mxu0
        %v3387 = vadd.f32 %v3194, %v3386
        %3388 = vmatprep.mubr.bf16.mxu0 %v1224
        %3389 = vmatmul.mubr.bf16.gmra.mxu0 %v1223
        %v3390 = vpop.f32.mrf.mxu0
        %v3391 = vadd.f32 %v3198, %v3390
        %v3392 = vpop.f32.mrf.mxu0
        %v3393 = vadd.f32 %v3200, %v3392
        %v3394 = vpop.f32.mrf.mxu0
        %v3395 = vadd.f32 %v3202, %v3394
        %v3396 = vpop.f32.mrf.mxu0
        %v3397 = vadd.f32 %v3204, %v3396
        %3398 = vmatprep.mubr.bf16.mxu0 %v1232
        %3399 = vmatmul.mubr.bf16.gmra.mxu0 %v1231
        %v3400 = vpop.f32.mrf.mxu0
        %v3401 = vadd.f32 %v3208, %v3400
        %v3402 = vpop.f32.mrf.mxu0
        %v3403 = vadd.f32 %v3210, %v3402
        %v3404 = vpop.f32.mrf.mxu0
        %v3405 = vadd.f32 %v3212, %v3404
        %v3406 = vpop.f32.mrf.mxu0
        %v3407 = vadd.f32 %v3214, %v3406
        %3408 = vmatprep.mubr.bf16.mxu0 %v1240
        %3409 = vmatmul.mubr.bf16.gmra.mxu0 %v1239
        %v3410 = vpop.f32.mrf.mxu0
        %v3411 = vadd.f32 %v3218, %v3410
        %v3412 = vpop.f32.mrf.mxu0
        %v3413 = vadd.f32 %v3220, %v3412
        %v3414 = vpop.f32.mrf.mxu0
        %v3415 = vadd.f32 %v3222, %v3414
        %v3416 = vpop.f32.mrf.mxu0
        %v3417 = vadd.f32 %v3224, %v3416
        %3418 = vmatprep.mubr.bf16.mxu0 %v1248
        %3419 = vmatmul.mubr.bf16.gmra.mxu0 %v1247
        %v3420 = vpop.f32.mrf.mxu0
        %v3421 = vadd.f32 %v3228, %v3420
        %v3422 = vpop.f32.mrf.mxu0
        %v3423 = vadd.f32 %v3230, %v3422
        %v3424 = vpop.f32.mrf.mxu0
        %v3425 = vadd.f32 %v3232, %v3424
        %v3426 = vpop.f32.mrf.mxu0
        %v3427 = vadd.f32 %v3234, %v3426
        %3428 = vdwg.mxu0
        %3429 = vmatprep.subr.bf16.mxu0 %v2176
        %3430 = vmatpush1.bf16.msra.mxu0 %v2175
        %3431 = vmatprep.subr.bf16.mxu0 %v2172
        %3432 = vmatpush1.bf16.msra.mxu0 %v2171
        %3433 = vmatprep.subr.bf16.mxu0 %v2168
        %3434 = vmatpush1.bf16.msra.mxu0 %v2167
        %3435 = vmatprep.subr.bf16.mxu0 %v2164
        %3436 = vmatpush1.bf16.msra.mxu0 %v2163
        %3437 = vmatprep.subr.bf16.mxu0 %v2160
        %3438 = vmatpush1.bf16.msra.mxu0 %v2159
        %3439 = vmatprep.subr.bf16.mxu0 %v2156
        %3440 = vmatpush1.bf16.msra.mxu0 %v2155
        %3441 = vmatprep.subr.bf16.mxu0 %v2152
        %3442 = vmatpush1.bf16.msra.mxu0 %v2151
        %3443 = vmatprep.subr.bf16.mxu0 %v2148
        %3444 = vmatpush1.bf16.msra.mxu0 %v2147
        %3445 = vmatprep.subr.bf16.mxu0 %v2208
        %3446 = vmatpush2.bf16.msra.mxu0 %v2207
        %3447 = vmatprep.subr.bf16.mxu0 %v2204
        %3448 = vmatpush2.bf16.msra.mxu0 %v2203
        %3449 = vmatprep.subr.bf16.mxu0 %v2200
        %3450 = vmatpush2.bf16.msra.mxu0 %v2199
        %3451 = vmatprep.subr.bf16.mxu0 %v2196
        %3452 = vmatpush2.bf16.msra.mxu0 %v2195
        %3453 = vmatprep.subr.bf16.mxu0 %v2192
        %3454 = vmatpush2.bf16.msra.mxu0 %v2191
        %3455 = vmatprep.subr.bf16.mxu0 %v2188
        %3456 = vmatpush2.bf16.msra.mxu0 %v2187
        %3457 = vmatprep.subr.bf16.mxu0 %v2184
        %3458 = vmatpush2.bf16.msra.mxu0 %v2183
        %3459 = vmatprep.subr.bf16.mxu0 %v2180
        %3460 = vmatpush2.bf16.msra.mxu0 %v2179
        %3461 = vmatprep.mubr.bf16.mxu0 %v1122
        %3462 = vmatmul.mubr.bf16.gmra.mxu0 %v1121
        %v3463 = vpop.f32.mrf.mxu0
        %v3464 = vadd.f32 %v728, %v3463
        %v3465 = vpop.f32.mrf.mxu0
        %v3466 = vadd.f32 %v732, %v3465
        %v3467 = vpop.f32.mrf.mxu0
        %v3468 = vadd.f32 %v728, %v3467
        %v3469 = vpop.f32.mrf.mxu0
        %v3470 = vadd.f32 %v732, %v3469
        %3471 = vmatprep.mubr.bf16.mxu0 %v1130
        %3472 = vmatmul.mubr.bf16.gmra.mxu0 %v1129
        %v3473 = vpop.f32.mrf.mxu0
        %v3474 = vadd.f32 %v728, %v3473
        %v3475 = vpop.f32.mrf.mxu0
        %v3476 = vadd.f32 %v732, %v3475
        %v3477 = vpop.f32.mrf.mxu0
        %v3478 = vadd.f32 %v728, %v3477
        %v3479 = vpop.f32.mrf.mxu0
        %v3480 = vadd.f32 %v732, %v3479
        %3481 = vmatprep.mubr.bf16.mxu0 %v1138
        %3482 = vmatmul.mubr.bf16.gmra.mxu0 %v1137
        %v3483 = vpop.f32.mrf.mxu0
        %v3484 = vadd.f32 %v728, %v3483
        %v3485 = vpop.f32.mrf.mxu0
        %v3486 = vadd.f32 %v732, %v3485
        %v3487 = vpop.f32.mrf.mxu0
        %v3488 = vadd.f32 %v728, %v3487
        %v3489 = vpop.f32.mrf.mxu0
        %v3490 = vadd.f32 %v732, %v3489
        %3491 = vmatprep.mubr.bf16.mxu0 %v1146
        %3492 = vmatmul.mubr.bf16.gmra.mxu0 %v1145
        %v3493 = vpop.f32.mrf.mxu0
        %v3494 = vadd.f32 %v728, %v3493
        %v3495 = vpop.f32.mrf.mxu0
        %v3496 = vadd.f32 %v732, %v3495
        %v3497 = vpop.f32.mrf.mxu0
        %v3498 = vadd.f32 %v728, %v3497
        %v3499 = vpop.f32.mrf.mxu0
        %v3500 = vadd.f32 %v732, %v3499
        %3501 = vmatprep.mubr.bf16.mxu0 %v1154
        %3502 = vmatmul.mubr.bf16.gmra.mxu0 %v1153
        %v3503 = vpop.f32.mrf.mxu0
        %v3504 = vadd.f32 %v728, %v3503
        %v3505 = vpop.f32.mrf.mxu0
        %v3506 = vadd.f32 %v732, %v3505
        %v3507 = vpop.f32.mrf.mxu0
        %v3508 = vadd.f32 %v728, %v3507
        %v3509 = vpop.f32.mrf.mxu0
        %v3510 = vadd.f32 %v732, %v3509
        %3511 = vmatprep.mubr.bf16.mxu0 %v1162
        %3512 = vmatmul.mubr.bf16.gmra.mxu0 %v1161
        %v3513 = vpop.f32.mrf.mxu0
        %v3514 = vadd.f32 %v728, %v3513
        %v3515 = vpop.f32.mrf.mxu0
        %v3516 = vadd.f32 %v732, %v3515
        %v3517 = vpop.f32.mrf.mxu0
        %v3518 = vadd.f32 %v728, %v3517
        %v3519 = vpop.f32.mrf.mxu0
        %v3520 = vadd.f32 %v732, %v3519
        %3521 = vmatprep.mubr.bf16.mxu0 %v1170
        %3522 = vmatmul.mubr.bf16.gmra.mxu0 %v1169
        %v3523 = vpop.f32.mrf.mxu0
        %v3524 = vadd.f32 %v728, %v3523
        %v3525 = vpop.f32.mrf.mxu0
        %v3526 = vadd.f32 %v732, %v3525
        %v3527 = vpop.f32.mrf.mxu0
        %v3528 = vadd.f32 %v728, %v3527
        %v3529 = vpop.f32.mrf.mxu0
        %v3530 = vadd.f32 %v732, %v3529
        %3531 = vmatprep.mubr.bf16.mxu0 %v1178
        %3532 = vmatmul.mubr.bf16.gmra.mxu0 %v1177
        %v3533 = vpop.f32.mrf.mxu0
        %v3534 = vadd.f32 %v728, %v3533
        %v3535 = vpop.f32.mrf.mxu0
        %v3536 = vadd.f32 %v732, %v3535
        %v3537 = vpop.f32.mrf.mxu0
        %v3538 = vadd.f32 %v728, %v3537
        %v3539 = vpop.f32.mrf.mxu0
        %v3540 = vadd.f32 %v732, %v3539
        %3541 = vmatprep.mubr.bf16.mxu0 %v1186
        %3542 = vmatmul.mubr.bf16.gmra.mxu0 %v1185
        %v3543 = vpop.f32.mrf.mxu0
        %v3544 = vadd.f32 %v728, %v3543
        %v3545 = vpop.f32.mrf.mxu0
        %v3546 = vadd.f32 %v732, %v3545
        %v3547 = vpop.f32.mrf.mxu0
        %v3548 = vadd.f32 %v728, %v3547
        %v3549 = vpop.f32.mrf.mxu0
        %v3550 = vadd.f32 %v732, %v3549
        %3551 = vmatprep.mubr.bf16.mxu0 %v1194
        %3552 = vmatmul.mubr.bf16.gmra.mxu0 %v1193
        %v3553 = vpop.f32.mrf.mxu0
        %v3554 = vadd.f32 %v728, %v3553
        %v3555 = vpop.f32.mrf.mxu0
        %v3556 = vadd.f32 %v732, %v3555
        %v3557 = vpop.f32.mrf.mxu0
        %v3558 = vadd.f32 %v728, %v3557
        %v3559 = vpop.f32.mrf.mxu0
        %v3560 = vadd.f32 %v732, %v3559
        %3561 = vmatprep.mubr.bf16.mxu0 %v1202
        %3562 = vmatmul.mubr.bf16.gmra.mxu0 %v1201
        %v3563 = vpop.f32.mrf.mxu0
        %v3564 = vadd.f32 %v728, %v3563
        %v3565 = vpop.f32.mrf.mxu0
        %v3566 = vadd.f32 %v732, %v3565
        %v3567 = vpop.f32.mrf.mxu0
        %v3568 = vadd.f32 %v728, %v3567
        %v3569 = vpop.f32.mrf.mxu0
        %v3570 = vadd.f32 %v732, %v3569
        %3571 = vmatprep.mubr.bf16.mxu0 %v1210
        %3572 = vmatmul.mubr.bf16.gmra.mxu0 %v1209
        %v3573 = vpop.f32.mrf.mxu0
        %v3574 = vadd.f32 %v728, %v3573
        %v3575 = vpop.f32.mrf.mxu0
        %v3576 = vadd.f32 %v732, %v3575
        %v3577 = vpop.f32.mrf.mxu0
        %v3578 = vadd.f32 %v728, %v3577
        %v3579 = vpop.f32.mrf.mxu0
        %v3580 = vadd.f32 %v732, %v3579
        %3581 = vmatprep.mubr.bf16.mxu0 %v1218
        %3582 = vmatmul.mubr.bf16.gmra.mxu0 %v1217
        %v3583 = vpop.f32.mrf.mxu0
        %v3584 = vadd.f32 %v728, %v3583
        %v3585 = vpop.f32.mrf.mxu0
        %v3586 = vadd.f32 %v732, %v3585
        %v3587 = vpop.f32.mrf.mxu0
        %v3588 = vadd.f32 %v728, %v3587
        %v3589 = vpop.f32.mrf.mxu0
        %v3590 = vadd.f32 %v732, %v3589
        %3591 = vmatprep.mubr.bf16.mxu0 %v1226
        %3592 = vmatmul.mubr.bf16.gmra.mxu0 %v1225
        %v3593 = vpop.f32.mrf.mxu0
        %v3594 = vadd.f32 %v728, %v3593
        %v3595 = vpop.f32.mrf.mxu0
        %v3596 = vadd.f32 %v732, %v3595
        %v3597 = vpop.f32.mrf.mxu0
        %v3598 = vadd.f32 %v728, %v3597
        %v3599 = vpop.f32.mrf.mxu0
        %v3600 = vadd.f32 %v732, %v3599
        %3601 = vmatprep.mubr.bf16.mxu0 %v1234
        %3602 = vmatmul.mubr.bf16.gmra.mxu0 %v1233
        %v3603 = vpop.f32.mrf.mxu0
        %v3604 = vadd.f32 %v728, %v3603
        %v3605 = vpop.f32.mrf.mxu0
        %v3606 = vadd.f32 %v732, %v3605
        %v3607 = vpop.f32.mrf.mxu0
        %v3608 = vadd.f32 %v728, %v3607
        %v3609 = vpop.f32.mrf.mxu0
        %v3610 = vadd.f32 %v732, %v3609
        %3611 = vmatprep.mubr.bf16.mxu0 %v1242
        %3612 = vmatmul.mubr.bf16.gmra.mxu0 %v1241
        %v3613 = vpop.f32.mrf.mxu0
        %v3614 = vadd.f32 %v728, %v3613
        %v3615 = vpop.f32.mrf.mxu0
        %v3616 = vadd.f32 %v732, %v3615
        %v3617 = vpop.f32.mrf.mxu0
        %v3618 = vadd.f32 %v728, %v3617
        %v3619 = vpop.f32.mrf.mxu0
        %v3620 = vadd.f32 %v732, %v3619
        %3621 = vdwg.mxu0
        %3622 = vmatprep.subr.bf16.mxu0 %v2240
        %3623 = vmatpush1.bf16.msra.mxu0 %v2239
        %3624 = vmatprep.subr.bf16.mxu0 %v2236
        %3625 = vmatpush1.bf16.msra.mxu0 %v2235
        %3626 = vmatprep.subr.bf16.mxu0 %v2232
        %3627 = vmatpush1.bf16.msra.mxu0 %v2231
        %3628 = vmatprep.subr.bf16.mxu0 %v2228
        %3629 = vmatpush1.bf16.msra.mxu0 %v2227
        %3630 = vmatprep.subr.bf16.mxu0 %v2224
        %3631 = vmatpush1.bf16.msra.mxu0 %v2223
        %3632 = vmatprep.subr.bf16.mxu0 %v2220
        %3633 = vmatpush1.bf16.msra.mxu0 %v2219
        %3634 = vmatprep.subr.bf16.mxu0 %v2216
        %3635 = vmatpush1.bf16.msra.mxu0 %v2215
        %3636 = vmatprep.subr.bf16.mxu0 %v2212
        %3637 = vmatpush1.bf16.msra.mxu0 %v2211
        %3638 = vmatprep.subr.bf16.mxu0 %v2272
        %3639 = vmatpush2.bf16.msra.mxu0 %v2271
        %3640 = vmatprep.subr.bf16.mxu0 %v2268
        %3641 = vmatpush2.bf16.msra.mxu0 %v2267
        %3642 = vmatprep.subr.bf16.mxu0 %v2264
        %3643 = vmatpush2.bf16.msra.mxu0 %v2263
        %3644 = vmatprep.subr.bf16.mxu0 %v2260
        %3645 = vmatpush2.bf16.msra.mxu0 %v2259
        %3646 = vmatprep.subr.bf16.mxu0 %v2256
        %3647 = vmatpush2.bf16.msra.mxu0 %v2255
        %3648 = vmatprep.subr.bf16.mxu0 %v2252
        %3649 = vmatpush2.bf16.msra.mxu0 %v2251
        %3650 = vmatprep.subr.bf16.mxu0 %v2248
        %3651 = vmatpush2.bf16.msra.mxu0 %v2247
        %3652 = vmatprep.subr.bf16.mxu0 %v2244
        %3653 = vmatpush2.bf16.msra.mxu0 %v2243
        %3654 = vmatprep.mubr.bf16.mxu0 %v1124
        %3655 = vmatmul.mubr.bf16.gmra.mxu0 %v1123
        %v3656 = vpop.f32.mrf.mxu0
        %v3657 = vadd.f32 %v3464, %v3656
        %v3658 = vpop.f32.mrf.mxu0
        %v3659 = vadd.f32 %v3466, %v3658
        %v3660 = vpop.f32.mrf.mxu0
        %v3661 = vadd.f32 %v3468, %v3660
        %v3662 = vpop.f32.mrf.mxu0
        %v3663 = vadd.f32 %v3470, %v3662
        %3664 = vmatprep.mubr.bf16.mxu0 %v1132
        %3665 = vmatmul.mubr.bf16.gmra.mxu0 %v1131
        %v3666 = vpop.f32.mrf.mxu0
        %v3667 = vadd.f32 %v3474, %v3666
        %v3668 = vpop.f32.mrf.mxu0
        %v3669 = vadd.f32 %v3476, %v3668
        %v3670 = vpop.f32.mrf.mxu0
        %v3671 = vadd.f32 %v3478, %v3670
        %v3672 = vpop.f32.mrf.mxu0
        %v3673 = vadd.f32 %v3480, %v3672
        %3674 = vmatprep.mubr.bf16.mxu0 %v1140
        %3675 = vmatmul.mubr.bf16.gmra.mxu0 %v1139
        %v3676 = vpop.f32.mrf.mxu0
        %v3677 = vadd.f32 %v3484, %v3676
        %v3678 = vpop.f32.mrf.mxu0
        %v3679 = vadd.f32 %v3486, %v3678
        %v3680 = vpop.f32.mrf.mxu0
        %v3681 = vadd.f32 %v3488, %v3680
        %v3682 = vpop.f32.mrf.mxu0
        %v3683 = vadd.f32 %v3490, %v3682
        %3684 = vmatprep.mubr.bf16.mxu0 %v1148
        %3685 = vmatmul.mubr.bf16.gmra.mxu0 %v1147
        %v3686 = vpop.f32.mrf.mxu0
        %v3687 = vadd.f32 %v3494, %v3686
        %v3688 = vpop.f32.mrf.mxu0
        %v3689 = vadd.f32 %v3496, %v3688
        %v3690 = vpop.f32.mrf.mxu0
        %v3691 = vadd.f32 %v3498, %v3690
        %v3692 = vpop.f32.mrf.mxu0
        %v3693 = vadd.f32 %v3500, %v3692
        %3694 = vmatprep.mubr.bf16.mxu0 %v1156
        %3695 = vmatmul.mubr.bf16.gmra.mxu0 %v1155
        %v3696 = vpop.f32.mrf.mxu0
        %v3697 = vadd.f32 %v3504, %v3696
        %v3698 = vpop.f32.mrf.mxu0
        %v3699 = vadd.f32 %v3506, %v3698
        %v3700 = vpop.f32.mrf.mxu0
        %v3701 = vadd.f32 %v3508, %v3700
        %v3702 = vpop.f32.mrf.mxu0
        %v3703 = vadd.f32 %v3510, %v3702
        %3704 = vmatprep.mubr.bf16.mxu0 %v1164
        %3705 = vmatmul.mubr.bf16.gmra.mxu0 %v1163
        %v3706 = vpop.f32.mrf.mxu0
        %v3707 = vadd.f32 %v3514, %v3706
        %v3708 = vpop.f32.mrf.mxu0
        %v3709 = vadd.f32 %v3516, %v3708
        %v3710 = vpop.f32.mrf.mxu0
        %v3711 = vadd.f32 %v3518, %v3710
        %v3712 = vpop.f32.mrf.mxu0
        %v3713 = vadd.f32 %v3520, %v3712
        %3714 = vmatprep.mubr.bf16.mxu0 %v1172
        %3715 = vmatmul.mubr.bf16.gmra.mxu0 %v1171
        %v3716 = vpop.f32.mrf.mxu0
        %v3717 = vadd.f32 %v3524, %v3716
        %v3718 = vpop.f32.mrf.mxu0
        %v3719 = vadd.f32 %v3526, %v3718
        %v3720 = vpop.f32.mrf.mxu0
        %v3721 = vadd.f32 %v3528, %v3720
        %v3722 = vpop.f32.mrf.mxu0
        %v3723 = vadd.f32 %v3530, %v3722
        %3724 = vmatprep.mubr.bf16.mxu0 %v1180
        %3725 = vmatmul.mubr.bf16.gmra.mxu0 %v1179
        %v3726 = vpop.f32.mrf.mxu0
        %v3727 = vadd.f32 %v3534, %v3726
        %v3728 = vpop.f32.mrf.mxu0
        %v3729 = vadd.f32 %v3536, %v3728
        %v3730 = vpop.f32.mrf.mxu0
        %v3731 = vadd.f32 %v3538, %v3730
        %v3732 = vpop.f32.mrf.mxu0
        %v3733 = vadd.f32 %v3540, %v3732
        %3734 = vmatprep.mubr.bf16.mxu0 %v1188
        %3735 = vmatmul.mubr.bf16.gmra.mxu0 %v1187
        %v3736 = vpop.f32.mrf.mxu0
        %v3737 = vadd.f32 %v3544, %v3736
        %v3738 = vpop.f32.mrf.mxu0
        %v3739 = vadd.f32 %v3546, %v3738
        %v3740 = vpop.f32.mrf.mxu0
        %v3741 = vadd.f32 %v3548, %v3740
        %v3742 = vpop.f32.mrf.mxu0
        %v3743 = vadd.f32 %v3550, %v3742
        %3744 = vmatprep.mubr.bf16.mxu0 %v1196
        %3745 = vmatmul.mubr.bf16.gmra.mxu0 %v1195
        %v3746 = vpop.f32.mrf.mxu0
        %v3747 = vadd.f32 %v3554, %v3746
        %v3748 = vpop.f32.mrf.mxu0
        %v3749 = vadd.f32 %v3556, %v3748
        %v3750 = vpop.f32.mrf.mxu0
        %v3751 = vadd.f32 %v3558, %v3750
        %v3752 = vpop.f32.mrf.mxu0
        %v3753 = vadd.f32 %v3560, %v3752
        %3754 = vmatprep.mubr.bf16.mxu0 %v1204
        %3755 = vmatmul.mubr.bf16.gmra.mxu0 %v1203
        %v3756 = vpop.f32.mrf.mxu0
        %v3757 = vadd.f32 %v3564, %v3756
        %v3758 = vpop.f32.mrf.mxu0
        %v3759 = vadd.f32 %v3566, %v3758
        %v3760 = vpop.f32.mrf.mxu0
        %v3761 = vadd.f32 %v3568, %v3760
        %v3762 = vpop.f32.mrf.mxu0
        %v3763 = vadd.f32 %v3570, %v3762
        %3764 = vmatprep.mubr.bf16.mxu0 %v1212
        %3765 = vmatmul.mubr.bf16.gmra.mxu0 %v1211
        %v3766 = vpop.f32.mrf.mxu0
        %v3767 = vadd.f32 %v3574, %v3766
        %v3768 = vpop.f32.mrf.mxu0
        %v3769 = vadd.f32 %v3576, %v3768
        %v3770 = vpop.f32.mrf.mxu0
        %v3771 = vadd.f32 %v3578, %v3770
        %v3772 = vpop.f32.mrf.mxu0
        %v3773 = vadd.f32 %v3580, %v3772
        %3774 = vmatprep.mubr.bf16.mxu0 %v1220
        %3775 = vmatmul.mubr.bf16.gmra.mxu0 %v1219
        %v3776 = vpop.f32.mrf.mxu0
        %v3777 = vadd.f32 %v3584, %v3776
        %v3778 = vpop.f32.mrf.mxu0
        %v3779 = vadd.f32 %v3586, %v3778
        %v3780 = vpop.f32.mrf.mxu0
        %v3781 = vadd.f32 %v3588, %v3780
        %v3782 = vpop.f32.mrf.mxu0
        %v3783 = vadd.f32 %v3590, %v3782
        %3784 = vmatprep.mubr.bf16.mxu0 %v1228
        %3785 = vmatmul.mubr.bf16.gmra.mxu0 %v1227
        %v3786 = vpop.f32.mrf.mxu0
        %v3787 = vadd.f32 %v3594, %v3786
        %v3788 = vpop.f32.mrf.mxu0
        %v3789 = vadd.f32 %v3596, %v3788
        %v3790 = vpop.f32.mrf.mxu0
        %v3791 = vadd.f32 %v3598, %v3790
        %v3792 = vpop.f32.mrf.mxu0
        %v3793 = vadd.f32 %v3600, %v3792
        %3794 = vmatprep.mubr.bf16.mxu0 %v1236
        %3795 = vmatmul.mubr.bf16.gmra.mxu0 %v1235
        %v3796 = vpop.f32.mrf.mxu0
        %v3797 = vadd.f32 %v3604, %v3796
        %v3798 = vpop.f32.mrf.mxu0
        %v3799 = vadd.f32 %v3606, %v3798
        %v3800 = vpop.f32.mrf.mxu0
        %v3801 = vadd.f32 %v3608, %v3800
        %v3802 = vpop.f32.mrf.mxu0
        %v3803 = vadd.f32 %v3610, %v3802
        %3804 = vmatprep.mubr.bf16.mxu0 %v1244
        %3805 = vmatmul.mubr.bf16.gmra.mxu0 %v1243
        %v3806 = vpop.f32.mrf.mxu0
        %v3807 = vadd.f32 %v3614, %v3806
        %v3808 = vpop.f32.mrf.mxu0
        %v3809 = vadd.f32 %v3616, %v3808
        %v3810 = vpop.f32.mrf.mxu0
        %v3811 = vadd.f32 %v3618, %v3810
        %v3812 = vpop.f32.mrf.mxu0
        %v3813 = vadd.f32 %v3620, %v3812
        %3814 = vdwg.mxu0
        %3815 = vmatprep.subr.bf16.mxu0 %v2304
        %3816 = vmatpush1.bf16.msra.mxu0 %v2303
        %3817 = vmatprep.subr.bf16.mxu0 %v2300
        %3818 = vmatpush1.bf16.msra.mxu0 %v2299
        %3819 = vmatprep.subr.bf16.mxu0 %v2296
        %3820 = vmatpush1.bf16.msra.mxu0 %v2295
        %3821 = vmatprep.subr.bf16.mxu0 %v2292
        %3822 = vmatpush1.bf16.msra.mxu0 %v2291
        %3823 = vmatprep.subr.bf16.mxu0 %v2288
        %3824 = vmatpush1.bf16.msra.mxu0 %v2287
        %3825 = vmatprep.subr.bf16.mxu0 %v2284
        %3826 = vmatpush1.bf16.msra.mxu0 %v2283
        %3827 = vmatprep.subr.bf16.mxu0 %v2280
        %3828 = vmatpush1.bf16.msra.mxu0 %v2279
        %3829 = vmatprep.subr.bf16.mxu0 %v2276
        %3830 = vmatpush1.bf16.msra.mxu0 %v2275
        %3831 = vmatprep.subr.bf16.mxu0 %v2336
        %3832 = vmatpush2.bf16.msra.mxu0 %v2335
        %3833 = vmatprep.subr.bf16.mxu0 %v2332
        %3834 = vmatpush2.bf16.msra.mxu0 %v2331
        %3835 = vmatprep.subr.bf16.mxu0 %v2328
        %3836 = vmatpush2.bf16.msra.mxu0 %v2327
        %3837 = vmatprep.subr.bf16.mxu0 %v2324
        %3838 = vmatpush2.bf16.msra.mxu0 %v2323
        %3839 = vmatprep.subr.bf16.mxu0 %v2320
        %3840 = vmatpush2.bf16.msra.mxu0 %v2319
        %3841 = vmatprep.subr.bf16.mxu0 %v2316
        %3842 = vmatpush2.bf16.msra.mxu0 %v2315
        %3843 = vmatprep.subr.bf16.mxu0 %v2312
        %3844 = vmatpush2.bf16.msra.mxu0 %v2311
        %3845 = vmatprep.subr.bf16.mxu0 %v2308
        %3846 = vmatpush2.bf16.msra.mxu0 %v2307
        %3847 = vmatprep.mubr.bf16.mxu0 %v1126
        %3848 = vmatmul.mubr.bf16.gmra.mxu0 %v1125
        %v3849 = vpop.f32.mrf.mxu0
        %v3850 = vadd.f32 %v3657, %v3849
        %v3851 = vpop.f32.mrf.mxu0
        %v3852 = vadd.f32 %v3659, %v3851
        %v3853 = vpop.f32.mrf.mxu0
        %v3854 = vadd.f32 %v3661, %v3853
        %v3855 = vpop.f32.mrf.mxu0
        %v3856 = vadd.f32 %v3663, %v3855
        %3857 = vmatprep.mubr.bf16.mxu0 %v1134
        %3858 = vmatmul.mubr.bf16.gmra.mxu0 %v1133
        %v3859 = vpop.f32.mrf.mxu0
        %v3860 = vadd.f32 %v3667, %v3859
        %v3861 = vpop.f32.mrf.mxu0
        %v3862 = vadd.f32 %v3669, %v3861
        %v3863 = vpop.f32.mrf.mxu0
        %v3864 = vadd.f32 %v3671, %v3863
        %v3865 = vpop.f32.mrf.mxu0
        %v3866 = vadd.f32 %v3673, %v3865
        %3867 = vmatprep.mubr.bf16.mxu0 %v1142
        %3868 = vmatmul.mubr.bf16.gmra.mxu0 %v1141
        %v3869 = vpop.f32.mrf.mxu0
        %v3870 = vadd.f32 %v3677, %v3869
        %v3871 = vpop.f32.mrf.mxu0
        %v3872 = vadd.f32 %v3679, %v3871
        %v3873 = vpop.f32.mrf.mxu0
        %v3874 = vadd.f32 %v3681, %v3873
        %v3875 = vpop.f32.mrf.mxu0
        %v3876 = vadd.f32 %v3683, %v3875
        %3877 = vmatprep.mubr.bf16.mxu0 %v1150
        %3878 = vmatmul.mubr.bf16.gmra.mxu0 %v1149
        %v3879 = vpop.f32.mrf.mxu0
        %v3880 = vadd.f32 %v3687, %v3879
        %v3881 = vpop.f32.mrf.mxu0
        %v3882 = vadd.f32 %v3689, %v3881
        %v3883 = vpop.f32.mrf.mxu0
        %v3884 = vadd.f32 %v3691, %v3883
        %v3885 = vpop.f32.mrf.mxu0
        %v3886 = vadd.f32 %v3693, %v3885
        %3887 = vmatprep.mubr.bf16.mxu0 %v1158
        %3888 = vmatmul.mubr.bf16.gmra.mxu0 %v1157
        %v3889 = vpop.f32.mrf.mxu0
        %v3890 = vadd.f32 %v3697, %v3889
        %v3891 = vpop.f32.mrf.mxu0
        %v3892 = vadd.f32 %v3699, %v3891
        %v3893 = vpop.f32.mrf.mxu0
        %v3894 = vadd.f32 %v3701, %v3893
        %v3895 = vpop.f32.mrf.mxu0
        %v3896 = vadd.f32 %v3703, %v3895
        %3897 = vmatprep.mubr.bf16.mxu0 %v1166
        %3898 = vmatmul.mubr.bf16.gmra.mxu0 %v1165
        %v3899 = vpop.f32.mrf.mxu0
        %v3900 = vadd.f32 %v3707, %v3899
        %v3901 = vpop.f32.mrf.mxu0
        %v3902 = vadd.f32 %v3709, %v3901
        %v3903 = vpop.f32.mrf.mxu0
        %v3904 = vadd.f32 %v3711, %v3903
        %v3905 = vpop.f32.mrf.mxu0
        %v3906 = vadd.f32 %v3713, %v3905
        %3907 = vmatprep.mubr.bf16.mxu0 %v1174
        %3908 = vmatmul.mubr.bf16.gmra.mxu0 %v1173
        %v3909 = vpop.f32.mrf.mxu0
        %v3910 = vadd.f32 %v3717, %v3909
        %v3911 = vpop.f32.mrf.mxu0
        %v3912 = vadd.f32 %v3719, %v3911
        %v3913 = vpop.f32.mrf.mxu0
        %v3914 = vadd.f32 %v3721, %v3913
        %v3915 = vpop.f32.mrf.mxu0
        %v3916 = vadd.f32 %v3723, %v3915
        %3917 = vmatprep.mubr.bf16.mxu0 %v1182
        %3918 = vmatmul.mubr.bf16.gmra.mxu0 %v1181
        %v3919 = vpop.f32.mrf.mxu0
        %v3920 = vadd.f32 %v3727, %v3919
        %v3921 = vpop.f32.mrf.mxu0
        %v3922 = vadd.f32 %v3729, %v3921
        %v3923 = vpop.f32.mrf.mxu0
        %v3924 = vadd.f32 %v3731, %v3923
        %v3925 = vpop.f32.mrf.mxu0
        %v3926 = vadd.f32 %v3733, %v3925
        %3927 = vmatprep.mubr.bf16.mxu0 %v1190
        %3928 = vmatmul.mubr.bf16.gmra.mxu0 %v1189
        %v3929 = vpop.f32.mrf.mxu0
        %v3930 = vadd.f32 %v3737, %v3929
        %v3931 = vpop.f32.mrf.mxu0
        %v3932 = vadd.f32 %v3739, %v3931
        %v3933 = vpop.f32.mrf.mxu0
        %v3934 = vadd.f32 %v3741, %v3933
        %v3935 = vpop.f32.mrf.mxu0
        %v3936 = vadd.f32 %v3743, %v3935
        %3937 = vmatprep.mubr.bf16.mxu0 %v1198
        %3938 = vmatmul.mubr.bf16.gmra.mxu0 %v1197
        %v3939 = vpop.f32.mrf.mxu0
        %v3940 = vadd.f32 %v3747, %v3939
        %v3941 = vpop.f32.mrf.mxu0
        %v3942 = vadd.f32 %v3749, %v3941
        %v3943 = vpop.f32.mrf.mxu0
        %v3944 = vadd.f32 %v3751, %v3943
        %v3945 = vpop.f32.mrf.mxu0
        %v3946 = vadd.f32 %v3753, %v3945
        %3947 = vmatprep.mubr.bf16.mxu0 %v1206
        %3948 = vmatmul.mubr.bf16.gmra.mxu0 %v1205
        %v3949 = vpop.f32.mrf.mxu0
        %v3950 = vadd.f32 %v3757, %v3949
        %v3951 = vpop.f32.mrf.mxu0
        %v3952 = vadd.f32 %v3759, %v3951
        %v3953 = vpop.f32.mrf.mxu0
        %v3954 = vadd.f32 %v3761, %v3953
        %v3955 = vpop.f32.mrf.mxu0
        %v3956 = vadd.f32 %v3763, %v3955
        %3957 = vmatprep.mubr.bf16.mxu0 %v1214
        %3958 = vmatmul.mubr.bf16.gmra.mxu0 %v1213
        %v3959 = vpop.f32.mrf.mxu0
        %v3960 = vadd.f32 %v3767, %v3959
        %v3961 = vpop.f32.mrf.mxu0
        %v3962 = vadd.f32 %v3769, %v3961
        %v3963 = vpop.f32.mrf.mxu0
        %v3964 = vadd.f32 %v3771, %v3963
        %v3965 = vpop.f32.mrf.mxu0
        %v3966 = vadd.f32 %v3773, %v3965
        %3967 = vmatprep.mubr.bf16.mxu0 %v1222
        %3968 = vmatmul.mubr.bf16.gmra.mxu0 %v1221
        %v3969 = vpop.f32.mrf.mxu0
        %v3970 = vadd.f32 %v3777, %v3969
        %v3971 = vpop.f32.mrf.mxu0
        %v3972 = vadd.f32 %v3779, %v3971
        %v3973 = vpop.f32.mrf.mxu0
        %v3974 = vadd.f32 %v3781, %v3973
        %v3975 = vpop.f32.mrf.mxu0
        %v3976 = vadd.f32 %v3783, %v3975
        %3977 = vmatprep.mubr.bf16.mxu0 %v1230
        %3978 = vmatmul.mubr.bf16.gmra.mxu0 %v1229
        %v3979 = vpop.f32.mrf.mxu0
        %v3980 = vadd.f32 %v3787, %v3979
        %v3981 = vpop.f32.mrf.mxu0
        %v3982 = vadd.f32 %v3789, %v3981
        %v3983 = vpop.f32.mrf.mxu0
        %v3984 = vadd.f32 %v3791, %v3983
        %v3985 = vpop.f32.mrf.mxu0
        %v3986 = vadd.f32 %v3793, %v3985
        %3987 = vmatprep.mubr.bf16.mxu0 %v1238
        %3988 = vmatmul.mubr.bf16.gmra.mxu0 %v1237
        %v3989 = vpop.f32.mrf.mxu0
        %v3990 = vadd.f32 %v3797, %v3989
        %v3991 = vpop.f32.mrf.mxu0
        %v3992 = vadd.f32 %v3799, %v3991
        %v3993 = vpop.f32.mrf.mxu0
        %v3994 = vadd.f32 %v3801, %v3993
        %v3995 = vpop.f32.mrf.mxu0
        %v3996 = vadd.f32 %v3803, %v3995
        %3997 = vmatprep.mubr.bf16.mxu0 %v1246
        %3998 = vmatmul.mubr.bf16.gmra.mxu0 %v1245
        %v3999 = vpop.f32.mrf.mxu0
        %v4000 = vadd.f32 %v3807, %v3999
        %v4001 = vpop.f32.mrf.mxu0
        %v4002 = vadd.f32 %v3809, %v4001
        %v4003 = vpop.f32.mrf.mxu0
        %v4004 = vadd.f32 %v3811, %v4003
        %v4005 = vpop.f32.mrf.mxu0
        %v4006 = vadd.f32 %v3813, %v4005
        %4007 = vdwg.mxu0
        %4008 = vmatprep.subr.bf16.mxu0 %v2368
        %4009 = vmatpush1.bf16.msra.mxu0 %v2367
        %4010 = vmatprep.subr.bf16.mxu0 %v2364
        %4011 = vmatpush1.bf16.msra.mxu0 %v2363
        %4012 = vmatprep.subr.bf16.mxu0 %v2360
        %4013 = vmatpush1.bf16.msra.mxu0 %v2359
        %4014 = vmatprep.subr.bf16.mxu0 %v2356
        %4015 = vmatpush1.bf16.msra.mxu0 %v2355
        %4016 = vmatprep.subr.bf16.mxu0 %v2352
        %4017 = vmatpush1.bf16.msra.mxu0 %v2351
        %4018 = vmatprep.subr.bf16.mxu0 %v2348
        %4019 = vmatpush1.bf16.msra.mxu0 %v2347
        %4020 = vmatprep.subr.bf16.mxu0 %v2344
        %4021 = vmatpush1.bf16.msra.mxu0 %v2343
        %4022 = vmatprep.subr.bf16.mxu0 %v2340
        %4023 = vmatpush1.bf16.msra.mxu0 %v2339
        %4024 = vmatprep.subr.bf16.mxu0 %v2400
        %4025 = vmatpush2.bf16.msra.mxu0 %v2399
        %4026 = vmatprep.subr.bf16.mxu0 %v2396
        %4027 = vmatpush2.bf16.msra.mxu0 %v2395
        %4028 = vmatprep.subr.bf16.mxu0 %v2392
        %4029 = vmatpush2.bf16.msra.mxu0 %v2391
        %4030 = vmatprep.subr.bf16.mxu0 %v2388
        %4031 = vmatpush2.bf16.msra.mxu0 %v2387
        %4032 = vmatprep.subr.bf16.mxu0 %v2384
        %4033 = vmatpush2.bf16.msra.mxu0 %v2383
        %4034 = vmatprep.subr.bf16.mxu0 %v2380
        %4035 = vmatpush2.bf16.msra.mxu0 %v2379
        %4036 = vmatprep.subr.bf16.mxu0 %v2376
        %4037 = vmatpush2.bf16.msra.mxu0 %v2375
        %4038 = vmatprep.subr.bf16.mxu0 %v2372
        %4039 = vmatpush2.bf16.msra.mxu0 %v2371
        %4040 = vmatprep.mubr.bf16.mxu0 %v1128
        %4041 = vmatmul.mubr.bf16.gmra.mxu0 %v1127
        %v4042 = vpop.f32.mrf.mxu0
        %v4043 = vadd.f32 %v3850, %v4042
        %v4044 = vpop.f32.mrf.mxu0
        %v4045 = vadd.f32 %v3852, %v4044
        %v4046 = vpop.f32.mrf.mxu0
        %v4047 = vadd.f32 %v3854, %v4046
        %v4048 = vpop.f32.mrf.mxu0
        %v4049 = vadd.f32 %v3856, %v4048
        %4050 = vmatprep.mubr.bf16.mxu0 %v1136
        %4051 = vmatmul.mubr.bf16.gmra.mxu0 %v1135
        %v4052 = vpop.f32.mrf.mxu0
        %v4053 = vadd.f32 %v3860, %v4052
        %v4054 = vpop.f32.mrf.mxu0
        %v4055 = vadd.f32 %v3862, %v4054
        %v4056 = vpop.f32.mrf.mxu0
        %v4057 = vadd.f32 %v3864, %v4056
        %v4058 = vpop.f32.mrf.mxu0
        %v4059 = vadd.f32 %v3866, %v4058
        %4060 = vmatprep.mubr.bf16.mxu0 %v1144
        %4061 = vmatmul.mubr.bf16.gmra.mxu0 %v1143
        %v4062 = vpop.f32.mrf.mxu0
        %v4063 = vadd.f32 %v3870, %v4062
        %v4064 = vpop.f32.mrf.mxu0
        %v4065 = vadd.f32 %v3872, %v4064
        %v4066 = vpop.f32.mrf.mxu0
        %v4067 = vadd.f32 %v3874, %v4066
        %v4068 = vpop.f32.mrf.mxu0
        %v4069 = vadd.f32 %v3876, %v4068
        %4070 = vmatprep.mubr.bf16.mxu0 %v1152
        %4071 = vmatmul.mubr.bf16.gmra.mxu0 %v1151
        %v4072 = vpop.f32.mrf.mxu0
        %v4073 = vadd.f32 %v3880, %v4072
        %v4074 = vpop.f32.mrf.mxu0
        %v4075 = vadd.f32 %v3882, %v4074
        %v4076 = vpop.f32.mrf.mxu0
        %v4077 = vadd.f32 %v3884, %v4076
        %v4078 = vpop.f32.mrf.mxu0
        %v4079 = vadd.f32 %v3886, %v4078
        %4080 = vmatprep.mubr.bf16.mxu0 %v1160
        %4081 = vmatmul.mubr.bf16.gmra.mxu0 %v1159
        %v4082 = vpop.f32.mrf.mxu0
        %v4083 = vadd.f32 %v3890, %v4082
        %v4084 = vpop.f32.mrf.mxu0
        %v4085 = vadd.f32 %v3892, %v4084
        %v4086 = vpop.f32.mrf.mxu0
        %v4087 = vadd.f32 %v3894, %v4086
        %v4088 = vpop.f32.mrf.mxu0
        %v4089 = vadd.f32 %v3896, %v4088
        %4090 = vmatprep.mubr.bf16.mxu0 %v1168
        %4091 = vmatmul.mubr.bf16.gmra.mxu0 %v1167
        %v4092 = vpop.f32.mrf.mxu0
        %v4093 = vadd.f32 %v3900, %v4092
        %v4094 = vpop.f32.mrf.mxu0
        %v4095 = vadd.f32 %v3902, %v4094
        %v4096 = vpop.f32.mrf.mxu0
        %v4097 = vadd.f32 %v3904, %v4096
        %v4098 = vpop.f32.mrf.mxu0
        %v4099 = vadd.f32 %v3906, %v4098
        %4100 = vmatprep.mubr.bf16.mxu0 %v1176
        %4101 = vmatmul.mubr.bf16.gmra.mxu0 %v1175
        %v4102 = vpop.f32.mrf.mxu0
        %v4103 = vadd.f32 %v3910, %v4102
        %v4104 = vpop.f32.mrf.mxu0
        %v4105 = vadd.f32 %v3912, %v4104
        %v4106 = vpop.f32.mrf.mxu0
        %v4107 = vadd.f32 %v3914, %v4106
        %v4108 = vpop.f32.mrf.mxu0
        %v4109 = vadd.f32 %v3916, %v4108
        %4110 = vmatprep.mubr.bf16.mxu0 %v1184
        %4111 = vmatmul.mubr.bf16.gmra.mxu0 %v1183
        %v4112 = vpop.f32.mrf.mxu0
        %v4113 = vadd.f32 %v3920, %v4112
        %v4114 = vpop.f32.mrf.mxu0
        %v4115 = vadd.f32 %v3922, %v4114
        %v4116 = vpop.f32.mrf.mxu0
        %v4117 = vadd.f32 %v3924, %v4116
        %v4118 = vpop.f32.mrf.mxu0
        %v4119 = vadd.f32 %v3926, %v4118
        %4120 = vmatprep.mubr.bf16.mxu0 %v1192
        %4121 = vmatmul.mubr.bf16.gmra.mxu0 %v1191
        %v4122 = vpop.f32.mrf.mxu0
        %v4123 = vadd.f32 %v3930, %v4122
        %v4124 = vpop.f32.mrf.mxu0
        %v4125 = vadd.f32 %v3932, %v4124
        %v4126 = vpop.f32.mrf.mxu0
        %v4127 = vadd.f32 %v3934, %v4126
        %v4128 = vpop.f32.mrf.mxu0
        %v4129 = vadd.f32 %v3936, %v4128
        %4130 = vmatprep.mubr.bf16.mxu0 %v1200
        %4131 = vmatmul.mubr.bf16.gmra.mxu0 %v1199
        %v4132 = vpop.f32.mrf.mxu0
        %v4133 = vadd.f32 %v3940, %v4132
        %v4134 = vpop.f32.mrf.mxu0
        %v4135 = vadd.f32 %v3942, %v4134
        %v4136 = vpop.f32.mrf.mxu0
        %v4137 = vadd.f32 %v3944, %v4136
        %v4138 = vpop.f32.mrf.mxu0
        %v4139 = vadd.f32 %v3946, %v4138
        %4140 = vmatprep.mubr.bf16.mxu0 %v1208
        %4141 = vmatmul.mubr.bf16.gmra.mxu0 %v1207
        %v4142 = vpop.f32.mrf.mxu0
        %v4143 = vadd.f32 %v3950, %v4142
        %v4144 = vpop.f32.mrf.mxu0
        %v4145 = vadd.f32 %v3952, %v4144
        %v4146 = vpop.f32.mrf.mxu0
        %v4147 = vadd.f32 %v3954, %v4146
        %v4148 = vpop.f32.mrf.mxu0
        %v4149 = vadd.f32 %v3956, %v4148
        %4150 = vmatprep.mubr.bf16.mxu0 %v1216
        %4151 = vmatmul.mubr.bf16.gmra.mxu0 %v1215
        %v4152 = vpop.f32.mrf.mxu0
        %v4153 = vadd.f32 %v3960, %v4152
        %v4154 = vpop.f32.mrf.mxu0
        %v4155 = vadd.f32 %v3962, %v4154
        %v4156 = vpop.f32.mrf.mxu0
        %v4157 = vadd.f32 %v3964, %v4156
        %v4158 = vpop.f32.mrf.mxu0
        %v4159 = vadd.f32 %v3966, %v4158
        %4160 = vmatprep.mubr.bf16.mxu0 %v1224
        %4161 = vmatmul.mubr.bf16.gmra.mxu0 %v1223
        %v4162 = vpop.f32.mrf.mxu0
        %v4163 = vadd.f32 %v3970, %v4162
        %v4164 = vpop.f32.mrf.mxu0
        %v4165 = vadd.f32 %v3972, %v4164
        %v4166 = vpop.f32.mrf.mxu0
        %v4167 = vadd.f32 %v3974, %v4166
        %v4168 = vpop.f32.mrf.mxu0
        %v4169 = vadd.f32 %v3976, %v4168
        %4170 = vmatprep.mubr.bf16.mxu0 %v1232
        %4171 = vmatmul.mubr.bf16.gmra.mxu0 %v1231
        %v4172 = vpop.f32.mrf.mxu0
        %v4173 = vadd.f32 %v3980, %v4172
        %v4174 = vpop.f32.mrf.mxu0
        %v4175 = vadd.f32 %v3982, %v4174
        %v4176 = vpop.f32.mrf.mxu0
        %v4177 = vadd.f32 %v3984, %v4176
        %v4178 = vpop.f32.mrf.mxu0
        %v4179 = vadd.f32 %v3986, %v4178
        %4180 = vmatprep.mubr.bf16.mxu0 %v1240
        %4181 = vmatmul.mubr.bf16.gmra.mxu0 %v1239
        %v4182 = vpop.f32.mrf.mxu0
        %v4183 = vadd.f32 %v3990, %v4182
        %v4184 = vpop.f32.mrf.mxu0
        %v4185 = vadd.f32 %v3992, %v4184
        %v4186 = vpop.f32.mrf.mxu0
        %v4187 = vadd.f32 %v3994, %v4186
        %v4188 = vpop.f32.mrf.mxu0
        %v4189 = vadd.f32 %v3996, %v4188
        %4190 = vmatprep.mubr.bf16.mxu0 %v1248
        %4191 = vmatmul.mubr.bf16.gmra.mxu0 %v1247
        %v4192 = vpop.f32.mrf.mxu0
        %v4193 = vadd.f32 %v4000, %v4192
        %v4194 = vpop.f32.mrf.mxu0
        %v4195 = vadd.f32 %v4002, %v4194
        %v4196 = vpop.f32.mrf.mxu0
        %v4197 = vadd.f32 %v4004, %v4196
        %v4198 = vpop.f32.mrf.mxu0
        %v4199 = vadd.f32 %v4006, %v4198
        %4200 = vdwg.mxu0
        %v4201 = vmax.f32 %v3271, 0.0
        %v4202 = vmax.f32 %v3273, 0.0
        %v4203 = vmax.f32 %v4043, 0.0
        %v4204 = vmax.f32 %v4045, 0.0
        %v4205 = vmax.f32 %v3275, 0.0
        %v4206 = vmax.f32 %v3277, 0.0
        %v4207 = vmax.f32 %v4047, 0.0
        %v4208 = vmax.f32 %v4049, 0.0
        %v4209 = vmax.f32 %v3281, 0.0
        %v4210 = vmax.f32 %v3283, 0.0
        %v4211 = vmax.f32 %v4053, 0.0
        %v4212 = vmax.f32 %v4055, 0.0
        %v4213 = vmax.f32 %v3285, 0.0
        %v4214 = vmax.f32 %v3287, 0.0
        %v4215 = vmax.f32 %v4057, 0.0
        %v4216 = vmax.f32 %v4059, 0.0
        %v4217 = vmax.f32 %v3291, 0.0
        %v4218 = vmax.f32 %v3293, 0.0
        %v4219 = vmax.f32 %v4063, 0.0
        %v4220 = vmax.f32 %v4065, 0.0
        %v4221 = vmax.f32 %v3295, 0.0
        %v4222 = vmax.f32 %v3297, 0.0
        %v4223 = vmax.f32 %v4067, 0.0
        %v4224 = vmax.f32 %v4069, 0.0
        %v4225 = vmax.f32 %v3301, 0.0
        %v4226 = vmax.f32 %v3303, 0.0
        %v4227 = vmax.f32 %v4073, 0.0
        %v4228 = vmax.f32 %v4075, 0.0
        %v4229 = vmax.f32 %v3305, 0.0
        %v4230 = vmax.f32 %v3307, 0.0
        %v4231 = vmax.f32 %v4077, 0.0
        %v4232 = vmax.f32 %v4079, 0.0
        %v4233 = vmax.f32 %v3311, 0.0
        %v4234 = vmax.f32 %v3313, 0.0
        %v4235 = vmax.f32 %v4083, 0.0
        %v4236 = vmax.f32 %v4085, 0.0
        %v4237 = vmax.f32 %v3315, 0.0
        %v4238 = vmax.f32 %v3317, 0.0
        %v4239 = vmax.f32 %v4087, 0.0
        %v4240 = vmax.f32 %v4089, 0.0
        %v4241 = vmax.f32 %v3321, 0.0
        %v4242 = vmax.f32 %v3323, 0.0
        %v4243 = vmax.f32 %v4093, 0.0
        %v4244 = vmax.f32 %v4095, 0.0
        %v4245 = vmax.f32 %v3325, 0.0
        %v4246 = vmax.f32 %v3327, 0.0
        %v4247 = vmax.f32 %v4097, 0.0
        %v4248 = vmax.f32 %v4099, 0.0
        %v4249 = vmax.f32 %v3331, 0.0
        %v4250 = vmax.f32 %v3333, 0.0
        %v4251 = vmax.f32 %v4103, 0.0
        %v4252 = vmax.f32 %v4105, 0.0
        %v4253 = vmax.f32 %v3335, 0.0
        %v4254 = vmax.f32 %v3337, 0.0
        %v4255 = vmax.f32 %v4107, 0.0
        %v4256 = vmax.f32 %v4109, 0.0
        %v4257 = vmax.f32 %v3341, 0.0
        %v4258 = vmax.f32 %v3343, 0.0
        %v4259 = vmax.f32 %v4113, 0.0
        %v4260 = vmax.f32 %v4115, 0.0
        %v4261 = vmax.f32 %v3345, 0.0
        %v4262 = vmax.f32 %v3347, 0.0
        %v4263 = vmax.f32 %v4117, 0.0
        %v4264 = vmax.f32 %v4119, 0.0
        %v4265 = vmax.f32 %v3351, 0.0
        %v4266 = vmax.f32 %v3353, 0.0
        %v4267 = vmax.f32 %v4123, 0.0
        %v4268 = vmax.f32 %v4125, 0.0
        %v4269 = vmax.f32 %v3355, 0.0
        %v4270 = vmax.f32 %v3357, 0.0
        %v4271 = vmax.f32 %v4127, 0.0
        %v4272 = vmax.f32 %v4129, 0.0
        %v4273 = vmax.f32 %v3361, 0.0
        %v4274 = vmax.f32 %v3363, 0.0
        %v4275 = vmax.f32 %v4133, 0.0
        %v4276 = vmax.f32 %v4135, 0.0
        %v4277 = vmax.f32 %v3365, 0.0
        %v4278 = vmax.f32 %v3367, 0.0
        %v4279 = vmax.f32 %v4137, 0.0
        %v4280 = vmax.f32 %v4139, 0.0
        %v4281 = vmax.f32 %v3371, 0.0
        %v4282 = vmax.f32 %v3373, 0.0
        %v4283 = vmax.f32 %v4143, 0.0
        %v4284 = vmax.f32 %v4145, 0.0
        %v4285 = vmax.f32 %v3375, 0.0
        %v4286 = vmax.f32 %v3377, 0.0
        %v4287 = vmax.f32 %v4147, 0.0
        %v4288 = vmax.f32 %v4149, 0.0
        %v4289 = vmax.f32 %v3381, 0.0
        %v4290 = vmax.f32 %v3383, 0.0
        %v4291 = vmax.f32 %v4153, 0.0
        %v4292 = vmax.f32 %v4155, 0.0
        %v4293 = vmax.f32 %v3385, 0.0
        %v4294 = vmax.f32 %v3387, 0.0
        %v4295 = vmax.f32 %v4157, 0.0
        %v4296 = vmax.f32 %v4159, 0.0
        %v4297 = vmax.f32 %v3391, 0.0
        %v4298 = vmax.f32 %v3393, 0.0
        %v4299 = vmax.f32 %v4163, 0.0
        %v4300 = vmax.f32 %v4165, 0.0
        %v4301 = vmax.f32 %v3395, 0.0
        %v4302 = vmax.f32 %v3397, 0.0
        %v4303 = vmax.f32 %v4167, 0.0
        %v4304 = vmax.f32 %v4169, 0.0
        %v4305 = vmax.f32 %v3401, 0.0
        %v4306 = vmax.f32 %v3403, 0.0
        %v4307 = vmax.f32 %v4173, 0.0
        %v4308 = vmax.f32 %v4175, 0.0
        %v4309 = vmax.f32 %v3405, 0.0
        %v4310 = vmax.f32 %v3407, 0.0
        %v4311 = vmax.f32 %v4177, 0.0
        %v4312 = vmax.f32 %v4179, 0.0
        %v4313 = vmax.f32 %v3411, 0.0
        %v4314 = vmax.f32 %v3413, 0.0
        %v4315 = vmax.f32 %v4183, 0.0
        %v4316 = vmax.f32 %v4185, 0.0
        %v4317 = vmax.f32 %v3415, 0.0
        %v4318 = vmax.f32 %v3417, 0.0
        %v4319 = vmax.f32 %v4187, 0.0
        %v4320 = vmax.f32 %v4189, 0.0
        %v4321 = vmax.f32 %v3421, 0.0
        %v4322 = vmax.f32 %v3423, 0.0
        %v4323 = vmax.f32 %v4193, 0.0
        %v4324 = vmax.f32 %v4195, 0.0
        %v4325 = vmax.f32 %v3425, 0.0
        %v4326 = vmax.f32 %v3427, 0.0
        %v4327 = vmax.f32 %v4197, 0.0
        %v4328 = vmax.f32 %v4199, 0.0
        %v4329 = vpack.c.bf16 %v4205, %v4201
        %v4330 = vpack.c.bf16 %v4206, %v4202
        %v4331 = vpack.c.bf16 %v4207, %v4203
        %v4332 = vpack.c.bf16 %v4208, %v4204
        %v4333 = vpack.c.bf16 %v4213, %v4209
        %v4334 = vpack.c.bf16 %v4214, %v4210
        %v4335 = vpack.c.bf16 %v4215, %v4211
        %v4336 = vpack.c.bf16 %v4216, %v4212
        %v4337 = vpack.c.bf16 %v4221, %v4217
        %v4338 = vpack.c.bf16 %v4222, %v4218
        %v4339 = vpack.c.bf16 %v4223, %v4219
        %v4340 = vpack.c.bf16 %v4224, %v4220
        %v4341 = vpack.c.bf16 %v4229, %v4225
        %v4342 = vpack.c.bf16 %v4230, %v4226
        %v4343 = vpack.c.bf16 %v4231, %v4227
        %v4344 = vpack.c.bf16 %v4232, %v4228
        %v4345 = vpack.c.bf16 %v4237, %v4233
        %v4346 = vpack.c.bf16 %v4238, %v4234
        %v4347 = vpack.c.bf16 %v4239, %v4235
        %v4348 = vpack.c.bf16 %v4240, %v4236
        %v4349 = vpack.c.bf16 %v4245, %v4241
        %v4350 = vpack.c.bf16 %v4246, %v4242
        %v4351 = vpack.c.bf16 %v4247, %v4243
        %v4352 = vpack.c.bf16 %v4248, %v4244
        %v4353 = vpack.c.bf16 %v4253, %v4249
        %v4354 = vpack.c.bf16 %v4254, %v4250
        %v4355 = vpack.c.bf16 %v4255, %v4251
        %v4356 = vpack.c.bf16 %v4256, %v4252
        %v4357 = vpack.c.bf16 %v4261, %v4257
        %v4358 = vpack.c.bf16 %v4262, %v4258
        %v4359 = vpack.c.bf16 %v4263, %v4259
        %v4360 = vpack.c.bf16 %v4264, %v4260
        %v4361 = vpack.c.bf16 %v4269, %v4265
        %v4362 = vpack.c.bf16 %v4270, %v4266
        %v4363 = vpack.c.bf16 %v4271, %v4267
        %v4364 = vpack.c.bf16 %v4272, %v4268
        %v4365 = vpack.c.bf16 %v4277, %v4273
        %v4366 = vpack.c.bf16 %v4278, %v4274
        %v4367 = vpack.c.bf16 %v4279, %v4275
        %v4368 = vpack.c.bf16 %v4280, %v4276
        %v4369 = vpack.c.bf16 %v4285, %v4281
        %v4370 = vpack.c.bf16 %v4286, %v4282
        %v4371 = vpack.c.bf16 %v4287, %v4283
        %v4372 = vpack.c.bf16 %v4288, %v4284
        %v4373 = vpack.c.bf16 %v4293, %v4289
        %v4374 = vpack.c.bf16 %v4294, %v4290
        %v4375 = vpack.c.bf16 %v4295, %v4291
        %v4376 = vpack.c.bf16 %v4296, %v4292
        %v4377 = vpack.c.bf16 %v4301, %v4297
        %v4378 = vpack.c.bf16 %v4302, %v4298
        %v4379 = vpack.c.bf16 %v4303, %v4299
        %v4380 = vpack.c.bf16 %v4304, %v4300
        %v4381 = vpack.c.bf16 %v4309, %v4305
        %v4382 = vpack.c.bf16 %v4310, %v4306
        %v4383 = vpack.c.bf16 %v4311, %v4307
        %v4384 = vpack.c.bf16 %v4312, %v4308
        %v4385 = vpack.c.bf16 %v4317, %v4313
        %v4386 = vpack.c.bf16 %v4318, %v4314
        %v4387 = vpack.c.bf16 %v4319, %v4315
        %v4388 = vpack.c.bf16 %v4320, %v4316
        %v4389 = vpack.c.bf16 %v4325, %v4321
        %v4390 = vpack.c.bf16 %v4326, %v4322
        %v4391 = vpack.c.bf16 %v4327, %v4323
        %v4392 = vpack.c.bf16 %v4328, %v4324
        %v4393 = vld [vmem:[#allocation8] sm:$0xf]
        %v4394 = vld [vmem:[#allocation8 + $0x4] sm:$0xf]
        %v4395 = vld [vmem:[#allocation8 + $0x8] sm:$0xf]
        %v4396 = vld [vmem:[#allocation8 + $0xc] sm:$0xf]
        %v4397 = vld [vmem:[#allocation8 + $0x10] sm:$0xf]
        %v4398 = vld [vmem:[#allocation8 + $0x14] sm:$0xf]
        %v4399 = vld [vmem:[#allocation8 + $0x18] sm:$0xf]
        %v4400 = vld [vmem:[#allocation8 + $0x1c] sm:$0xf]
        %v4401 = vld [vmem:[#allocation8 + $0x20] sm:$0xf]
        %v4402 = vld [vmem:[#allocation8 + $0x24] sm:$0xf]
        %v4403 = vld [vmem:[#allocation8 + $0x28] sm:$0xf]
        %v4404 = vld [vmem:[#allocation8 + $0x2c] sm:$0xf]
        %v4405 = vld [vmem:[#allocation8 + $0x30] sm:$0xf]
        %v4406 = vld [vmem:[#allocation8 + $0x34] sm:$0xf]
        %v4407 = vld [vmem:[#allocation8 + $0x38] sm:$0xf]
        %v4408 = vld [vmem:[#allocation8 + $0x3c] sm:$0xf]
        %v4409 = vld [vmem:[#allocation8 + $0x40] sm:$0xf]
        %v4410 = vld [vmem:[#allocation8 + $0x44] sm:$0xf]
        %v4411 = vld [vmem:[#allocation8 + $0x48] sm:$0xf]
        %v4412 = vld [vmem:[#allocation8 + $0x4c] sm:$0xf]
        %v4413 = vld [vmem:[#allocation8 + $0x50] sm:$0xf]
        %v4414 = vld [vmem:[#allocation8 + $0x54] sm:$0xf]
        %v4415 = vld [vmem:[#allocation8 + $0x58] sm:$0xf]
        %v4416 = vld [vmem:[#allocation8 + $0x5c] sm:$0xf]
        %v4417 = vld [vmem:[#allocation8 + $0x60] sm:$0xf]
        %v4418 = vld [vmem:[#allocation8 + $0x64] sm:$0xf]
        %v4419 = vld [vmem:[#allocation8 + $0x68] sm:$0xf]
        %v4420 = vld [vmem:[#allocation8 + $0x6c] sm:$0xf]
        %v4421 = vld [vmem:[#allocation8 + $0x70] sm:$0xf]
        %v4422 = vld [vmem:[#allocation8 + $0x74] sm:$0xf]
        %v4423 = vld [vmem:[#allocation8 + $0x78] sm:$0xf]
        %v4424 = vld [vmem:[#allocation8 + $0x7c] sm:$0xf]
        %v4425 = vld [vmem:[#allocation8 + $0x80] sm:$0xf]
        %v4426 = vld [vmem:[#allocation8 + $0x84] sm:$0xf]
        %v4427 = vld [vmem:[#allocation8 + $0x88] sm:$0xf]
        %v4428 = vld [vmem:[#allocation8 + $0x8c] sm:$0xf]
        %v4429 = vld [vmem:[#allocation8 + $0x90] sm:$0xf]
        %v4430 = vld [vmem:[#allocation8 + $0x94] sm:$0xf]
        %v4431 = vld [vmem:[#allocation8 + $0x98] sm:$0xf]
        %v4432 = vld [vmem:[#allocation8 + $0x9c] sm:$0xf]
        %v4433 = vld [vmem:[#allocation8 + $0xa0] sm:$0xf]
        %v4434 = vld [vmem:[#allocation8 + $0xa4] sm:$0xf]
        %v4435 = vld [vmem:[#allocation8 + $0xa8] sm:$0xf]
        %v4436 = vld [vmem:[#allocation8 + $0xac] sm:$0xf]
        %v4437 = vld [vmem:[#allocation8 + $0xb0] sm:$0xf]
        %v4438 = vld [vmem:[#allocation8 + $0xb4] sm:$0xf]
        %v4439 = vld [vmem:[#allocation8 + $0xb8] sm:$0xf]
        %v4440 = vld [vmem:[#allocation8 + $0xbc] sm:$0xf]
        %v4441 = vld [vmem:[#allocation8 + $0xc0] sm:$0xf]
        %v4442 = vld [vmem:[#allocation8 + $0xc4] sm:$0xf]
        %v4443 = vld [vmem:[#allocation8 + $0xc8] sm:$0xf]
        %v4444 = vld [vmem:[#allocation8 + $0xcc] sm:$0xf]
        %v4445 = vld [vmem:[#allocation8 + $0xd0] sm:$0xf]
        %v4446 = vld [vmem:[#allocation8 + $0xd4] sm:$0xf]
        %v4447 = vld [vmem:[#allocation8 + $0xd8] sm:$0xf]
        %v4448 = vld [vmem:[#allocation8 + $0xdc] sm:$0xf]
        %v4449 = vld [vmem:[#allocation8 + $0xe0] sm:$0xf]
        %v4450 = vld [vmem:[#allocation8 + $0xe4] sm:$0xf]
        %v4451 = vld [vmem:[#allocation8 + $0xe8] sm:$0xf]
        %v4452 = vld [vmem:[#allocation8 + $0xec] sm:$0xf]
        %v4453 = vld [vmem:[#allocation8 + $0xf0] sm:$0xf]
        %v4454 = vld [vmem:[#allocation8 + $0xf4] sm:$0xf]
        %v4455 = vld [vmem:[#allocation8 + $0xf8] sm:$0xf]
        %v4456 = vld [vmem:[#allocation8 + $0xfc] sm:$0xf]
        %v4457 = vld [vmem:[%s4] sm:$0x1]
        %v4459 = vlaneseq
        %v4460 = vshrl.u32 %v4459, 7
        %v4461 = vsub.s32 0, %v4460
        %v4462 = vrot.slane %v4457, %v4461
        %v4528 = vunpack.c.l.b16 %v4393
        %v4529 = vunpack.c.l.b16 %v4394
        %v4530 = vunpack.c.l.b16 %v4395
        %v4531 = vunpack.c.l.b16 %v4396
        %v4532 = vunpack.c.l.b16 %v4397
        %v4533 = vunpack.c.l.b16 %v4398
        %v4534 = vunpack.c.l.b16 %v4399
        %v4535 = vunpack.c.l.b16 %v4400
        %v4536 = vunpack.c.l.b16 %v4401
        %v4537 = vunpack.c.l.b16 %v4402
        %v4538 = vunpack.c.l.b16 %v4403
        %v4539 = vunpack.c.l.b16 %v4404
        %v4540 = vunpack.c.l.b16 %v4405
        %v4541 = vunpack.c.l.b16 %v4406
        %v4542 = vunpack.c.l.b16 %v4407
        %v4543 = vunpack.c.l.b16 %v4408
        %v4544 = vunpack.c.l.b16 %v4409
        %v4545 = vunpack.c.l.b16 %v4410
        %v4546 = vunpack.c.l.b16 %v4411
        %v4547 = vunpack.c.l.b16 %v4412
        %v4548 = vunpack.c.l.b16 %v4413
        %v4549 = vunpack.c.l.b16 %v4414
        %v4550 = vunpack.c.l.b16 %v4415
        %v4551 = vunpack.c.l.b16 %v4416
        %v4552 = vunpack.c.l.b16 %v4417
        %v4553 = vunpack.c.l.b16 %v4418
        %v4554 = vunpack.c.l.b16 %v4419
        %v4555 = vunpack.c.l.b16 %v4420
        %v4556 = vunpack.c.l.b16 %v4421
        %v4557 = vunpack.c.l.b16 %v4422
        %v4558 = vunpack.c.l.b16 %v4423
        %v4559 = vunpack.c.l.b16 %v4424
        %v4560 = vunpack.c.l.b16 %v4425
        %v4561 = vunpack.c.l.b16 %v4426
        %v4562 = vunpack.c.l.b16 %v4427
        %v4563 = vunpack.c.l.b16 %v4428
        %v4564 = vunpack.c.l.b16 %v4429
        %v4565 = vunpack.c.l.b16 %v4430
        %v4566 = vunpack.c.l.b16 %v4431
        %v4567 = vunpack.c.l.b16 %v4432
        %v4568 = vunpack.c.l.b16 %v4433
        %v4569 = vunpack.c.l.b16 %v4434
        %v4570 = vunpack.c.l.b16 %v4435
        %v4571 = vunpack.c.l.b16 %v4436
        %v4572 = vunpack.c.l.b16 %v4437
        %v4573 = vunpack.c.l.b16 %v4438
        %v4574 = vunpack.c.l.b16 %v4439
        %v4575 = vunpack.c.l.b16 %v4440
        %v4576 = vunpack.c.l.b16 %v4441
        %v4577 = vunpack.c.l.b16 %v4442
        %v4578 = vunpack.c.l.b16 %v4443
        %v4579 = vunpack.c.l.b16 %v4444
        %v4580 = vunpack.c.l.b16 %v4445
        %v4581 = vunpack.c.l.b16 %v4446
        %v4582 = vunpack.c.l.b16 %v4447
        %v4583 = vunpack.c.l.b16 %v4448
        %v4584 = vunpack.c.l.b16 %v4449
        %v4585 = vunpack.c.l.b16 %v4450
        %v4586 = vunpack.c.l.b16 %v4451
        %v4587 = vunpack.c.l.b16 %v4452
        %v4588 = vunpack.c.l.b16 %v4453
        %v4589 = vunpack.c.l.b16 %v4454
        %v4590 = vunpack.c.l.b16 %v4455
        %v4591 = vunpack.c.l.b16 %v4456
        %v4592 = vpack.c.b16 %v4529, %v4528
        %v4593 = vpack.c.b16 %v4531, %v4530
        %v4594 = vpack.c.b16 %v4533, %v4532
        %v4595 = vpack.c.b16 %v4535, %v4534
        %v4596 = vpack.c.b16 %v4537, %v4536
        %v4597 = vpack.c.b16 %v4539, %v4538
        %v4598 = vpack.c.b16 %v4541, %v4540
        %v4599 = vpack.c.b16 %v4543, %v4542
        %v4600 = vpack.c.b16 %v4545, %v4544
        %v4601 = vpack.c.b16 %v4547, %v4546
        %v4602 = vpack.c.b16 %v4549, %v4548
        %v4603 = vpack.c.b16 %v4551, %v4550
        %v4604 = vpack.c.b16 %v4553, %v4552
        %v4605 = vpack.c.b16 %v4555, %v4554
        %v4606 = vpack.c.b16 %v4557, %v4556
        %v4607 = vpack.c.b16 %v4559, %v4558
        %v4608 = vpack.c.b16 %v4561, %v4560
        %v4609 = vpack.c.b16 %v4563, %v4562
        %v4610 = vpack.c.b16 %v4565, %v4564
        %v4611 = vpack.c.b16 %v4567, %v4566
        %v4612 = vpack.c.b16 %v4569, %v4568
        %v4613 = vpack.c.b16 %v4571, %v4570
        %v4614 = vpack.c.b16 %v4573, %v4572
        %v4615 = vpack.c.b16 %v4575, %v4574
        %v4616 = vpack.c.b16 %v4577, %v4576
        %v4617 = vpack.c.b16 %v4579, %v4578
        %v4618 = vpack.c.b16 %v4581, %v4580
        %v4619 = vpack.c.b16 %v4583, %v4582
        %v4620 = vpack.c.b16 %v4585, %v4584
        %v4621 = vpack.c.b16 %v4587, %v4586
        %v4622 = vpack.c.b16 %v4589, %v4588
        %v4623 = vpack.c.b16 %v4591, %v4590
        %4656 = vmatprep.subr.bf16.mxu0 0
        %4657 = vmatpush1.bf16.msra.mxu0 %v4599
        %4658 = vmatprep.subr.bf16.mxu0 0
        %4659 = vmatpush1.bf16.msra.mxu0 %v4598
        %4660 = vmatprep.subr.bf16.mxu0 0
        %4661 = vmatpush1.bf16.msra.mxu0 %v4597
        %4662 = vmatprep.subr.bf16.mxu0 0
        %4663 = vmatpush1.bf16.msra.mxu0 %v4596
        %4664 = vmatprep.subr.bf16.mxu0 0
        %4665 = vmatpush1.bf16.msra.mxu0 %v4595
        %4666 = vmatprep.subr.bf16.mxu0 0
        %4667 = vmatpush1.bf16.msra.mxu0 %v4594
        %4668 = vmatprep.subr.bf16.mxu0 0
        %4669 = vmatpush1.bf16.msra.mxu0 %v4593
        %4670 = vmatprep.subr.bf16.mxu0 0
        %4671 = vmatpush1.bf16.msra.mxu0 %v4592
        %4672 = vmatprep.subr.bf16.mxu0 0
        %4673 = vmatpush2.bf16.msra.mxu0 %v4607
        %4674 = vmatprep.subr.bf16.mxu0 0
        %4675 = vmatpush2.bf16.msra.mxu0 %v4606
        %4676 = vmatprep.subr.bf16.mxu0 0
        %4677 = vmatpush2.bf16.msra.mxu0 %v4605
        %4678 = vmatprep.subr.bf16.mxu0 0
        %4679 = vmatpush2.bf16.msra.mxu0 %v4604
        %4680 = vmatprep.subr.bf16.mxu0 0
        %4681 = vmatpush2.bf16.msra.mxu0 %v4603
        %4682 = vmatprep.subr.bf16.mxu0 0
        %4683 = vmatpush2.bf16.msra.mxu0 %v4602
        %4684 = vmatprep.subr.bf16.mxu0 0
        %4685 = vmatpush2.bf16.msra.mxu0 %v4601
        %4686 = vmatprep.subr.bf16.mxu0 0
        %4687 = vmatpush2.bf16.msra.mxu0 %v4600
        %4688 = vmatprep.mubr.bf16.mxu0 %v4330
        %4689 = vmatmul.mubr.bf16.gmra.mxu0 %v4329
        %v4690 = vpop.f32.mrf.mxu0
        %v4691 = vadd.f32 %v4462, %v4690
        %v4692 = vpop.f32.mrf.mxu0
        %v4693 = vpop.f32.mrf.mxu0
        %v4694 = vadd.f32 %v4462, %v4693
        %v4695 = vpop.f32.mrf.mxu0
        %4696 = vmatprep.mubr.bf16.mxu0 %v4334
        %4697 = vmatmul.mubr.bf16.gmra.mxu0 %v4333
        %v4698 = vpop.f32.mrf.mxu0
        %v4699 = vadd.f32 %v4462, %v4698
        %v4700 = vpop.f32.mrf.mxu0
        %v4701 = vpop.f32.mrf.mxu0
        %v4702 = vadd.f32 %v4462, %v4701
        %v4703 = vpop.f32.mrf.mxu0
        %4704 = vmatprep.mubr.bf16.mxu0 %v4338
        %4705 = vmatmul.mubr.bf16.gmra.mxu0 %v4337
        %v4706 = vpop.f32.mrf.mxu0
        %v4707 = vadd.f32 %v4462, %v4706
        %v4708 = vpop.f32.mrf.mxu0
        %v4709 = vpop.f32.mrf.mxu0
        %v4710 = vadd.f32 %v4462, %v4709
        %v4711 = vpop.f32.mrf.mxu0
        %4712 = vmatprep.mubr.bf16.mxu0 %v4342
        %4713 = vmatmul.mubr.bf16.gmra.mxu0 %v4341
        %v4714 = vpop.f32.mrf.mxu0
        %v4715 = vadd.f32 %v4462, %v4714
        %v4716 = vpop.f32.mrf.mxu0
        %v4717 = vpop.f32.mrf.mxu0
        %v4718 = vadd.f32 %v4462, %v4717
        %v4719 = vpop.f32.mrf.mxu0
        %4720 = vmatprep.mubr.bf16.mxu0 %v4346
        %4721 = vmatmul.mubr.bf16.gmra.mxu0 %v4345
        %v4722 = vpop.f32.mrf.mxu0
        %v4723 = vadd.f32 %v4462, %v4722
        %v4724 = vpop.f32.mrf.mxu0
        %v4725 = vpop.f32.mrf.mxu0
        %v4726 = vadd.f32 %v4462, %v4725
        %v4727 = vpop.f32.mrf.mxu0
        %4728 = vmatprep.mubr.bf16.mxu0 %v4350
        %4729 = vmatmul.mubr.bf16.gmra.mxu0 %v4349
        %v4730 = vpop.f32.mrf.mxu0
        %v4731 = vadd.f32 %v4462, %v4730
        %v4732 = vpop.f32.mrf.mxu0
        %v4733 = vpop.f32.mrf.mxu0
        %v4734 = vadd.f32 %v4462, %v4733
        %v4735 = vpop.f32.mrf.mxu0
        %4736 = vmatprep.mubr.bf16.mxu0 %v4354
        %4737 = vmatmul.mubr.bf16.gmra.mxu0 %v4353
        %v4738 = vpop.f32.mrf.mxu0
        %v4739 = vadd.f32 %v4462, %v4738
        %v4740 = vpop.f32.mrf.mxu0
        %v4741 = vpop.f32.mrf.mxu0
        %v4742 = vadd.f32 %v4462, %v4741
        %v4743 = vpop.f32.mrf.mxu0
        %4744 = vmatprep.mubr.bf16.mxu0 %v4358
        %4745 = vmatmul.mubr.bf16.gmra.mxu0 %v4357
        %v4746 = vpop.f32.mrf.mxu0
        %v4747 = vadd.f32 %v4462, %v4746
        %v4748 = vpop.f32.mrf.mxu0
        %v4749 = vpop.f32.mrf.mxu0
        %v4750 = vadd.f32 %v4462, %v4749
        %v4751 = vpop.f32.mrf.mxu0
        %4752 = vmatprep.mubr.bf16.mxu0 %v4362
        %4753 = vmatmul.mubr.bf16.gmra.mxu0 %v4361
        %v4754 = vpop.f32.mrf.mxu0
        %v4755 = vadd.f32 %v4462, %v4754
        %v4756 = vpop.f32.mrf.mxu0
        %v4757 = vpop.f32.mrf.mxu0
        %v4758 = vadd.f32 %v4462, %v4757
        %v4759 = vpop.f32.mrf.mxu0
        %4760 = vmatprep.mubr.bf16.mxu0 %v4366
        %4761 = vmatmul.mubr.bf16.gmra.mxu0 %v4365
        %v4762 = vpop.f32.mrf.mxu0
        %v4763 = vadd.f32 %v4462, %v4762
        %v4764 = vpop.f32.mrf.mxu0
        %v4765 = vpop.f32.mrf.mxu0
        %v4766 = vadd.f32 %v4462, %v4765
        %v4767 = vpop.f32.mrf.mxu0
        %4768 = vmatprep.mubr.bf16.mxu0 %v4370
        %4769 = vmatmul.mubr.bf16.gmra.mxu0 %v4369
        %v4770 = vpop.f32.mrf.mxu0
        %v4771 = vadd.f32 %v4462, %v4770
        %v4772 = vpop.f32.mrf.mxu0
        %v4773 = vpop.f32.mrf.mxu0
        %v4774 = vadd.f32 %v4462, %v4773
        %v4775 = vpop.f32.mrf.mxu0
        %4776 = vmatprep.mubr.bf16.mxu0 %v4374
        %4777 = vmatmul.mubr.bf16.gmra.mxu0 %v4373
        %v4778 = vpop.f32.mrf.mxu0
        %v4779 = vadd.f32 %v4462, %v4778
        %v4780 = vpop.f32.mrf.mxu0
        %v4781 = vpop.f32.mrf.mxu0
        %v4782 = vadd.f32 %v4462, %v4781
        %v4783 = vpop.f32.mrf.mxu0
        %4784 = vmatprep.mubr.bf16.mxu0 %v4378
        %4785 = vmatmul.mubr.bf16.gmra.mxu0 %v4377
        %v4786 = vpop.f32.mrf.mxu0
        %v4787 = vadd.f32 %v4462, %v4786
        %v4788 = vpop.f32.mrf.mxu0
        %v4789 = vpop.f32.mrf.mxu0
        %v4790 = vadd.f32 %v4462, %v4789
        %v4791 = vpop.f32.mrf.mxu0
        %4792 = vmatprep.mubr.bf16.mxu0 %v4382
        %4793 = vmatmul.mubr.bf16.gmra.mxu0 %v4381
        %v4794 = vpop.f32.mrf.mxu0
        %v4795 = vadd.f32 %v4462, %v4794
        %v4796 = vpop.f32.mrf.mxu0
        %v4797 = vpop.f32.mrf.mxu0
        %v4798 = vadd.f32 %v4462, %v4797
        %v4799 = vpop.f32.mrf.mxu0
        %4800 = vmatprep.mubr.bf16.mxu0 %v4386
        %4801 = vmatmul.mubr.bf16.gmra.mxu0 %v4385
        %v4802 = vpop.f32.mrf.mxu0
        %v4803 = vadd.f32 %v4462, %v4802
        %v4804 = vpop.f32.mrf.mxu0
        %v4805 = vpop.f32.mrf.mxu0
        %v4806 = vadd.f32 %v4462, %v4805
        %v4807 = vpop.f32.mrf.mxu0
        %4808 = vmatprep.mubr.bf16.mxu0 %v4390
        %4809 = vmatmul.mubr.bf16.gmra.mxu0 %v4389
        %v4810 = vpop.f32.mrf.mxu0
        %v4811 = vadd.f32 %v4462, %v4810
        %v4812 = vpop.f32.mrf.mxu0
        %v4813 = vpop.f32.mrf.mxu0
        %v4814 = vadd.f32 %v4462, %v4813
        %v4815 = vpop.f32.mrf.mxu0
        %4816 = vdwg.mxu0
        %4817 = vmatprep.subr.bf16.mxu0 0
        %4818 = vmatpush1.bf16.msra.mxu0 %v4615
        %4819 = vmatprep.subr.bf16.mxu0 0
        %4820 = vmatpush1.bf16.msra.mxu0 %v4614
        %4821 = vmatprep.subr.bf16.mxu0 0
        %4822 = vmatpush1.bf16.msra.mxu0 %v4613
        %4823 = vmatprep.subr.bf16.mxu0 0
        %4824 = vmatpush1.bf16.msra.mxu0 %v4612
        %4825 = vmatprep.subr.bf16.mxu0 0
        %4826 = vmatpush1.bf16.msra.mxu0 %v4611
        %4827 = vmatprep.subr.bf16.mxu0 0
        %4828 = vmatpush1.bf16.msra.mxu0 %v4610
        %4829 = vmatprep.subr.bf16.mxu0 0
        %4830 = vmatpush1.bf16.msra.mxu0 %v4609
        %4831 = vmatprep.subr.bf16.mxu0 0
        %4832 = vmatpush1.bf16.msra.mxu0 %v4608
        %4833 = vmatprep.subr.bf16.mxu0 0
        %4834 = vmatpush2.bf16.msra.mxu0 %v4623
        %4835 = vmatprep.subr.bf16.mxu0 0
        %4836 = vmatpush2.bf16.msra.mxu0 %v4622
        %4837 = vmatprep.subr.bf16.mxu0 0
        %4838 = vmatpush2.bf16.msra.mxu0 %v4621
        %4839 = vmatprep.subr.bf16.mxu0 0
        %4840 = vmatpush2.bf16.msra.mxu0 %v4620
        %4841 = vmatprep.subr.bf16.mxu0 0
        %4842 = vmatpush2.bf16.msra.mxu0 %v4619
        %4843 = vmatprep.subr.bf16.mxu0 0
        %4844 = vmatpush2.bf16.msra.mxu0 %v4618
        %4845 = vmatprep.subr.bf16.mxu0 0
        %4846 = vmatpush2.bf16.msra.mxu0 %v4617
        %4847 = vmatprep.subr.bf16.mxu0 0
        %4848 = vmatpush2.bf16.msra.mxu0 %v4616
        %4849 = vmatprep.mubr.bf16.mxu0 %v4332
        %4850 = vmatmul.mubr.bf16.gmra.mxu0 %v4331
        %v4851 = vpop.f32.mrf.mxu0
        %v4852 = vadd.f32 %v4691, %v4851
        %v4853 = vpop.f32.mrf.mxu0
        %v4854 = vpop.f32.mrf.mxu0
        %v4855 = vadd.f32 %v4694, %v4854
        %v4856 = vpop.f32.mrf.mxu0
        %4857 = vmatprep.mubr.bf16.mxu0 %v4336
        %4858 = vmatmul.mubr.bf16.gmra.mxu0 %v4335
        %v4859 = vpop.f32.mrf.mxu0
        %v4860 = vadd.f32 %v4699, %v4859
        %v4861 = vpop.f32.mrf.mxu0
        %v4862 = vpop.f32.mrf.mxu0
        %v4863 = vadd.f32 %v4702, %v4862
        %v4864 = vpop.f32.mrf.mxu0
        %4865 = vmatprep.mubr.bf16.mxu0 %v4340
        %4866 = vmatmul.mubr.bf16.gmra.mxu0 %v4339
        %v4867 = vpop.f32.mrf.mxu0
        %v4868 = vadd.f32 %v4707, %v4867
        %v4869 = vpop.f32.mrf.mxu0
        %v4870 = vpop.f32.mrf.mxu0
        %v4871 = vadd.f32 %v4710, %v4870
        %v4872 = vpop.f32.mrf.mxu0
        %4873 = vmatprep.mubr.bf16.mxu0 %v4344
        %4874 = vmatmul.mubr.bf16.gmra.mxu0 %v4343
        %v4875 = vpop.f32.mrf.mxu0
        %v4876 = vadd.f32 %v4715, %v4875
        %v4877 = vpop.f32.mrf.mxu0
        %v4878 = vpop.f32.mrf.mxu0
        %v4879 = vadd.f32 %v4718, %v4878
        %v4880 = vpop.f32.mrf.mxu0
        %4881 = vmatprep.mubr.bf16.mxu0 %v4348
        %4882 = vmatmul.mubr.bf16.gmra.mxu0 %v4347
        %v4883 = vpop.f32.mrf.mxu0
        %v4884 = vadd.f32 %v4723, %v4883
        %v4885 = vpop.f32.mrf.mxu0
        %v4886 = vpop.f32.mrf.mxu0
        %v4887 = vadd.f32 %v4726, %v4886
        %v4888 = vpop.f32.mrf.mxu0
        %4889 = vmatprep.mubr.bf16.mxu0 %v4352
        %4890 = vmatmul.mubr.bf16.gmra.mxu0 %v4351
        %v4891 = vpop.f32.mrf.mxu0
        %v4892 = vadd.f32 %v4731, %v4891
        %v4893 = vpop.f32.mrf.mxu0
        %v4894 = vpop.f32.mrf.mxu0
        %v4895 = vadd.f32 %v4734, %v4894
        %v4896 = vpop.f32.mrf.mxu0
        %4897 = vmatprep.mubr.bf16.mxu0 %v4356
        %4898 = vmatmul.mubr.bf16.gmra.mxu0 %v4355
        %v4899 = vpop.f32.mrf.mxu0
        %v4900 = vadd.f32 %v4739, %v4899
        %v4901 = vpop.f32.mrf.mxu0
        %v4902 = vpop.f32.mrf.mxu0
        %v4903 = vadd.f32 %v4742, %v4902
        %v4904 = vpop.f32.mrf.mxu0
        %4905 = vmatprep.mubr.bf16.mxu0 %v4360
        %4906 = vmatmul.mubr.bf16.gmra.mxu0 %v4359
        %v4907 = vpop.f32.mrf.mxu0
        %v4908 = vadd.f32 %v4747, %v4907
        %v4909 = vpop.f32.mrf.mxu0
        %v4910 = vpop.f32.mrf.mxu0
        %v4911 = vadd.f32 %v4750, %v4910
        %v4912 = vpop.f32.mrf.mxu0
        %4913 = vmatprep.mubr.bf16.mxu0 %v4364
        %4914 = vmatmul.mubr.bf16.gmra.mxu0 %v4363
        %v4915 = vpop.f32.mrf.mxu0
        %v4916 = vadd.f32 %v4755, %v4915
        %v4917 = vpop.f32.mrf.mxu0
        %v4918 = vpop.f32.mrf.mxu0
        %v4919 = vadd.f32 %v4758, %v4918
        %v4920 = vpop.f32.mrf.mxu0
        %4921 = vmatprep.mubr.bf16.mxu0 %v4368
        %4922 = vmatmul.mubr.bf16.gmra.mxu0 %v4367
        %v4923 = vpop.f32.mrf.mxu0
        %v4924 = vadd.f32 %v4763, %v4923
        %v4925 = vpop.f32.mrf.mxu0
        %v4926 = vpop.f32.mrf.mxu0
        %v4927 = vadd.f32 %v4766, %v4926
        %v4928 = vpop.f32.mrf.mxu0
        %4929 = vmatprep.mubr.bf16.mxu0 %v4372
        %4930 = vmatmul.mubr.bf16.gmra.mxu0 %v4371
        %v4931 = vpop.f32.mrf.mxu0
        %v4932 = vadd.f32 %v4771, %v4931
        %v4933 = vpop.f32.mrf.mxu0
        %v4934 = vpop.f32.mrf.mxu0
        %v4935 = vadd.f32 %v4774, %v4934
        %v4936 = vpop.f32.mrf.mxu0
        %4937 = vmatprep.mubr.bf16.mxu0 %v4376
        %4938 = vmatmul.mubr.bf16.gmra.mxu0 %v4375
        %v4939 = vpop.f32.mrf.mxu0
        %v4940 = vadd.f32 %v4779, %v4939
        %v4941 = vpop.f32.mrf.mxu0
        %v4942 = vpop.f32.mrf.mxu0
        %v4943 = vadd.f32 %v4782, %v4942
        %v4944 = vpop.f32.mrf.mxu0
        %4945 = vmatprep.mubr.bf16.mxu0 %v4380
        %4946 = vmatmul.mubr.bf16.gmra.mxu0 %v4379
        %v4947 = vpop.f32.mrf.mxu0
        %v4948 = vadd.f32 %v4787, %v4947
        %v4949 = vpop.f32.mrf.mxu0
        %v4950 = vpop.f32.mrf.mxu0
        %v4951 = vadd.f32 %v4790, %v4950
        %v4952 = vpop.f32.mrf.mxu0
        %4953 = vmatprep.mubr.bf16.mxu0 %v4384
        %4954 = vmatmul.mubr.bf16.gmra.mxu0 %v4383
        %v4955 = vpop.f32.mrf.mxu0
        %v4956 = vadd.f32 %v4795, %v4955
        %v4957 = vpop.f32.mrf.mxu0
        %v4958 = vpop.f32.mrf.mxu0
        %v4959 = vadd.f32 %v4798, %v4958
        %v4960 = vpop.f32.mrf.mxu0
        %4961 = vmatprep.mubr.bf16.mxu0 %v4388
        %4962 = vmatmul.mubr.bf16.gmra.mxu0 %v4387
        %v4963 = vpop.f32.mrf.mxu0
        %v4964 = vadd.f32 %v4803, %v4963
        %v4965 = vpop.f32.mrf.mxu0
        %v4966 = vpop.f32.mrf.mxu0
        %v4967 = vadd.f32 %v4806, %v4966
        %v4968 = vpop.f32.mrf.mxu0
        %4969 = vmatprep.mubr.bf16.mxu0 %v4392
        %4970 = vmatmul.mubr.bf16.gmra.mxu0 %v4391
        %v4971 = vpop.f32.mrf.mxu0
        %v4972 = vadd.f32 %v4811, %v4971
        %v4973 = vpop.f32.mrf.mxu0
        %v4974 = vpop.f32.mrf.mxu0
        %v4975 = vadd.f32 %v4814, %v4974
        %v4976 = vpop.f32.mrf.mxu0
        %4977 = vdwg.mxu0
        %v4978 = vmax.f32 %v4852, 0.0
        %v4979 = vmax.f32 %v4855, 0.0
        %v4980 = vmax.f32 %v4860, 0.0
        %v4981 = vmax.f32 %v4863, 0.0
        %v4982 = vmax.f32 %v4868, 0.0
        %v4983 = vmax.f32 %v4871, 0.0
        %v4984 = vmax.f32 %v4876, 0.0
        %v4985 = vmax.f32 %v4879, 0.0
        %v4986 = vmax.f32 %v4884, 0.0
        %v4987 = vmax.f32 %v4887, 0.0
        %v4988 = vmax.f32 %v4892, 0.0
        %v4989 = vmax.f32 %v4895, 0.0
        %v4990 = vmax.f32 %v4900, 0.0
        %v4991 = vmax.f32 %v4903, 0.0
        %v4992 = vmax.f32 %v4908, 0.0
        %v4993 = vmax.f32 %v4911, 0.0
        %v4994 = vmax.f32 %v4916, 0.0
        %v4995 = vmax.f32 %v4919, 0.0
        %v4996 = vmax.f32 %v4924, 0.0
        %v4997 = vmax.f32 %v4927, 0.0
        %v4998 = vmax.f32 %v4932, 0.0
        %v4999 = vmax.f32 %v4935, 0.0
        %v5000 = vmax.f32 %v4940, 0.0
        %v5001 = vmax.f32 %v4943, 0.0
        %v5002 = vmax.f32 %v4948, 0.0
        %v5003 = vmax.f32 %v4951, 0.0
        %v5004 = vmax.f32 %v4956, 0.0
        %v5005 = vmax.f32 %v4959, 0.0
        %v5006 = vmax.f32 %v4964, 0.0
        %v5007 = vmax.f32 %v4967, 0.0
        %v5008 = vmax.f32 %v4972, 0.0
        %v5009 = vmax.f32 %v4975, 0.0
        %v5010 = vld [vmem:[%s5] sm:$0x1]
        %v5011 = vld [vmem:[#allocation2] sm:$0x1]
        %5013 = vset.pattern.permute.xlu0 0
        %5014 = vperm.xlu0 %5013, %v5011
        %v5015 = vpop.permute.xlu0 %5014
        %v5017 = vlaneseq
        %v5018 = vshrl.u32 %v5017, 7
        %v5019 = vsub.s32 0, %v5018
        %v5020 = vrot.slane %v5015, %v5019
        %5021 = vmatprep.subr.mxu0 0.0
        %5022 = vmatpush1.xpose.msra.mxu0 %v4993
        %5023 = vmatprep.subr.mxu0 0.0
        %5024 = vmatpush1.xpose.msra.mxu0 %v4992
        %5025 = vmatprep.subr.mxu0 0.0
        %5026 = vmatpush1.xpose.msra.mxu0 %v4991
        %5027 = vmatprep.subr.mxu0 0.0
        %5028 = vmatpush1.xpose.msra.mxu0 %v4990
        %5029 = vmatprep.subr.mxu0 0.0
        %5030 = vmatpush1.xpose.msra.mxu0 %v4989
        %5031 = vmatprep.subr.mxu0 0.0
        %5032 = vmatpush1.xpose.msra.mxu0 %v4988
        %5033 = vmatprep.subr.mxu0 0.0
        %5034 = vmatpush1.xpose.msra.mxu0 %v4987
        %5035 = vmatprep.subr.mxu0 0.0
        %5036 = vmatpush1.xpose.msra.mxu0 %v4986
        %5037 = vmatprep.subr.mxu0 0.0
        %5038 = vmatpush1.xpose.msra.mxu0 %v4985
        %5039 = vmatprep.subr.mxu0 0.0
        %5040 = vmatpush1.xpose.msra.mxu0 %v4984
        %5041 = vmatprep.subr.mxu0 0.0
        %5042 = vmatpush1.xpose.msra.mxu0 %v4983
        %5043 = vmatprep.subr.mxu0 0.0
        %5044 = vmatpush1.xpose.msra.mxu0 %v4982
        %5045 = vmatprep.subr.mxu0 0.0
        %5046 = vmatpush1.xpose.msra.mxu0 %v4981
        %5047 = vmatprep.subr.mxu0 0.0
        %5048 = vmatpush1.xpose.msra.mxu0 %v4980
        %5049 = vmatprep.subr.mxu0 0.0
        %5050 = vmatpush1.xpose.msra.mxu0 %v4979
        %5051 = vmatprep.subr.mxu0 0.0
        %5052 = vmatpush1.xpose.msra.mxu0 %v4978
        %5053 = vmatprep.subr.mxu0 0.0
        %5054 = vmatpush2.xpose.msra.mxu0 %v5009
        %5055 = vmatprep.subr.mxu0 0.0
        %5056 = vmatpush2.xpose.msra.mxu0 %v5008
        %5057 = vmatprep.subr.mxu0 0.0
        %5058 = vmatpush2.xpose.msra.mxu0 %v5007
        %5059 = vmatprep.subr.mxu0 0.0
        %5060 = vmatpush2.xpose.msra.mxu0 %v5006
        %5061 = vmatprep.subr.mxu0 0.0
        %5062 = vmatpush2.xpose.msra.mxu0 %v5005
        %5063 = vmatprep.subr.mxu0 0.0
        %5064 = vmatpush2.xpose.msra.mxu0 %v5004
        %5065 = vmatprep.subr.mxu0 0.0
        %5066 = vmatpush2.xpose.msra.mxu0 %v5003
        %5067 = vmatprep.subr.mxu0 0.0
        %5068 = vmatpush2.xpose.msra.mxu0 %v5002
        %5069 = vmatprep.subr.mxu0 0.0
        %5070 = vmatpush2.xpose.msra.mxu0 %v5001
        %5071 = vmatprep.subr.mxu0 0.0
        %5072 = vmatpush2.xpose.msra.mxu0 %v5000
        %5073 = vmatprep.subr.mxu0 0.0
        %5074 = vmatpush2.xpose.msra.mxu0 %v4999
        %5075 = vmatprep.subr.mxu0 0.0
        %5076 = vmatpush2.xpose.msra.mxu0 %v4998
        %5077 = vmatprep.subr.mxu0 0.0
        %5078 = vmatpush2.xpose.msra.mxu0 %v4997
        %5079 = vmatprep.subr.mxu0 0.0
        %5080 = vmatpush2.xpose.msra.mxu0 %v4996
        %5081 = vmatprep.subr.mxu0 0.0
        %5082 = vmatpush2.xpose.msra.mxu0 %v4995
        %5083 = vmatprep.subr.mxu0 0.0
        %5084 = vmatpush2.xpose.msra.mxu0 %v4994
        %5085 = vmatprep.mubr.f32.mxu0 0.0
        %5086 = vmatmul.mubr.f32.gmra.mxu0 %v5010
        %v5087 = vpop.f32.mrf.mxu0
        %v5088 = vadd.f32 %v5020, %v5087
        %v5089 = vpop.f32.mrf.mxu0
        %v5090 = vadd.f32 %v5020, %v5089
        %5091 = vdwg.mxu0
        %v5094 = vcombine.low %v5088, %v5090
        %v5096 = vunpack.c.l.s4 1966171168
        %v5097 = vunpack.c.0.s8 %v5096
        %v5098 = vlaneseq
        %v5099 = vshrl.u32 %v5098, 7
        %v5100 = vsub.s32 %v5097, %v5099
        %v5101 = vrot.slane %v5094, %v5100
        %v5103 = vunpack.c.l.s4 1966171168
        %v5104 = vunpack.c.0.s8 %v5103
        %v5105 = vlaneseq
        %v5106 = vshrl.u32 %v5105, 7
        %v5107 = vsub.s32 %v5104, %v5106
        %v5108 = vrot.slane %v5101, %v5107
        %v5110 = vlaneseq
        %vm5111 = vcmp.ge.s32.totalorder %v5110, 0
        %vm5112 = vcmp.lt.s32.totalorder %v5110, 256
        %vm5113 = vmand %vm5111, %vm5112
        %5114 = vst.msk [vmem:[%s328] sm:$0x3] %vm5113, %v5108
        %s5115 = sand.u32 %s187, 1
        %s5116 = scalar_lea.sflag [#allocation5], %s5115
        %s5117 = sand.u32 %s187, 1
        %s5118 = smul.addr %s5117, 2
        %s5119 = scalar_lea.vmem [#allocation9], %s5118
        // Predicated region
        $region61: #{tpu_custom_call.1} parent=47 // pred_check
          %p5120 = pneg %p197
        $region62: #{tpu_custom_call.1} parent=47 // pred_check_branch
          %5122 = sbr.rel (%p5120) target = $region64
        $region63: #{tpu_custom_call.1} parent=47 // pred_region
          %s5124 = ssub.s32 32, 32
          %5125 = vsyncadd %s5116, %s5124
          %s5126 = smul.addr %s27, 2
          %s5127 = smul.addr %s5126, 16
          %s5128 = scalar_lea.hbm %s7, %s5127
          %s5130 = sshll.u32 %s5119, 4
          %s5131 = int_to_ptr.vmem [resolvable:$true] %s5130
          %5133 = dma.vmem_to_hbm [thread:$0]  %s5131, 32, %s5128, %s5116
        $region64: #{tpu_custom_call.1} parent=47 // pred_fallthru
          _
      $region48: #{tpu_custom_call.1} parent=5 // pred_fallthru
        _
      %p5134 = scmp.le.s32.totalorder 2, %s22
      // Predicated region
      $region65: #{tpu_custom_call.1} parent=5 // pred_check
        %p5135 = pneg %p5134
      $region66: #{tpu_custom_call.1} parent=5 // pred_check_branch
        %5137 = sbr.rel (%p5135) target = $region68
      $region67: #{tpu_custom_call.1} parent=5 // pred_region
        %s5138 = ssub.s32 %s22, 2
        // Predicated region
        $region69: #{tpu_custom_call.1} parent=67 // pred_check
          %p5139 = pneg %p203
        $region70: #{tpu_custom_call.1} parent=67 // pred_check_branch
          %5141 = sbr.rel (%p5139) target = $region72
        $region71: #{tpu_custom_call.1} parent=67 // pred_region
          %s5142 = sand.u32 %s188, 1
          %s5143 = scalar_lea.sflag [#allocation5], %s5142
          %s5144 = sand.u32 %s188, 1
          %s5145 = smul.addr %s5144, 2
          %s5146 = scalar_lea.vmem [#allocation9], %s5145
          %5147 = dma.done %s5143, 32
        $region72: #{tpu_custom_call.1} parent=67 // pred_fallthru
          _
      $region68: #{tpu_custom_call.1} parent=5 // pred_fallthru
        _
    $region6: #{tpu_custom_call.1} parent=1 // loop_footer
      %s26 = sadd.s32 1, %s22
    $region7: #{tpu_custom_call.1} parent=1 // loop_footer_branch
      %21 = sbr.rel target = $region3
    $region8: #{tpu_custom_call.1} parent=1 // loop_exit
      _
    %5148 = vsyncpa [#allocation4], 1
    %s5149 = scalar_lea.sflag [#allocation4], 1
    %5150 = vsyncpa %s5149, 1
    %5151 = vsyncpa [#allocation7], 1
    %5152 = vsyncpa [#allocation5], 1
    %s5153 = scalar_lea.sflag [#allocation5], 1
    %5154 = vsyncpa %s5153, 1

</llo_original>
